<compile_context>
chip_gen: v7x
topology: tpu7x:2x2x1
jax: 0.10.0
libtpu: 0.0.40
codegen_flags: <defaults>
</compile_context>

<pallas_src>
import jax
import jax.numpy as jnp
import numpy as np
from jax.experimental import pallas as pl
from jax.experimental.pallas import tpu as pltpu

# ----------------------------- model config ---------------------------------
INPUT_SIZE = 32          # must equal HIDDEN_DIM because of the forward() bug
HIDDEN_DIM = 32
OUTPUT_SIZE = 16
N_LAYERS = 2


# ------------------------------- kernel -------------------------------------
def _timegan_kernel(wih_ref, whh_ref, bih_ref, bhh_ref, fcw_ref, fcb_ref,
                    out_ref, hid_ref):
    """GRU (n_layers, batch_first) over a zero input sequence + Linear + sigmoid.

    wih_ref : (L-1, H, 3H) input->gate weights for layers 1..L-1 only (layer 0's
                           input is identically zero, so its W_ih is never read
                           and never DMA'd), fused gate order [r|z|n],
                           pre-transposed so x @ W gives the gates
    whh_ref : (L, H, 3H)   hidden->gate weights (same layout)
    bih_ref : (L, 1, 3H)   input biases  [b_ir | b_iz | b_in]
    bhh_ref : (L, 1, 3H)   hidden biases [b_hr | b_hz | b_hn]
    fcw_ref : (H, O)       fc weight (pre-transposed)
    fcb_ref : (1, O)       fc bias
    out_ref : (Bg*T, O)    sigmoid(fc(gru_out)) in batch-first flattened order
    hid_ref : (L, Bg, H)   final hidden state per layer
    """
    H = HIDDEN_DIM
    BG = N_LAYERS                       # GRU "batch" (leading dim of init_hidden)
    T = out_ref.shape[0] // BG          # GRU seq length (== x.size(0) in PyTorch)
    DOT = dict(preferred_element_type=jnp.float32,
               precision=jax.lax.Precision.HIGHEST)

    def sig(v):
        # sigmoid(x) == 0.5*tanh(0.5*x) + 0.5 : a single EUP push per slab,
        # used on the latency-serial recurrent path.
        return 0.5 * jnp.tanh(0.5 * v) + 0.5

    xs = None                           # layer-0 input sequence is identically zero
    for l in range(N_LAYERS):           # layers statically unrolled
        w_hh = whh_ref[l]               # (H, 3H)
        b_ih = bih_ref[l]               # (1, 3H)
        b_hh = bhh_ref[l]               # (1, 3H)
        # Hoisted constant bias slices: r/z biases pre-summed into one vector.
        b_rz = b_ih[:, :2 * H] + b_hh[:, :2 * H]     # (1, 2H)
        b_in = b_ih[:, 2 * H:]                       # (1, H)
        b_hn = b_hh[:, 2 * H:]                       # (1, H)

        if xs is None:
            ih_all = None               # layer 0: x_t == 0  =>  x_t @ W_ih == 0
        else:
            # All of this layer's input-side gate matmuls batched into ONE dot,
            # off the recurrent critical path (time-major (T*BG, 3H) slab).
            xin = jnp.concatenate(xs, axis=0)                   # (T*BG, H)
            ih_all = jnp.dot(xin, wih_ref[l - 1], **DOT)        # (T*BG, 3H)

        h = jnp.zeros((BG, H), jnp.float32)          # recurrent state lives in vregs
        ys = []
        for t in range(T):              # fully unrolled: T is a small static constant
            if ih_all is None:
                ih_rz = 0.0
                ih_n = 0.0
            else:
                ih = ih_all[t * BG:(t + 1) * BG, :]  # static slice of the batched dot
                ih_rz = ih[:, :2 * H]
                ih_n = ih[:, 2 * H:]
            if t == 0:
                # h == 0  =>  hh == 0: skip the recurrent matmul entirely.
                rz = sig(ih_rz + b_rz)               # r|z fused: one EUP slab
                r, z = rz[:, :H], rz[:, H:]
                n = jnp.tanh(ih_n + b_in + r * b_hn)
                # h_prev == 0  =>  h = (1-z)*n ; broadcast handles the layer-0
                # case where the bias-only math produced (1, H).
                h = jnp.broadcast_to(n - z * n, (BG, H))
            else:
                hh = jnp.dot(h, w_hh, **DOT)         # (BG, 3H)
                rz = sig(ih_rz + hh[:, :2 * H] + b_rz)
                r, z = rz[:, :H], rz[:, H:]
                n = jnp.tanh(ih_n + b_in + r * (hh[:, 2 * H:] + b_hn))
                h = n + z * (h - n)                  # == (1-z)*n + z*h, one fewer vmul
            ys.append(h)                # carried as values (vregs), no VMEM traffic
        hid_ref[l] = h                  # final hidden state of layer l
        xs = ys                         # next layer's input / top-layer sequence

    # Epilogue (off the serial chain): build the batch-first flattened slab
    # (row b*T + t == out.view(-1, H) ordering) once from the vreg-resident
    # top-layer sequence, then one fused fc matmul + sigmoid.
    slab = jnp.concatenate(
        [xs[t][b:b + 1, :] for b in range(BG) for t in range(T)], axis=0)  # (BG*T, H)
    logits = jnp.dot(slab, fcw_ref[...], **DOT)
    out_ref[...] = jax.nn.sigmoid(logits + fcb_ref[...])


# ------------------------------- wrapper -------------------------------------
def time_gan_forward(x, params):
    """Reproduces Time_GAN.forward(x) for rnn_type='gru', activation=sigmoid.

    Only x.shape[0] matters (it becomes the GRU sequence length); the values of
    x never enter the computation -- faithful to the PyTorch forward().
    """
    wih, whh, bih, bhh, fcw, fcb = params
    T = int(x.shape[0])                 # PyTorch batch size -> GRU sequence length
    Bg = N_LAYERS                       # GRU "batch" = n_layers
    H, O = HIDDEN_DIM, OUTPUT_SIZE

    # Guard: the kernel fully unrolls the time loop and carries the inter-layer
    # sequence in vregs; beyond small T this would spill to VMEM and blow up
    # compile time.  Larger T would need a fori_loop + VMEM-scratch variant.
    assert T <= 32, "fully-unrolled vreg-resident kernel is intended for small seq lengths"

    vmem = pl.BlockSpec(memory_space=pltpu.MemorySpace.VMEM)
    out, h_n = pl.pallas_call(
        _timegan_kernel,
        out_shape=(jax.ShapeDtypeStruct((Bg * T, O), jnp.float32),
                   jax.ShapeDtypeStruct((N_LAYERS, Bg, H), jnp.float32)),
        in_specs=[vmem] * 6,
        out_specs=(vmem, vmem),
    )(wih[1:], whh, bih, bhh, fcw, fcb)   # layer-0 W_ih is never read: don't DMA it

    # Output is already `out.contiguous().view(-1, hidden_dim) -> fc -> sigmoid`
    # in batch-first order; no wrapper-side transpose/reshape needed.
    return out, h_n


# --------------------------- numpy reference ---------------------------------
def ref_forward_np(x_np, params):
    wih, whh, bih, bhh, fcw, fcb = [np.asarray(p, dtype=np.float32) for p in params]
    T = x_np.shape[0]
    Bg, H, O = N_LAYERS, HIDDEN_DIM, OUTPUT_SIZE

    def sigm(v):
        return 1.0 / (1.0 + np.exp(-v))

    seq = np.zeros((T, Bg, H), np.float32)           # GRU input (all zeros)
    h_n = np.zeros((N_LAYERS, Bg, H), np.float32)
    for l in range(N_LAYERS):
        h = np.zeros((Bg, H), np.float32)
        new_seq = np.zeros_like(seq)
        for t in range(T):
            xt = seq[t]
            ih = xt @ wih[l] + bih[l, 0]             # (Bg, 3H), gates [r|z|n]
            hh = h @ whh[l] + bhh[l, 0]              # (Bg, 3H)
            r = sigm(ih[:, :H] + hh[:, :H])
            z = sigm(ih[:, H:2 * H] + hh[:, H:2 * H])
            n = np.tanh(ih[:, 2 * H:] + r * hh[:, 2 * H:])
            h = (1.0 - z) * n + z * h
            new_seq[t] = h
        seq = new_seq
        h_n[l] = h

    flat = np.transpose(seq, (1, 0, 2)).reshape(Bg * T, H)   # batch-first flatten
    out = sigm(flat @ fcw + fcb[0])
    return out, h_n


# --------------------------------- main ---------------------------------------
if __name__ == "__main__":
    key = jax.random.PRNGKey(0)
    ks = jax.random.split(key, 7)
    bound = 1.0 / np.sqrt(HIDDEN_DIM)

    # Deterministic synthetic parameters (PyTorch-style uniform(-1/sqrt(H), 1/sqrt(H))),
    # generated directly in the fused [r|z|n] layout the kernel consumes.
    wih = jax.random.uniform(ks[0], (N_LAYERS, HIDDEN_DIM, 3 * HIDDEN_DIM),
                             jnp.float32, -bound, bound)
    whh = jax.random.uniform(ks[1], (N_LAYERS, HIDDEN_DIM, 3 * HIDDEN_DIM),
                             jnp.float32, -bound, bound)
    bih = jax.random.uniform(ks[2], (N_LAYERS, 1, 3 * HIDDEN_DIM),
                             jnp.float32, -bound, bound)
    bhh = jax.random.uniform(ks[3], (N_LAYERS, 1, 3 * HIDDEN_DIM),
                             jnp.float32, -bound, bound)
    fcw = jax.random.uniform(ks[4], (HIDDEN_DIM, OUTPUT_SIZE),
                             jnp.float32, -bound, bound)
    fcb = jax.random.uniform(ks[5], (1, OUTPUT_SIZE), jnp.float32, -bound, bound)
    params = (wih, whh, bih, bhh, fcw, fcb)

    # x is only used for its leading dim (becomes the GRU seq length).
    x = jax.random.normal(ks[6], (4, 8, INPUT_SIZE), jnp.float32)

    out, h_n = time_gan_forward(x, params)
    out = jax.block_until_ready(out)
    h_n = jax.block_until_ready(h_n)

    assert out.shape == (N_LAYERS * x.shape[0], OUTPUT_SIZE)
    assert h_n.shape == (N_LAYERS, N_LAYERS, HIDDEN_DIM)

    out_ref, h_ref = ref_forward_np(np.asarray(x), params)
    # With precision=HIGHEST the MXU contribution is near-exact f32; the
    # remaining slack absorbs EUP tanh/sigmoid ULP differences vs. numpy
    # accumulated over 2 layers x T steps.
    np.testing.assert_allclose(np.asarray(out), out_ref, atol=2e-3, rtol=0)
    np.testing.assert_allclose(np.asarray(h_n), h_ref, atol=2e-3, rtol=0)

    print("KERNEL_OK")
</pallas_src>

<mosaic_0001>
module attributes {stable_mosaic.version = 11 : i64} {
  func.func @_timegan_kernel(%arg0: memref<1x32x96xf32, #tpu.memory_space<vmem>>, %arg1: memref<2x32x96xf32, #tpu.memory_space<vmem>>, %arg2: memref<2x1x96xf32, #tpu.memory_space<vmem>>, %arg3: memref<2x1x96xf32, #tpu.memory_space<vmem>>, %arg4: memref<32x16xf32, #tpu.memory_space<vmem>>, %arg5: memref<1x16xf32, #tpu.memory_space<vmem>>, %arg6: memref<8x16xf32, #tpu.memory_space<vmem>>, %arg7: memref<2x2x32xf32, #tpu.memory_space<vmem>>) attributes {dimension_semantics = [], scalar_prefetch = 0 : i64, scratch_operands = 0 : i64, tpu.core_type = #tpu.core_type<tc>} {
    %c0 = arith.constant 0 : index
    %c0_0 = arith.constant 0 : index
    %c0_1 = arith.constant 0 : index
    %0 = vector.load %arg1[%c0, %c0_0, %c0_1] : memref<2x32x96xf32, #tpu.memory_space<vmem>>, vector<1x32x96xf32>
    %1 = vector.shape_cast %0 : vector<1x32x96xf32> to vector<32x96xf32>
    %c0_2 = arith.constant 0 : index
    %c0_3 = arith.constant 0 : index
    %c0_4 = arith.constant 0 : index
    %2 = vector.load %arg2[%c0_2, %c0_3, %c0_4] : memref<2x1x96xf32, #tpu.memory_space<vmem>>, vector<1x1x96xf32>
    %3 = vector.shape_cast %2 : vector<1x1x96xf32> to vector<1x96xf32>
    %c0_5 = arith.constant 0 : index
    %c0_6 = arith.constant 0 : index
    %c0_7 = arith.constant 0 : index
    %4 = vector.load %arg3[%c0_5, %c0_6, %c0_7] : memref<2x1x96xf32, #tpu.memory_space<vmem>>, vector<1x1x96xf32>
    %5 = vector.shape_cast %4 : vector<1x1x96xf32> to vector<1x96xf32>
    %6 = vector.extract_strided_slice %3 {offsets = [0, 0], sizes = [1, 64], strides = [1, 1]} : vector<1x96xf32> to vector<1x64xf32>
    %7 = vector.extract_strided_slice %5 {offsets = [0, 0], sizes = [1, 64], strides = [1, 1]} : vector<1x96xf32> to vector<1x64xf32>
    %8 = arith.addf %6, %7 : vector<1x64xf32>
    %9 = vector.extract_strided_slice %3 {offsets = [0, 64], sizes = [1, 32], strides = [1, 1]} : vector<1x96xf32> to vector<1x32xf32>
    %10 = vector.extract_strided_slice %5 {offsets = [0, 64], sizes = [1, 32], strides = [1, 1]} : vector<1x96xf32> to vector<1x32xf32>
    %cst = arith.constant 0.000000e+00 : f32
    %11 = vector.broadcast %cst : f32 to vector<1x64xf32>
    %12 = arith.addf %11, %8 : vector<1x64xf32>
    %cst_8 = arith.constant 5.000000e-01 : f32
    %13 = vector.broadcast %cst_8 : f32 to vector<1x64xf32>
    %14 = arith.mulf %13, %12 : vector<1x64xf32>
    %15 = math.tanh %14 : vector<1x64xf32>
    %cst_9 = arith.constant 5.000000e-01 : f32
    %16 = vector.broadcast %cst_9 : f32 to vector<1x64xf32>
    %17 = arith.mulf %16, %15 : vector<1x64xf32>
    %cst_10 = arith.constant 5.000000e-01 : f32
    %18 = vector.broadcast %cst_10 : f32 to vector<1x64xf32>
    %19 = arith.addf %17, %18 : vector<1x64xf32>
    %20 = vector.extract_strided_slice %19 {offsets = [0, 0], sizes = [1, 32], strides = [1, 1]} : vector<1x64xf32> to vector<1x32xf32>
    %21 = vector.extract_strided_slice %19 {offsets = [0, 32], sizes = [1, 32], strides = [1, 1]} : vector<1x64xf32> to vector<1x32xf32>
    %cst_11 = arith.constant 0.000000e+00 : f32
    %22 = vector.broadcast %cst_11 : f32 to vector<1x32xf32>
    %23 = arith.addf %22, %9 : vector<1x32xf32>
    %24 = arith.mulf %20, %10 : vector<1x32xf32>
    %25 = arith.addf %23, %24 : vector<1x32xf32>
    %26 = math.tanh %25 : vector<1x32xf32>
    %27 = arith.mulf %21, %26 : vector<1x32xf32>
    %28 = arith.subf %26, %27 : vector<1x32xf32>
    %29 = vector.shape_cast %28 : vector<1x32xf32> to vector<1x32xf32>
    %30 = vector.broadcast %29 : vector<1x32xf32> to vector<2x32xf32>
    %cst_12 = arith.constant dense<0.000000e+00> : vector<2x96xf32>
    %31 = tpu.matmul %30, %1, %cst_12 {dimension_numbers = #tpu.dot_dimension_numbers<[1], [0], [0], [1], [0, 0, 1, 1], [], []>, precision = #tpu.contract_precision<fp32>} : vector<2x32xf32>, vector<32x96xf32>, vector<2x96xf32> -> vector<2x96xf32>
    %32 = vector.extract_strided_slice %31 {offsets = [0, 0], sizes = [2, 64], strides = [1, 1]} : vector<2x96xf32> to vector<2x64xf32>
    %cst_13 = arith.constant 0.000000e+00 : f32
    %33 = vector.broadcast %cst_13 : f32 to vector<2x64xf32>
    %34 = arith.addf %33, %32 : vector<2x64xf32>
    %35 = vector.broadcast %8 : vector<1x64xf32> to vector<2x64xf32>
    %36 = arith.addf %34, %35 : vector<2x64xf32>
    %cst_14 = arith.constant 5.000000e-01 : f32
    %37 = vector.broadcast %cst_14 : f32 to vector<2x64xf32>
    %38 = arith.mulf %37, %36 : vector<2x64xf32>
    %39 = math.tanh %38 : vector<2x64xf32>
    %cst_15 = arith.constant 5.000000e-01 : f32
    %40 = vector.broadcast %cst_15 : f32 to vector<2x64xf32>
    %41 = arith.mulf %40, %39 : vector<2x64xf32>
    %cst_16 = arith.constant 5.000000e-01 : f32
    %42 = vector.broadcast %cst_16 : f32 to vector<2x64xf32>
    %43 = arith.addf %41, %42 : vector<2x64xf32>
    %44 = vector.extract_strided_slice %43 {offsets = [0, 0], sizes = [2, 32], strides = [1, 1]} : vector<2x64xf32> to vector<2x32xf32>
    %45 = vector.extract_strided_slice %43 {offsets = [0, 32], sizes = [2, 32], strides = [1, 1]} : vector<2x64xf32> to vector<2x32xf32>
    %cst_17 = arith.constant 0.000000e+00 : f32
    %46 = vector.broadcast %cst_17 : f32 to vector<1x32xf32>
    %47 = arith.addf %46, %9 : vector<1x32xf32>
    %48 = vector.extract_strided_slice %31 {offsets = [0, 64], sizes = [2, 32], strides = [1, 1]} : vector<2x96xf32> to vector<2x32xf32>
    %49 = vector.broadcast %10 : vector<1x32xf32> to vector<2x32xf32>
    %50 = arith.addf %48, %49 : vector<2x32xf32>
    %51 = arith.mulf %44, %50 : vector<2x32xf32>
    %52 = vector.broadcast %47 : vector<1x32xf32> to vector<2x32xf32>
    %53 = arith.addf %52, %51 : vector<2x32xf32>
    %54 = math.tanh %53 : vector<2x32xf32>
    %55 = arith.subf %30, %54 : vector<2x32xf32>
    %56 = arith.mulf %45, %55 : vector<2x32xf32>
    %57 = arith.addf %54, %56 : vector<2x32xf32>
    %cst_18 = arith.constant dense<0.000000e+00> : vector<2x96xf32>
    %58 = tpu.matmul %57, %1, %cst_18 {dimension_numbers = #tpu.dot_dimension_numbers<[1], [0], [0], [1], [0, 0, 1, 1], [], []>, precision = #tpu.contract_precision<fp32>} : vector<2x32xf32>, vector<32x96xf32>, vector<2x96xf32> -> vector<2x96xf32>
    %59 = vector.extract_strided_slice %58 {offsets = [0, 0], sizes = [2, 64], strides = [1, 1]} : vector<2x96xf32> to vector<2x64xf32>
    %cst_19 = arith.constant 0.000000e+00 : f32
    %60 = vector.broadcast %cst_19 : f32 to vector<2x64xf32>
    %61 = arith.addf %60, %59 : vector<2x64xf32>
    %62 = vector.broadcast %8 : vector<1x64xf32> to vector<2x64xf32>
    %63 = arith.addf %61, %62 : vector<2x64xf32>
    %cst_20 = arith.constant 5.000000e-01 : f32
    %64 = vector.broadcast %cst_20 : f32 to vector<2x64xf32>
    %65 = arith.mulf %64, %63 : vector<2x64xf32>
    %66 = math.tanh %65 : vector<2x64xf32>
    %cst_21 = arith.constant 5.000000e-01 : f32
    %67 = vector.broadcast %cst_21 : f32 to vector<2x64xf32>
    %68 = arith.mulf %67, %66 : vector<2x64xf32>
    %cst_22 = arith.constant 5.000000e-01 : f32
    %69 = vector.broadcast %cst_22 : f32 to vector<2x64xf32>
    %70 = arith.addf %68, %69 : vector<2x64xf32>
    %71 = vector.extract_strided_slice %70 {offsets = [0, 0], sizes = [2, 32], strides = [1, 1]} : vector<2x64xf32> to vector<2x32xf32>
    %72 = vector.extract_strided_slice %70 {offsets = [0, 32], sizes = [2, 32], strides = [1, 1]} : vector<2x64xf32> to vector<2x32xf32>
    %cst_23 = arith.constant 0.000000e+00 : f32
    %73 = vector.broadcast %cst_23 : f32 to vector<1x32xf32>
    %74 = arith.addf %73, %9 : vector<1x32xf32>
    %75 = vector.extract_strided_slice %58 {offsets = [0, 64], sizes = [2, 32], strides = [1, 1]} : vector<2x96xf32> to vector<2x32xf32>
    %76 = vector.broadcast %10 : vector<1x32xf32> to vector<2x32xf32>
    %77 = arith.addf %75, %76 : vector<2x32xf32>
    %78 = arith.mulf %71, %77 : vector<2x32xf32>
    %79 = vector.broadcast %74 : vector<1x32xf32> to vector<2x32xf32>
    %80 = arith.addf %79, %78 : vector<2x32xf32>
    %81 = math.tanh %80 : vector<2x32xf32>
    %82 = arith.subf %57, %81 : vector<2x32xf32>
    %83 = arith.mulf %72, %82 : vector<2x32xf32>
    %84 = arith.addf %81, %83 : vector<2x32xf32>
    %cst_24 = arith.constant dense<0.000000e+00> : vector<2x96xf32>
    %85 = tpu.matmul %84, %1, %cst_24 {dimension_numbers = #tpu.dot_dimension_numbers<[1], [0], [0], [1], [0, 0, 1, 1], [], []>, precision = #tpu.contract_precision<fp32>} : vector<2x32xf32>, vector<32x96xf32>, vector<2x96xf32> -> vector<2x96xf32>
    %86 = vector.extract_strided_slice %85 {offsets = [0, 0], sizes = [2, 64], strides = [1, 1]} : vector<2x96xf32> to vector<2x64xf32>
    %cst_25 = arith.constant 0.000000e+00 : f32
    %87 = vector.broadcast %cst_25 : f32 to vector<2x64xf32>
    %88 = arith.addf %87, %86 : vector<2x64xf32>
    %89 = vector.broadcast %8 : vector<1x64xf32> to vector<2x64xf32>
    %90 = arith.addf %88, %89 : vector<2x64xf32>
    %cst_26 = arith.constant 5.000000e-01 : f32
    %91 = vector.broadcast %cst_26 : f32 to vector<2x64xf32>
    %92 = arith.mulf %91, %90 : vector<2x64xf32>
    %93 = math.tanh %92 : vector<2x64xf32>
    %cst_27 = arith.constant 5.000000e-01 : f32
    %94 = vector.broadcast %cst_27 : f32 to vector<2x64xf32>
    %95 = arith.mulf %94, %93 : vector<2x64xf32>
    %cst_28 = arith.constant 5.000000e-01 : f32
    %96 = vector.broadcast %cst_28 : f32 to vector<2x64xf32>
    %97 = arith.addf %95, %96 : vector<2x64xf32>
    %98 = vector.extract_strided_slice %97 {offsets = [0, 0], sizes = [2, 32], strides = [1, 1]} : vector<2x64xf32> to vector<2x32xf32>
    %99 = vector.extract_strided_slice %97 {offsets = [0, 32], sizes = [2, 32], strides = [1, 1]} : vector<2x64xf32> to vector<2x32xf32>
    %cst_29 = arith.constant 0.000000e+00 : f32
    %100 = vector.broadcast %cst_29 : f32 to vector<1x32xf32>
    %101 = arith.addf %100, %9 : vector<1x32xf32>
    %102 = vector.extract_strided_slice %85 {offsets = [0, 64], sizes = [2, 32], strides = [1, 1]} : vector<2x96xf32> to vector<2x32xf32>
    %103 = vector.broadcast %10 : vector<1x32xf32> to vector<2x32xf32>
    %104 = arith.addf %102, %103 : vector<2x32xf32>
    %105 = arith.mulf %98, %104 : vector<2x32xf32>
    %106 = vector.broadcast %101 : vector<1x32xf32> to vector<2x32xf32>
    %107 = arith.addf %106, %105 : vector<2x32xf32>
    %108 = math.tanh %107 : vector<2x32xf32>
    %109 = arith.subf %84, %108 : vector<2x32xf32>
    %110 = arith.mulf %99, %109 : vector<2x32xf32>
    %111 = arith.addf %108, %110 : vector<2x32xf32>
    %c0_30 = arith.constant 0 : index
    %c0_31 = arith.constant 0 : index
    %c0_32 = arith.constant 0 : index
    %112 = vector.load %arg7[%c0_30, %c0_31, %c0_32] : memref<2x2x32xf32, #tpu.memory_space<vmem>>, vector<1x2x32xf32>
    %113 = vector.shape_cast %112 : vector<1x2x32xf32> to vector<2x32xf32>
    %114 = vector.shape_cast %111 : vector<2x32xf32> to vector<1x2x32xf32>
    tpu.vector_store %arg7[%c0_30, %c0_31, %c0_32], %114 {strides = array<i32>} : memref<2x2x32xf32, #tpu.memory_space<vmem>>, vector<1x2x32xf32>,
    %c1 = arith.constant 1 : index
    %c0_33 = arith.constant 0 : index
    %c0_34 = arith.constant 0 : index
    %115 = vector.load %arg1[%c1, %c0_33, %c0_34] : memref<2x32x96xf32, #tpu.memory_space<vmem>>, vector<1x32x96xf32>
    %116 = vector.shape_cast %115 : vector<1x32x96xf32> to vector<32x96xf32>
    %c1_35 = arith.constant 1 : index
    %c0_36 = arith.constant 0 : index
    %c0_37 = arith.constant 0 : index
    %117 = vector.load %arg2[%c1_35, %c0_36, %c0_37] : memref<2x1x96xf32, #tpu.memory_space<vmem>>, vector<1x1x96xf32>
    %118 = vector.shape_cast %117 : vector<1x1x96xf32> to vector<1x96xf32>
    %c1_38 = arith.constant 1 : index
    %c0_39 = arith.constant 0 : index
    %c0_40 = arith.constant 0 : index
    %119 = vector.load %arg3[%c1_38, %c0_39, %c0_40] : memref<2x1x96xf32, #tpu.memory_space<vmem>>, vector<1x1x96xf32>
    %120 = vector.shape_cast %119 : vector<1x1x96xf32> to vector<1x96xf32>
    %121 = vector.extract_strided_slice %118 {offsets = [0, 0], sizes = [1, 64], strides = [1, 1]} : vector<1x96xf32> to vector<1x64xf32>
    %122 = vector.extract_strided_slice %120 {offsets = [0, 0], sizes = [1, 64], strides = [1, 1]} : vector<1x96xf32> to vector<1x64xf32>
    %123 = arith.addf %121, %122 : vector<1x64xf32>
    %124 = vector.extract_strided_slice %118 {offsets = [0, 64], sizes = [1, 32], strides = [1, 1]} : vector<1x96xf32> to vector<1x32xf32>
    %125 = vector.extract_strided_slice %120 {offsets = [0, 64], sizes = [1, 32], strides = [1, 1]} : vector<1x96xf32> to vector<1x32xf32>
    %126 = tpu.concatenate %30, %57, %84, %111 in 0 : vector<2x32xf32>, vector<2x32xf32>, vector<2x32xf32>, vector<2x32xf32> -> vector<8x32xf32>
    %c0_41 = arith.constant 0 : index
    %c0_42 = arith.constant 0 : index
    %c0_43 = arith.constant 0 : index
    %127 = vector.load %arg0[%c0_41, %c0_42, %c0_43] : memref<1x32x96xf32, #tpu.memory_space<vmem>>, vector<1x32x96xf32>
    %128 = vector.shape_cast %127 : vector<1x32x96xf32> to vector<32x96xf32>
    %cst_44 = arith.constant dense<0.000000e+00> : vector<8x96xf32>
    %129 = tpu.matmul %126, %128, %cst_44 {dimension_numbers = #tpu.dot_dimension_numbers<[1], [0], [0], [1], [0, 0, 1, 1], [], []>, precision = #tpu.contract_precision<fp32>} : vector<8x32xf32>, vector<32x96xf32>, vector<8x96xf32> -> vector<8x96xf32>
    %130 = vector.extract_strided_slice %129 {offsets = [0, 0], sizes = [2, 96], strides = [1, 1]} : vector<8x96xf32> to vector<2x96xf32>
    %131 = vector.extract_strided_slice %130 {offsets = [0, 0], sizes = [2, 64], strides = [1, 1]} : vector<2x96xf32> to vector<2x64xf32>
    %132 = vector.extract_strided_slice %130 {offsets = [0, 64], sizes = [2, 32], strides = [1, 1]} : vector<2x96xf32> to vector<2x32xf32>
    %133 = vector.broadcast %123 : vector<1x64xf32> to vector<2x64xf32>
    %134 = arith.addf %131, %133 : vector<2x64xf32>
    %cst_45 = arith.constant 5.000000e-01 : f32
    %135 = vector.broadcast %cst_45 : f32 to vector<2x64xf32>
    %136 = arith.mulf %135, %134 : vector<2x64xf32>
    %137 = math.tanh %136 : vector<2x64xf32>
    %cst_46 = arith.constant 5.000000e-01 : f32
    %138 = vector.broadcast %cst_46 : f32 to vector<2x64xf32>
    %139 = arith.mulf %138, %137 : vector<2x64xf32>
    %cst_47 = arith.constant 5.000000e-01 : f32
    %140 = vector.broadcast %cst_47 : f32 to vector<2x64xf32>
    %141 = arith.addf %139, %140 : vector<2x64xf32>
    %142 = vector.extract_strided_slice %141 {offsets = [0, 0], sizes = [2, 32], strides = [1, 1]} : vector<2x64xf32> to vector<2x32xf32>
    %143 = vector.extract_strided_slice %141 {offsets = [0, 32], sizes = [2, 32], strides = [1, 1]} : vector<2x64xf32> to vector<2x32xf32>
    %144 = vector.broadcast %124 : vector<1x32xf32> to vector<2x32xf32>
    %145 = arith.addf %132, %144 : vector<2x32xf32>
    %146 = vector.broadcast %125 : vector<1x32xf32> to vector<2x32xf32>
    %147 = arith.mulf %142, %146 : vector<2x32xf32>
    %148 = arith.addf %145, %147 : vector<2x32xf32>
    %149 = math.tanh %148 : vector<2x32xf32>
    %150 = arith.mulf %143, %149 : vector<2x32xf32>
    %151 = arith.subf %149, %150 : vector<2x32xf32>
    %152 = vector.extract_strided_slice %129 {offsets = [2, 0], sizes = [2, 96], strides = [1, 1]} : vector<8x96xf32> to vector<2x96xf32>
    %153 = vector.extract_strided_slice %152 {offsets = [0, 0], sizes = [2, 64], strides = [1, 1]} : vector<2x96xf32> to vector<2x64xf32>
    %154 = vector.extract_strided_slice %152 {offsets = [0, 64], sizes = [2, 32], strides = [1, 1]} : vector<2x96xf32> to vector<2x32xf32>
    %cst_48 = arith.constant dense<0.000000e+00> : vector<2x96xf32>
    %155 = tpu.matmul %151, %116, %cst_48 {dimension_numbers = #tpu.dot_dimension_numbers<[1], [0], [0], [1], [0, 0, 1, 1], [], []>, precision = #tpu.contract_precision<fp32>} : vector<2x32xf32>, vector<32x96xf32>, vector<2x96xf32> -> vector<2x96xf32>
    %156 = vector.extract_strided_slice %155 {offsets = [0, 0], sizes = [2, 64], strides = [1, 1]} : vector<2x96xf32> to vector<2x64xf32>
    %157 = arith.addf %153, %156 : vector<2x64xf32>
    %158 = vector.broadcast %123 : vector<1x64xf32> to vector<2x64xf32>
    %159 = arith.addf %157, %158 : vector<2x64xf32>
    %cst_49 = arith.constant 5.000000e-01 : f32
    %160 = vector.broadcast %cst_49 : f32 to vector<2x64xf32>
    %161 = arith.mulf %160, %159 : vector<2x64xf32>
    %162 = math.tanh %161 : vector<2x64xf32>
    %cst_50 = arith.constant 5.000000e-01 : f32
    %163 = vector.broadcast %cst_50 : f32 to vector<2x64xf32>
    %164 = arith.mulf %163, %162 : vector<2x64xf32>
    %cst_51 = arith.constant 5.000000e-01 : f32
    %165 = vector.broadcast %cst_51 : f32 to vector<2x64xf32>
    %166 = arith.addf %164, %165 : vector<2x64xf32>
    %167 = vector.extract_strided_slice %166 {offsets = [0, 0], sizes = [2, 32], strides = [1, 1]} : vector<2x64xf32> to vector<2x32xf32>
    %168 = vector.extract_strided_slice %166 {offsets = [0, 32], sizes = [2, 32], strides = [1, 1]} : vector<2x64xf32> to vector<2x32xf32>
    %169 = vector.broadcast %124 : vector<1x32xf32> to vector<2x32xf32>
    %170 = arith.addf %154, %169 : vector<2x32xf32>
    %171 = vector.extract_strided_slice %155 {offsets = [0, 64], sizes = [2, 32], strides = [1, 1]} : vector<2x96xf32> to vector<2x32xf32>
    %172 = vector.broadcast %125 : vector<1x32xf32> to vector<2x32xf32>
    %173 = arith.addf %171, %172 : vector<2x32xf32>
    %174 = arith.mulf %167, %173 : vector<2x32xf32>
    %175 = arith.addf %170, %174 : vector<2x32xf32>
    %176 = math.tanh %175 : vector<2x32xf32>
    %177 = arith.subf %151, %176 : vector<2x32xf32>
    %178 = arith.mulf %168, %177 : vector<2x32xf32>
    %179 = arith.addf %176, %178 : vector<2x32xf32>
    %180 = vector.extract_strided_slice %129 {offsets = [4, 0], sizes = [2, 96], strides = [1, 1]} : vector<8x96xf32> to vector<2x96xf32>
    %181 = vector.extract_strided_slice %180 {offsets = [0, 0], sizes = [2, 64], strides = [1, 1]} : vector<2x96xf32> to vector<2x64xf32>
    %182 = vector.extract_strided_slice %180 {offsets = [0, 64], sizes = [2, 32], strides = [1, 1]} : vector<2x96xf32> to vector<2x32xf32>
    %cst_52 = arith.constant dense<0.000000e+00> : vector<2x96xf32>
    %183 = tpu.matmul %179, %116, %cst_52 {dimension_numbers = #tpu.dot_dimension_numbers<[1], [0], [0], [1], [0, 0, 1, 1], [], []>, precision = #tpu.contract_precision<fp32>} : vector<2x32xf32>, vector<32x96xf32>, vector<2x96xf32> -> vector<2x96xf32>
    %184 = vector.extract_strided_slice %183 {offsets = [0, 0], sizes = [2, 64], strides = [1, 1]} : vector<2x96xf32> to vector<2x64xf32>
    %185 = arith.addf %181, %184 : vector<2x64xf32>
    %186 = vector.broadcast %123 : vector<1x64xf32> to vector<2x64xf32>
    %187 = arith.addf %185, %186 : vector<2x64xf32>
    %cst_53 = arith.constant 5.000000e-01 : f32
    %188 = vector.broadcast %cst_53 : f32 to vector<2x64xf32>
    %189 = arith.mulf %188, %187 : vector<2x64xf32>
    %190 = math.tanh %189 : vector<2x64xf32>
    %cst_54 = arith.constant 5.000000e-01 : f32
    %191 = vector.broadcast %cst_54 : f32 to vector<2x64xf32>
    %192 = arith.mulf %191, %190 : vector<2x64xf32>
    %cst_55 = arith.constant 5.000000e-01 : f32
    %193 = vector.broadcast %cst_55 : f32 to vector<2x64xf32>
    %194 = arith.addf %192, %193 : vector<2x64xf32>
    %195 = vector.extract_strided_slice %194 {offsets = [0, 0], sizes = [2, 32], strides = [1, 1]} : vector<2x64xf32> to vector<2x32xf32>
    %196 = vector.extract_strided_slice %194 {offsets = [0, 32], sizes = [2, 32], strides = [1, 1]} : vector<2x64xf32> to vector<2x32xf32>
    %197 = vector.broadcast %124 : vector<1x32xf32> to vector<2x32xf32>
    %198 = arith.addf %182, %197 : vector<2x32xf32>
    %199 = vector.extract_strided_slice %183 {offsets = [0, 64], sizes = [2, 32], strides = [1, 1]} : vector<2x96xf32> to vector<2x32xf32>
    %200 = vector.broadcast %125 : vector<1x32xf32> to vector<2x32xf32>
    %201 = arith.addf %199, %200 : vector<2x32xf32>
    %202 = arith.mulf %195, %201 : vector<2x32xf32>
    %203 = arith.addf %198, %202 : vector<2x32xf32>
    %204 = math.tanh %203 : vector<2x32xf32>
    %205 = arith.subf %179, %204 : vector<2x32xf32>
    %206 = arith.mulf %196, %205 : vector<2x32xf32>
    %207 = arith.addf %204, %206 : vector<2x32xf32>
    %208 = vector.extract_strided_slice %129 {offsets = [6, 0], sizes = [2, 96], strides = [1, 1]} : vector<8x96xf32> to vector<2x96xf32>
    %209 = vector.extract_strided_slice %208 {offsets = [0, 0], sizes = [2, 64], strides = [1, 1]} : vector<2x96xf32> to vector<2x64xf32>
    %210 = vector.extract_strided_slice %208 {offsets = [0, 64], sizes = [2, 32], strides = [1, 1]} : vector<2x96xf32> to vector<2x32xf32>
    %cst_56 = arith.constant dense<0.000000e+00> : vector<2x96xf32>
    %211 = tpu.matmul %207, %116, %cst_56 {dimension_numbers = #tpu.dot_dimension_numbers<[1], [0], [0], [1], [0, 0, 1, 1], [], []>, precision = #tpu.contract_precision<fp32>} : vector<2x32xf32>, vector<32x96xf32>, vector<2x96xf32> -> vector<2x96xf32>
    %212 = vector.extract_strided_slice %211 {offsets = [0, 0], sizes = [2, 64], strides = [1, 1]} : vector<2x96xf32> to vector<2x64xf32>
    %213 = arith.addf %209, %212 : vector<2x64xf32>
    %214 = vector.broadcast %123 : vector<1x64xf32> to vector<2x64xf32>
    %215 = arith.addf %213, %214 : vector<2x64xf32>
    %cst_57 = arith.constant 5.000000e-01 : f32
    %216 = vector.broadcast %cst_57 : f32 to vector<2x64xf32>
    %217 = arith.mulf %216, %215 : vector<2x64xf32>
    %218 = math.tanh %217 : vector<2x64xf32>
    %cst_58 = arith.constant 5.000000e-01 : f32
    %219 = vector.broadcast %cst_58 : f32 to vector<2x64xf32>
    %220 = arith.mulf %219, %218 : vector<2x64xf32>
    %cst_59 = arith.constant 5.000000e-01 : f32
    %221 = vector.broadcast %cst_59 : f32 to vector<2x64xf32>
    %222 = arith.addf %220, %221 : vector<2x64xf32>
    %223 = vector.extract_strided_slice %222 {offsets = [0, 0], sizes = [2, 32], strides = [1, 1]} : vector<2x64xf32> to vector<2x32xf32>
    %224 = vector.extract_strided_slice %222 {offsets = [0, 32], sizes = [2, 32], strides = [1, 1]} : vector<2x64xf32> to vector<2x32xf32>
    %225 = vector.broadcast %124 : vector<1x32xf32> to vector<2x32xf32>
    %226 = arith.addf %210, %225 : vector<2x32xf32>
    %227 = vector.extract_strided_slice %211 {offsets = [0, 64], sizes = [2, 32], strides = [1, 1]} : vector<2x96xf32> to vector<2x32xf32>
    %228 = vector.broadcast %125 : vector<1x32xf32> to vector<2x32xf32>
    %229 = arith.addf %227, %228 : vector<2x32xf32>
    %230 = arith.mulf %223, %229 : vector<2x32xf32>
    %231 = arith.addf %226, %230 : vector<2x32xf32>
    %232 = math.tanh %231 : vector<2x32xf32>
    %233 = arith.subf %207, %232 : vector<2x32xf32>
    %234 = arith.mulf %224, %233 : vector<2x32xf32>
    %235 = arith.addf %232, %234 : vector<2x32xf32>
    %c1_60 = arith.constant 1 : index
    %c0_61 = arith.constant 0 : index
    %c0_62 = arith.constant 0 : index
    %236 = vector.load %arg7[%c1_60, %c0_61, %c0_62] : memref<2x2x32xf32, #tpu.memory_space<vmem>>, vector<1x2x32xf32>
    %237 = vector.shape_cast %236 : vector<1x2x32xf32> to vector<2x32xf32>
    %238 = vector.shape_cast %235 : vector<2x32xf32> to vector<1x2x32xf32>
    tpu.vector_store %arg7[%c1_60, %c0_61, %c0_62], %238 {strides = array<i32>} : memref<2x2x32xf32, #tpu.memory_space<vmem>>, vector<1x2x32xf32>,
    %239 = vector.extract_strided_slice %151 {offsets = [0, 0], sizes = [1, 32], strides = [1, 1]} : vector<2x32xf32> to vector<1x32xf32>
    %240 = vector.extract_strided_slice %179 {offsets = [0, 0], sizes = [1, 32], strides = [1, 1]} : vector<2x32xf32> to vector<1x32xf32>
    %241 = vector.extract_strided_slice %207 {offsets = [0, 0], sizes = [1, 32], strides = [1, 1]} : vector<2x32xf32> to vector<1x32xf32>
    %242 = vector.extract_strided_slice %235 {offsets = [0, 0], sizes = [1, 32], strides = [1, 1]} : vector<2x32xf32> to vector<1x32xf32>
    %243 = vector.extract_strided_slice %151 {offsets = [1, 0], sizes = [1, 32], strides = [1, 1]} : vector<2x32xf32> to vector<1x32xf32>
    %244 = vector.extract_strided_slice %179 {offsets = [1, 0], sizes = [1, 32], strides = [1, 1]} : vector<2x32xf32> to vector<1x32xf32>
    %245 = vector.extract_strided_slice %207 {offsets = [1, 0], sizes = [1, 32], strides = [1, 1]} : vector<2x32xf32> to vector<1x32xf32>
    %246 = vector.extract_strided_slice %235 {offsets = [1, 0], sizes = [1, 32], strides = [1, 1]} : vector<2x32xf32> to vector<1x32xf32>
    %247 = tpu.concatenate %239, %240, %241, %242, %243, %244, %245, %246 in 0 : vector<1x32xf32>, vector<1x32xf32>, vector<1x32xf32>, vector<1x32xf32>, vector<1x32xf32>, vector<1x32xf32>, vector<1x32xf32>, vector<1x32xf32> -> vector<8x32xf32>
    %c0_63 = arith.constant 0 : index
    %c0_64 = arith.constant 0 : index
    %248 = vector.load %arg4[%c0_63, %c0_64] : memref<32x16xf32, #tpu.memory_space<vmem>>, vector<32x16xf32>
    %cst_65 = arith.constant dense<0.000000e+00> : vector<8x16xf32>
    %249 = tpu.matmul %247, %248, %cst_65 {dimension_numbers = #tpu.dot_dimension_numbers<[1], [0], [0], [1], [0, 0, 1, 1], [], []>, precision = #tpu.contract_precision<fp32>} : vector<8x32xf32>, vector<32x16xf32>, vector<8x16xf32> -> vector<8x16xf32>
    %c0_66 = arith.constant 0 : index
    %c0_67 = arith.constant 0 : index
    %250 = vector.load %arg5[%c0_66, %c0_67] : memref<1x16xf32, #tpu.memory_space<vmem>>, vector<1x16xf32>
    %251 = vector.broadcast %250 : vector<1x16xf32> to vector<8x16xf32>
    %252 = arith.addf %249, %251 : vector<8x16xf32>
    %253 = arith.negf %252 : vector<8x16xf32>
    %254 = math.exp %253 : vector<8x16xf32>
    %cst_68 = arith.constant 1.000000e+00 : f32
    %255 = vector.broadcast %cst_68 : f32 to vector<8x16xf32>
    %256 = arith.addf %255, %254 : vector<8x16xf32>
    %257 = arith.divf %255, %256 : vector<8x16xf32>
    %c0_69 = arith.constant 0 : index
    %c0_70 = arith.constant 0 : index
    %258 = vector.load %arg6[%c0_69, %c0_70] : memref<8x16xf32, #tpu.memory_space<vmem>>, vector<8x16xf32>
    tpu.vector_store %arg6[%c0_69, %c0_70], %257 {strides = array<i32>} : memref<8x16xf32, #tpu.memory_space<vmem>>, vector<8x16xf32>,
    return
  }
}

</mosaic_0001>

<llo_original>
// kernel: tpu_custom_call.1
$region0: #{tpu_custom_call.1}
  #allocation0 [shape = 'u32[]', space=smem, size = 0x4, offset = 0x4, fixed_abs, tag = 'smem constant byte address 0x4 - core index']
  #allocation1 [shape = 'u32[144,128]{1,0:T(1,128)}', space=vmem, size = 0x12000, scoped, tag = 'internal scratch']
  %s0 = inlined_call_operand.vmem [shape: f32[1,32,96], index: 0, kind: input, shape index: {}]
  %s1 = inlined_call_operand.hbm [shape: f32[2,32,96], index: 1, kind: input, shape index: {}]
  %s2 = inlined_call_operand.vmem [shape: f32[2,1,96], index: 2, kind: input, shape index: {}]
  %s3 = inlined_call_operand.vmem [shape: f32[2,1,96], index: 3, kind: input, shape index: {}]
  %s4 = inlined_call_operand.vmem [shape: f32[32,16], index: 4, kind: input, shape index: {}]
  %s5 = inlined_call_operand.vmem [shape: f32[1,16], index: 5, kind: input, shape index: {}]
  %s6 = inlined_call_operand.hbm [shape: f32[8,16], index: 6, kind: output, shape index: {0}]
  %s7 = inlined_call_operand.hbm [shape: f32[2,2,32], index: 7, kind: output, shape index: {1}]
  %8 = xla_tuple %s6, %s7
  %s9 = sld [smem:[#allocation0]]
  $region46: #{tpu_custom_call.1} parent=0
    _
  %s11 = ssub.s32 1, %s9
  %s12 = scalar_select 0, %s11, %s9
  $region1: #{tpu_custom_call.1} parent=0
    #allocation2 [shape = 'u8[32768]{0}', space=vmem, size = 0x8000, scoped, tag = 'input window, operand 1, single buffered']
    #allocation3 [shape = 's32[1]{0}', space=sflag, size = 0x4, scoped, tag = 'scoped memory for tpu_custom_call.1']
    #allocation4 [shape = 's32[1]{0}', space=sflag, size = 0x4, scoped, tag = 'scoped memory for tpu_custom_call.1']
    #allocation5 [shape = 'u8[4096]{0}', space=vmem, size = 0x1000, scoped, tag = 'output window, operand 0, single buffered']
    #allocation6 [shape = 'u8[2048]{0}', space=vmem, size = 0x800, scoped, tag = 'output window, operand 1, single buffered']
    #allocation7 [shape = 's32[1]{0}', space=sflag, size = 0x4, scoped, tag = 'scoped memory for tpu_custom_call.1']
    %13 = vsyncpa [#allocation3], 0
    %14 = vsyncpa [#allocation4], 0
    %15 = vsyncpa [#allocation7], 0
    // Predicated region
    $region2: #{tpu_custom_call.1} parent=1 // pred_check
      _
    $region3: #{tpu_custom_call.1} parent=1 // pred_check_branch
      %17 = sbr.rel (0) target = $region5
    $region4: #{tpu_custom_call.1} parent=1 // pred_region
      _
    $region5: #{tpu_custom_call.1} parent=1 // pred_fallthru
      _
    // Predicated region
    $region6: #{tpu_custom_call.1} parent=1 // pred_check
      _
    $region7: #{tpu_custom_call.1} parent=1 // pred_check_branch
      %19 = sbr.rel (0) target = $region9
    $region8: #{tpu_custom_call.1} parent=1 // pred_region
      %s21 = ssub.s32 1024, 1024
      %22 = vsyncadd [#allocation3], %s21
      %s23 = sshll.u32 [#allocation2], 4
      %s24 = int_to_ptr.vmem [resolvable:$true] %s23
      %29 = dma.hbm_to_vmem [thread:$0]  %s1, 1024, %s24, [#allocation3], 128, 128, 8
    $region9: #{tpu_custom_call.1} parent=1 // pred_fallthru
      _
    // Predicated region
    $region10: #{tpu_custom_call.1} parent=1 // pred_check
      _
    $region11: #{tpu_custom_call.1} parent=1 // pred_check_branch
      %31 = sbr.rel (0) target = $region13
    $region12: #{tpu_custom_call.1} parent=1 // pred_region
      _
    $region13: #{tpu_custom_call.1} parent=1 // pred_fallthru
      _
    // Predicated region
    $region14: #{tpu_custom_call.1} parent=1 // pred_check
      _
    $region15: #{tpu_custom_call.1} parent=1 // pred_check_branch
      %33 = sbr.rel (0) target = $region17
    $region16: #{tpu_custom_call.1} parent=1 // pred_region
      _
    $region17: #{tpu_custom_call.1} parent=1 // pred_fallthru
      _
    // Predicated region
    $region18: #{tpu_custom_call.1} parent=1 // pred_check
      _
    $region19: #{tpu_custom_call.1} parent=1 // pred_check_branch
      %35 = sbr.rel (0) target = $region21
    $region20: #{tpu_custom_call.1} parent=1 // pred_region
      _
    $region21: #{tpu_custom_call.1} parent=1 // pred_fallthru
      _
    // Predicated region
    $region22: #{tpu_custom_call.1} parent=1 // pred_check
      _
    $region23: #{tpu_custom_call.1} parent=1 // pred_check_branch
      %37 = sbr.rel (0) target = $region25
    $region24: #{tpu_custom_call.1} parent=1 // pred_region
      _
    $region25: #{tpu_custom_call.1} parent=1 // pred_fallthru
      _
    // Predicated region
    $region26: #{tpu_custom_call.1} parent=1 // pred_check
      _
    $region27: #{tpu_custom_call.1} parent=1 // pred_check_branch
      %39 = sbr.rel (0) target = $region29
    $region28: #{tpu_custom_call.1} parent=1 // pred_region
      %40 = dma.done [#allocation3], 1024
    $region29: #{tpu_custom_call.1} parent=1 // pred_fallthru
      _
    %v41 = vld [vmem:[#allocation2] sm:$0xff]
    %v42 = vld [vmem:[#allocation2 + $0x8] sm:$0xff]
    %v43 = vld [vmem:[#allocation2 + $0x10] sm:$0xff]
    %v44 = vld [vmem:[#allocation2 + $0x18] sm:$0xff]
    %v45 = vld [vmem:[%s2] sm:$0x1]
    %v46 = vld [vmem:[%s3] sm:$0x1]
    %v47 = vadd.f32 %v45, %v46
    %v48 = vadd.f32 %v47, 0.0
    %v49 = vmul.f32 %v48, 0.5
    %v50 = vtanh.pop %v49
    %v51 = vmul.f32 %v50, 0.5
    %v52 = vadd.f32 %v51, 0.5
    %v53 = vadd.f32 %v45, 0.0
    %55 = vrot.lane.b32.xlu0 %v46, 64
    %v56 = vpop.permute.xlu0 %55
    %v58 = vmul.f32 %v52, %v56
    %60 = vrot.lane.b32.xlu0 %v58, 64
    %v61 = vpop.permute.xlu0 %60
    %v63 = vadd.f32 %v53, %v61
    %v64 = vtanh.pop %v63
    %66 = vrot.lane.b32.xlu0 %v64, 96
    %v67 = vpop.permute.xlu0 %66
    %v69 = vmul.f32 %v52, %v67
    %71 = vrot.lane.b32.xlu0 %v69, 32
    %v72 = vpop.permute.xlu0 %71
    %v74 = vsub.f32 %v64, %v72
    %v76 = vlaneseq
    %v77 = vshrl.u32 %v76, 7
    %v78 = vsub.s32 0, %v77
    %v79 = vrot.slane %v74, %v78
    %81 = vrot.lane.b32.xlu0 %v79, 64
    %v82 = vpop.permute.xlu0 %81
    %vm83 = vcmask 261120
    %v84 = vsel %vm83, %v82, 0
    %86 = vmatprep.subr.mxu0 0.0
    %v87 = vand.u32 %v41, 4294901760
    %88 = vmatpush1.msra.mxu0 %v87
    %89 = vmatprep.subr.mxu0 0.0
    %v90 = vand.u32 %v42, 4294901760
    %91 = vmatpush1.msra.mxu0 %v90
    %92 = vmatprep.subr.mxu0 0.0
    %v93 = vand.u32 %v43, 4294901760
    %94 = vmatpush1.msra.mxu0 %v93
    %95 = vmatprep.subr.mxu0 0.0
    %v96 = vand.u32 %v44, 4294901760
    %97 = vmatpush1.msra.mxu0 %v96
    %98 = vmatprep.subr.mxu0 0.0
    %99 = vmatpush1.msra.mxu0 0.0
    %100 = vmatprep.subr.mxu0 0.0
    %101 = vmatpush1.msra.mxu0 0.0
    %102 = vmatprep.subr.mxu0 0.0
    %103 = vmatpush1.msra.mxu0 0.0
    %104 = vmatprep.subr.mxu0 0.0
    %105 = vmatpush1.msra.mxu0 0.0
    %106 = vmatprep.subr.mxu0 0.0
    %107 = vmatpush1.msra.mxu0 0.0
    %108 = vmatprep.subr.mxu0 0.0
    %109 = vmatpush1.msra.mxu0 0.0
    %110 = vmatprep.subr.mxu0 0.0
    %111 = vmatpush1.msra.mxu0 0.0
    %112 = vmatprep.subr.mxu0 0.0
    %113 = vmatpush1.msra.mxu0 0.0
    %114 = vmatprep.subr.mxu0 0.0
    %115 = vmatpush1.msra.mxu0 0.0
    %116 = vmatprep.subr.mxu0 0.0
    %117 = vmatpush1.msra.mxu0 0.0
    %118 = vmatprep.subr.mxu0 0.0
    %119 = vmatpush1.msra.mxu0 0.0
    %120 = vmatprep.subr.mxu0 0.0
    %121 = vmatpush1.msra.mxu0 0.0
    %122 = vmatprep.subr.mxu0 0.0
    %123 = vmatpush1.msra.mxu0 0.0
    %124 = vmatprep.subr.mxu0 0.0
    %125 = vmatpush1.msra.mxu0 0.0
    %126 = vmatprep.subr.mxu0 0.0
    %127 = vmatpush1.msra.mxu0 0.0
    %128 = vmatprep.subr.mxu0 0.0
    %129 = vmatpush1.msra.mxu0 0.0
    %130 = vmatprep.subr.mxu0 0.0
    %131 = vmatpush1.msra.mxu0 0.0
    %132 = vmatprep.subr.mxu0 0.0
    %133 = vmatpush1.msra.mxu0 0.0
    %134 = vmatprep.subr.mxu0 0.0
    %135 = vmatpush1.msra.mxu0 0.0
    %136 = vmatprep.subr.mxu0 0.0
    %137 = vmatpush1.msra.mxu0 0.0
    %138 = vmatprep.subr.mxu0 0.0
    %139 = vmatpush1.msra.mxu0 0.0
    %140 = vmatprep.subr.mxu0 0.0
    %141 = vmatpush1.msra.mxu0 0.0
    %142 = vmatprep.subr.mxu0 0.0
    %143 = vmatpush1.msra.mxu0 0.0
    %144 = vmatprep.subr.mxu0 0.0
    %145 = vmatpush1.msra.mxu0 0.0
    %146 = vmatprep.subr.mxu0 0.0
    %147 = vmatpush1.msra.mxu0 0.0
    %148 = vmatprep.subr.mxu0 0.0
    %149 = vmatpush1.msra.mxu0 0.0
    %150 = vmatprep.subr.mxu0 0.0
    %151 = vmatpush1.msra.mxu0 0.0
    %152 = vmatprep.subr.mxu0 0.0
    %153 = vmatpush1.msra.mxu0 0.0
    %154 = vmatprep.mubr.f32.mxu0 0.0
    %v155 = vand.u32 %v84, 4294901760
    %v156 = vsub.f32 %v84, %v155
    %v157 = vand.u32 %v156, 4294901760
    %v158 = vsub.f32 %v156, %v157
    %v159 = vand.u32 %v158, 4294901760
    %160 = vmatmul.mubr.f32.gmra.mrb[0].mxu0 %v159
    %v161 = vpop.f32.mrb[0].mxu0
    %v162 = vadd.f32 0.0, %v161
    %v163 = vpop.f32.mrb[0].mxu0
    %164 = vdwg.mxu0
    %165 = vmatprep.subr.mxu0 0.0
    %v166 = vand.u32 %v41, 4294901760
    %v167 = vsub.f32 %v41, %v166
    %v168 = vand.u32 %v167, 4294901760
    %v169 = vsub.f32 %v167, %v168
    %v170 = vand.u32 %v169, 4294901760
    %171 = vmatpush1.msra.mxu0 %v170
    %172 = vmatprep.subr.mxu0 0.0
    %v173 = vand.u32 %v42, 4294901760
    %v174 = vsub.f32 %v42, %v173
    %v175 = vand.u32 %v174, 4294901760
    %v176 = vsub.f32 %v174, %v175
    %v177 = vand.u32 %v176, 4294901760
    %178 = vmatpush1.msra.mxu0 %v177
    %179 = vmatprep.subr.mxu0 0.0
    %v180 = vand.u32 %v43, 4294901760
    %v181 = vsub.f32 %v43, %v180
    %v182 = vand.u32 %v181, 4294901760
    %v183 = vsub.f32 %v181, %v182
    %v184 = vand.u32 %v183, 4294901760
    %185 = vmatpush1.msra.mxu0 %v184
    %186 = vmatprep.subr.mxu0 0.0
    %v187 = vand.u32 %v44, 4294901760
    %v188 = vsub.f32 %v44, %v187
    %v189 = vand.u32 %v188, 4294901760
    %v190 = vsub.f32 %v188, %v189
    %v191 = vand.u32 %v190, 4294901760
    %192 = vmatpush1.msra.mxu0 %v191
    %193 = vmatprep.subr.mxu0 0.0
    %194 = vmatpush1.msra.mxu0 0.0
    %195 = vmatprep.subr.mxu0 0.0
    %196 = vmatpush1.msra.mxu0 0.0
    %197 = vmatprep.subr.mxu0 0.0
    %198 = vmatpush1.msra.mxu0 0.0
    %199 = vmatprep.subr.mxu0 0.0
    %200 = vmatpush1.msra.mxu0 0.0
    %201 = vmatprep.subr.mxu0 0.0
    %202 = vmatpush1.msra.mxu0 0.0
    %203 = vmatprep.subr.mxu0 0.0
    %204 = vmatpush1.msra.mxu0 0.0
    %205 = vmatprep.subr.mxu0 0.0
    %206 = vmatpush1.msra.mxu0 0.0
    %207 = vmatprep.subr.mxu0 0.0
    %208 = vmatpush1.msra.mxu0 0.0
    %209 = vmatprep.subr.mxu0 0.0
    %210 = vmatpush1.msra.mxu0 0.0
    %211 = vmatprep.subr.mxu0 0.0
    %212 = vmatpush1.msra.mxu0 0.0
    %213 = vmatprep.subr.mxu0 0.0
    %214 = vmatpush1.msra.mxu0 0.0
    %215 = vmatprep.subr.mxu0 0.0
    %216 = vmatpush1.msra.mxu0 0.0
    %217 = vmatprep.subr.mxu0 0.0
    %218 = vmatpush1.msra.mxu0 0.0
    %219 = vmatprep.subr.mxu0 0.0
    %220 = vmatpush1.msra.mxu0 0.0
    %221 = vmatprep.subr.mxu0 0.0
    %222 = vmatpush1.msra.mxu0 0.0
    %223 = vmatprep.subr.mxu0 0.0
    %224 = vmatpush1.msra.mxu0 0.0
    %225 = vmatprep.subr.mxu0 0.0
    %226 = vmatpush1.msra.mxu0 0.0
    %227 = vmatprep.subr.mxu0 0.0
    %228 = vmatpush1.msra.mxu0 0.0
    %229 = vmatprep.subr.mxu0 0.0
    %230 = vmatpush1.msra.mxu0 0.0
    %231 = vmatprep.subr.mxu0 0.0
    %232 = vmatpush1.msra.mxu0 0.0
    %233 = vmatprep.subr.mxu0 0.0
    %234 = vmatpush1.msra.mxu0 0.0
    %235 = vmatprep.subr.mxu0 0.0
    %236 = vmatpush1.msra.mxu0 0.0
    %237 = vmatprep.subr.mxu0 0.0
    %238 = vmatpush1.msra.mxu0 0.0
    %239 = vmatprep.subr.mxu0 0.0
    %240 = vmatpush1.msra.mxu0 0.0
    %241 = vmatprep.subr.mxu0 0.0
    %242 = vmatpush1.msra.mxu0 0.0
    %243 = vmatprep.subr.mxu0 0.0
    %244 = vmatpush1.msra.mxu0 0.0
    %245 = vmatprep.subr.mxu0 0.0
    %246 = vmatpush1.msra.mxu0 0.0
    %247 = vmatprep.subr.mxu0 0.0
    %248 = vmatpush1.msra.mxu0 0.0
    %249 = vmatprep.mubr.f32.mxu0 0.0
    %v250 = vand.u32 %v84, 4294901760
    %251 = vmatmul.mubr.f32.gmra.mrb[0].mxu0 %v250
    %v252 = vpop.f32.mrb[0].mxu0
    %v253 = vadd.f32 %v162, %v252
    %v254 = vpop.f32.mrb[0].mxu0
    %255 = vdwg.mxu0
    %256 = vmatprep.subr.mxu0 0.0
    %v257 = vand.u32 %v41, 4294901760
    %v258 = vsub.f32 %v41, %v257
    %259 = vmatpush1.msra.mxu0 %v258
    %260 = vmatprep.subr.mxu0 0.0
    %v261 = vand.u32 %v42, 4294901760
    %v262 = vsub.f32 %v42, %v261
    %263 = vmatpush1.msra.mxu0 %v262
    %264 = vmatprep.subr.mxu0 0.0
    %v265 = vand.u32 %v43, 4294901760
    %v266 = vsub.f32 %v43, %v265
    %267 = vmatpush1.msra.mxu0 %v266
    %268 = vmatprep.subr.mxu0 0.0
    %v269 = vand.u32 %v44, 4294901760
    %v270 = vsub.f32 %v44, %v269
    %271 = vmatpush1.msra.mxu0 %v270
    %272 = vmatprep.subr.mxu0 0.0
    %273 = vmatpush1.msra.mxu0 0.0
    %274 = vmatprep.subr.mxu0 0.0
    %275 = vmatpush1.msra.mxu0 0.0
    %276 = vmatprep.subr.mxu0 0.0
    %277 = vmatpush1.msra.mxu0 0.0
    %278 = vmatprep.subr.mxu0 0.0
    %279 = vmatpush1.msra.mxu0 0.0
    %280 = vmatprep.subr.mxu0 0.0
    %281 = vmatpush1.msra.mxu0 0.0
    %282 = vmatprep.subr.mxu0 0.0
    %283 = vmatpush1.msra.mxu0 0.0
    %284 = vmatprep.subr.mxu0 0.0
    %285 = vmatpush1.msra.mxu0 0.0
    %286 = vmatprep.subr.mxu0 0.0
    %287 = vmatpush1.msra.mxu0 0.0
    %288 = vmatprep.subr.mxu0 0.0
    %289 = vmatpush1.msra.mxu0 0.0
    %290 = vmatprep.subr.mxu0 0.0
    %291 = vmatpush1.msra.mxu0 0.0
    %292 = vmatprep.subr.mxu0 0.0
    %293 = vmatpush1.msra.mxu0 0.0
    %294 = vmatprep.subr.mxu0 0.0
    %295 = vmatpush1.msra.mxu0 0.0
    %296 = vmatprep.subr.mxu0 0.0
    %297 = vmatpush1.msra.mxu0 0.0
    %298 = vmatprep.subr.mxu0 0.0
    %299 = vmatpush1.msra.mxu0 0.0
    %300 = vmatprep.subr.mxu0 0.0
    %301 = vmatpush1.msra.mxu0 0.0
    %302 = vmatprep.subr.mxu0 0.0
    %303 = vmatpush1.msra.mxu0 0.0
    %304 = vmatprep.subr.mxu0 0.0
    %305 = vmatpush1.msra.mxu0 0.0
    %306 = vmatprep.subr.mxu0 0.0
    %307 = vmatpush1.msra.mxu0 0.0
    %308 = vmatprep.subr.mxu0 0.0
    %309 = vmatpush1.msra.mxu0 0.0
    %310 = vmatprep.subr.mxu0 0.0
    %311 = vmatpush1.msra.mxu0 0.0
    %312 = vmatprep.subr.mxu0 0.0
    %313 = vmatpush1.msra.mxu0 0.0
    %314 = vmatprep.subr.mxu0 0.0
    %315 = vmatpush1.msra.mxu0 0.0
    %316 = vmatprep.subr.mxu0 0.0
    %317 = vmatpush1.msra.mxu0 0.0
    %318 = vmatprep.subr.mxu0 0.0
    %319 = vmatpush1.msra.mxu0 0.0
    %320 = vmatprep.subr.mxu0 0.0
    %321 = vmatpush1.msra.mxu0 0.0
    %322 = vmatprep.subr.mxu0 0.0
    %323 = vmatpush1.msra.mxu0 0.0
    %324 = vmatprep.subr.mxu0 0.0
    %325 = vmatpush1.msra.mxu0 0.0
    %326 = vmatprep.subr.mxu0 0.0
    %327 = vmatpush1.msra.mxu0 0.0
    %328 = vmatprep.mubr.f32.mxu0 0.0
    %v329 = vand.u32 %v84, 4294901760
    %v330 = vsub.f32 %v84, %v329
    %331 = vmatmul.mubr.f32.gmra.mrb[0].mxu0 %v330
    %v332 = vpop.f32.mrb[0].mxu0
    %v333 = vadd.f32 %v253, %v332
    %v334 = vpop.f32.mrb[0].mxu0
    %335 = vdwg.mxu0
    %336 = vmatprep.subr.mxu0 0.0
    %v337 = vand.u32 %v41, 4294901760
    %338 = vmatpush1.msra.mxu0 %v337
    %339 = vmatprep.subr.mxu0 0.0
    %v340 = vand.u32 %v42, 4294901760
    %341 = vmatpush1.msra.mxu0 %v340
    %342 = vmatprep.subr.mxu0 0.0
    %v343 = vand.u32 %v43, 4294901760
    %344 = vmatpush1.msra.mxu0 %v343
    %345 = vmatprep.subr.mxu0 0.0
    %v346 = vand.u32 %v44, 4294901760
    %347 = vmatpush1.msra.mxu0 %v346
    %348 = vmatprep.subr.mxu0 0.0
    %349 = vmatpush1.msra.mxu0 0.0
    %350 = vmatprep.subr.mxu0 0.0
    %351 = vmatpush1.msra.mxu0 0.0
    %352 = vmatprep.subr.mxu0 0.0
    %353 = vmatpush1.msra.mxu0 0.0
    %354 = vmatprep.subr.mxu0 0.0
    %355 = vmatpush1.msra.mxu0 0.0
    %356 = vmatprep.subr.mxu0 0.0
    %357 = vmatpush1.msra.mxu0 0.0
    %358 = vmatprep.subr.mxu0 0.0
    %359 = vmatpush1.msra.mxu0 0.0
    %360 = vmatprep.subr.mxu0 0.0
    %361 = vmatpush1.msra.mxu0 0.0
    %362 = vmatprep.subr.mxu0 0.0
    %363 = vmatpush1.msra.mxu0 0.0
    %364 = vmatprep.subr.mxu0 0.0
    %365 = vmatpush1.msra.mxu0 0.0
    %366 = vmatprep.subr.mxu0 0.0
    %367 = vmatpush1.msra.mxu0 0.0
    %368 = vmatprep.subr.mxu0 0.0
    %369 = vmatpush1.msra.mxu0 0.0
    %370 = vmatprep.subr.mxu0 0.0
    %371 = vmatpush1.msra.mxu0 0.0
    %372 = vmatprep.subr.mxu0 0.0
    %373 = vmatpush1.msra.mxu0 0.0
    %374 = vmatprep.subr.mxu0 0.0
    %375 = vmatpush1.msra.mxu0 0.0
    %376 = vmatprep.subr.mxu0 0.0
    %377 = vmatpush1.msra.mxu0 0.0
    %378 = vmatprep.subr.mxu0 0.0
    %379 = vmatpush1.msra.mxu0 0.0
    %380 = vmatprep.subr.mxu0 0.0
    %381 = vmatpush1.msra.mxu0 0.0
    %382 = vmatprep.subr.mxu0 0.0
    %383 = vmatpush1.msra.mxu0 0.0
    %384 = vmatprep.subr.mxu0 0.0
    %385 = vmatpush1.msra.mxu0 0.0
    %386 = vmatprep.subr.mxu0 0.0
    %387 = vmatpush1.msra.mxu0 0.0
    %388 = vmatprep.subr.mxu0 0.0
    %389 = vmatpush1.msra.mxu0 0.0
    %390 = vmatprep.subr.mxu0 0.0
    %391 = vmatpush1.msra.mxu0 0.0
    %392 = vmatprep.subr.mxu0 0.0
    %393 = vmatpush1.msra.mxu0 0.0
    %394 = vmatprep.subr.mxu0 0.0
    %395 = vmatpush1.msra.mxu0 0.0
    %396 = vmatprep.subr.mxu0 0.0
    %397 = vmatpush1.msra.mxu0 0.0
    %398 = vmatprep.subr.mxu0 0.0
    %399 = vmatpush1.msra.mxu0 0.0
    %400 = vmatprep.subr.mxu0 0.0
    %401 = vmatpush1.msra.mxu0 0.0
    %402 = vmatprep.subr.mxu0 0.0
    %403 = vmatpush1.msra.mxu0 0.0
    %404 = vmatprep.mubr.f32.mxu0 0.0
    %v405 = vand.u32 %v84, 4294901760
    %v406 = vsub.f32 %v84, %v405
    %v407 = vand.u32 %v406, 4294901760
    %408 = vmatmul.mubr.f32.gmra.mrb[0].mxu0 %v407
    %v409 = vpop.f32.mrb[0].mxu0
    %v410 = vadd.f32 %v333, %v409
    %v411 = vpop.f32.mrb[0].mxu0
    %412 = vdwg.mxu0
    %413 = vmatprep.subr.mxu0 0.0
    %v414 = vand.u32 %v41, 4294901760
    %v415 = vsub.f32 %v41, %v414
    %v416 = vand.u32 %v415, 4294901760
    %417 = vmatpush1.msra.mxu0 %v416
    %418 = vmatprep.subr.mxu0 0.0
    %v419 = vand.u32 %v42, 4294901760
    %v420 = vsub.f32 %v42, %v419
    %v421 = vand.u32 %v420, 4294901760
    %422 = vmatpush1.msra.mxu0 %v421
    %423 = vmatprep.subr.mxu0 0.0
    %v424 = vand.u32 %v43, 4294901760
    %v425 = vsub.f32 %v43, %v424
    %v426 = vand.u32 %v425, 4294901760
    %427 = vmatpush1.msra.mxu0 %v426
    %428 = vmatprep.subr.mxu0 0.0
    %v429 = vand.u32 %v44, 4294901760
    %v430 = vsub.f32 %v44, %v429
    %v431 = vand.u32 %v430, 4294901760
    %432 = vmatpush1.msra.mxu0 %v431
    %433 = vmatprep.subr.mxu0 0.0
    %434 = vmatpush1.msra.mxu0 0.0
    %435 = vmatprep.subr.mxu0 0.0
    %436 = vmatpush1.msra.mxu0 0.0
    %437 = vmatprep.subr.mxu0 0.0
    %438 = vmatpush1.msra.mxu0 0.0
    %439 = vmatprep.subr.mxu0 0.0
    %440 = vmatpush1.msra.mxu0 0.0
    %441 = vmatprep.subr.mxu0 0.0
    %442 = vmatpush1.msra.mxu0 0.0
    %443 = vmatprep.subr.mxu0 0.0
    %444 = vmatpush1.msra.mxu0 0.0
    %445 = vmatprep.subr.mxu0 0.0
    %446 = vmatpush1.msra.mxu0 0.0
    %447 = vmatprep.subr.mxu0 0.0
    %448 = vmatpush1.msra.mxu0 0.0
    %449 = vmatprep.subr.mxu0 0.0
    %450 = vmatpush1.msra.mxu0 0.0
    %451 = vmatprep.subr.mxu0 0.0
    %452 = vmatpush1.msra.mxu0 0.0
    %453 = vmatprep.subr.mxu0 0.0
    %454 = vmatpush1.msra.mxu0 0.0
    %455 = vmatprep.subr.mxu0 0.0
    %456 = vmatpush1.msra.mxu0 0.0
    %457 = vmatprep.subr.mxu0 0.0
    %458 = vmatpush1.msra.mxu0 0.0
    %459 = vmatprep.subr.mxu0 0.0
    %460 = vmatpush1.msra.mxu0 0.0
    %461 = vmatprep.subr.mxu0 0.0
    %462 = vmatpush1.msra.mxu0 0.0
    %463 = vmatprep.subr.mxu0 0.0
    %464 = vmatpush1.msra.mxu0 0.0
    %465 = vmatprep.subr.mxu0 0.0
    %466 = vmatpush1.msra.mxu0 0.0
    %467 = vmatprep.subr.mxu0 0.0
    %468 = vmatpush1.msra.mxu0 0.0
    %469 = vmatprep.subr.mxu0 0.0
    %470 = vmatpush1.msra.mxu0 0.0
    %471 = vmatprep.subr.mxu0 0.0
    %472 = vmatpush1.msra.mxu0 0.0
    %473 = vmatprep.subr.mxu0 0.0
    %474 = vmatpush1.msra.mxu0 0.0
    %475 = vmatprep.subr.mxu0 0.0
    %476 = vmatpush1.msra.mxu0 0.0
    %477 = vmatprep.subr.mxu0 0.0
    %478 = vmatpush1.msra.mxu0 0.0
    %479 = vmatprep.subr.mxu0 0.0
    %480 = vmatpush1.msra.mxu0 0.0
    %481 = vmatprep.subr.mxu0 0.0
    %482 = vmatpush1.msra.mxu0 0.0
    %483 = vmatprep.subr.mxu0 0.0
    %484 = vmatpush1.msra.mxu0 0.0
    %485 = vmatprep.subr.mxu0 0.0
    %486 = vmatpush1.msra.mxu0 0.0
    %487 = vmatprep.subr.mxu0 0.0
    %488 = vmatpush1.msra.mxu0 0.0
    %489 = vmatprep.mubr.f32.mxu0 0.0
    %v490 = vand.u32 %v84, 4294901760
    %491 = vmatmul.mubr.f32.gmra.mrb[0].mxu0 %v490
    %v492 = vpop.f32.mrb[0].mxu0
    %v493 = vadd.f32 %v410, %v492
    %v494 = vpop.f32.mrb[0].mxu0
    %495 = vdwg.mxu0
    %496 = vmatprep.subr.mxu0 0.0
    %v497 = vand.u32 %v41, 4294901760
    %498 = vmatpush1.msra.mxu0 %v497
    %499 = vmatprep.subr.mxu0 0.0
    %v500 = vand.u32 %v42, 4294901760
    %501 = vmatpush1.msra.mxu0 %v500
    %502 = vmatprep.subr.mxu0 0.0
    %v503 = vand.u32 %v43, 4294901760
    %504 = vmatpush1.msra.mxu0 %v503
    %505 = vmatprep.subr.mxu0 0.0
    %v506 = vand.u32 %v44, 4294901760
    %507 = vmatpush1.msra.mxu0 %v506
    %508 = vmatprep.subr.mxu0 0.0
    %509 = vmatpush1.msra.mxu0 0.0
    %510 = vmatprep.subr.mxu0 0.0
    %511 = vmatpush1.msra.mxu0 0.0
    %512 = vmatprep.subr.mxu0 0.0
    %513 = vmatpush1.msra.mxu0 0.0
    %514 = vmatprep.subr.mxu0 0.0
    %515 = vmatpush1.msra.mxu0 0.0
    %516 = vmatprep.subr.mxu0 0.0
    %517 = vmatpush1.msra.mxu0 0.0
    %518 = vmatprep.subr.mxu0 0.0
    %519 = vmatpush1.msra.mxu0 0.0
    %520 = vmatprep.subr.mxu0 0.0
    %521 = vmatpush1.msra.mxu0 0.0
    %522 = vmatprep.subr.mxu0 0.0
    %523 = vmatpush1.msra.mxu0 0.0
    %524 = vmatprep.subr.mxu0 0.0
    %525 = vmatpush1.msra.mxu0 0.0
    %526 = vmatprep.subr.mxu0 0.0
    %527 = vmatpush1.msra.mxu0 0.0
    %528 = vmatprep.subr.mxu0 0.0
    %529 = vmatpush1.msra.mxu0 0.0
    %530 = vmatprep.subr.mxu0 0.0
    %531 = vmatpush1.msra.mxu0 0.0
    %532 = vmatprep.subr.mxu0 0.0
    %533 = vmatpush1.msra.mxu0 0.0
    %534 = vmatprep.subr.mxu0 0.0
    %535 = vmatpush1.msra.mxu0 0.0
    %536 = vmatprep.subr.mxu0 0.0
    %537 = vmatpush1.msra.mxu0 0.0
    %538 = vmatprep.subr.mxu0 0.0
    %539 = vmatpush1.msra.mxu0 0.0
    %540 = vmatprep.subr.mxu0 0.0
    %541 = vmatpush1.msra.mxu0 0.0
    %542 = vmatprep.subr.mxu0 0.0
    %543 = vmatpush1.msra.mxu0 0.0
    %544 = vmatprep.subr.mxu0 0.0
    %545 = vmatpush1.msra.mxu0 0.0
    %546 = vmatprep.subr.mxu0 0.0
    %547 = vmatpush1.msra.mxu0 0.0
    %548 = vmatprep.subr.mxu0 0.0
    %549 = vmatpush1.msra.mxu0 0.0
    %550 = vmatprep.subr.mxu0 0.0
    %551 = vmatpush1.msra.mxu0 0.0
    %552 = vmatprep.subr.mxu0 0.0
    %553 = vmatpush1.msra.mxu0 0.0
    %554 = vmatprep.subr.mxu0 0.0
    %555 = vmatpush1.msra.mxu0 0.0
    %556 = vmatprep.subr.mxu0 0.0
    %557 = vmatpush1.msra.mxu0 0.0
    %558 = vmatprep.subr.mxu0 0.0
    %559 = vmatpush1.msra.mxu0 0.0
    %560 = vmatprep.subr.mxu0 0.0
    %561 = vmatpush1.msra.mxu0 0.0
    %562 = vmatprep.subr.mxu0 0.0
    %563 = vmatpush1.msra.mxu0 0.0
    %564 = vmatprep.mubr.f32.mxu0 0.0
    %v565 = vand.u32 %v84, 4294901760
    %566 = vmatmul.mubr.f32.gmra.mrb[0].mxu0 %v565
    %v567 = vpop.f32.mrb[0].mxu0
    %v568 = vadd.f32 %v493, %v567
    %v569 = vpop.f32.mrb[0].mxu0
    %570 = vdwg.mxu0
    %v571 = vadd.f32 %v568, 0.0
    %v573 = vlaneseq
    %v574 = vshrl.u32 %v573, 7
    %v575 = vsub.s32 0, %v574
    %v576 = vrot.slane %v47, %v575
    %v578 = vadd.f32 %v571, %v576
    %v579 = vmul.f32 %v578, 0.5
    %v580 = vtanh.pop %v579
    %v581 = vmul.f32 %v580, 0.5
    %v582 = vadd.f32 %v581, 0.5
    %v583 = vlaneseq
    %v584 = vshrl.u32 %v583, 7
    %v585 = vsub.s32 0, %v584
    %v586 = vrot.slane %v46, %v585
    %v588 = vadd.f32 %v568, %v586
    %590 = vrot.lane.b32.xlu0 %v588, 64
    %v591 = vpop.permute.xlu0 %590
    %v593 = vmul.f32 %v582, %v591
    %v595 = vlaneseq
    %v596 = vshrl.u32 %v595, 7
    %v597 = vsub.s32 0, %v596
    %v598 = vrot.slane %v53, %v597
    %601 = vrot.lane.b32.xlu0 %v593, 64
    %v602 = vpop.permute.xlu0 %601
    %v604 = vadd.f32 %v598, %v602
    %v605 = vtanh.pop %v604
    %v606 = vsub.f32 %v79, %v605
    %608 = vrot.lane.b32.xlu0 %v606, 96
    %v609 = vpop.permute.xlu0 %608
    %v611 = vmul.f32 %v582, %v609
    %613 = vrot.lane.b32.xlu0 %v611, 32
    %v614 = vpop.permute.xlu0 %613
    %v616 = vadd.f32 %v605, %v614
    %618 = vrot.lane.b32.xlu0 %v616, 64
    %v619 = vpop.permute.xlu0 %618
    %v620 = vsel %vm83, %v619, 0
    %622 = vmatprep.subr.mxu0 0.0
    %v623 = vand.u32 %v41, 4294901760
    %624 = vmatpush1.msra.mxu0 %v623
    %625 = vmatprep.subr.mxu0 0.0
    %v626 = vand.u32 %v42, 4294901760
    %627 = vmatpush1.msra.mxu0 %v626
    %628 = vmatprep.subr.mxu0 0.0
    %v629 = vand.u32 %v43, 4294901760
    %630 = vmatpush1.msra.mxu0 %v629
    %631 = vmatprep.subr.mxu0 0.0
    %v632 = vand.u32 %v44, 4294901760
    %633 = vmatpush1.msra.mxu0 %v632
    %634 = vmatprep.subr.mxu0 0.0
    %635 = vmatpush1.msra.mxu0 0.0
    %636 = vmatprep.subr.mxu0 0.0
    %637 = vmatpush1.msra.mxu0 0.0
    %638 = vmatprep.subr.mxu0 0.0
    %639 = vmatpush1.msra.mxu0 0.0
    %640 = vmatprep.subr.mxu0 0.0
    %641 = vmatpush1.msra.mxu0 0.0
    %642 = vmatprep.subr.mxu0 0.0
    %643 = vmatpush1.msra.mxu0 0.0
    %644 = vmatprep.subr.mxu0 0.0
    %645 = vmatpush1.msra.mxu0 0.0
    %646 = vmatprep.subr.mxu0 0.0
    %647 = vmatpush1.msra.mxu0 0.0
    %648 = vmatprep.subr.mxu0 0.0
    %649 = vmatpush1.msra.mxu0 0.0
    %650 = vmatprep.subr.mxu0 0.0
    %651 = vmatpush1.msra.mxu0 0.0
    %652 = vmatprep.subr.mxu0 0.0
    %653 = vmatpush1.msra.mxu0 0.0
    %654 = vmatprep.subr.mxu0 0.0
    %655 = vmatpush1.msra.mxu0 0.0
    %656 = vmatprep.subr.mxu0 0.0
    %657 = vmatpush1.msra.mxu0 0.0
    %658 = vmatprep.subr.mxu0 0.0
    %659 = vmatpush1.msra.mxu0 0.0
    %660 = vmatprep.subr.mxu0 0.0
    %661 = vmatpush1.msra.mxu0 0.0
    %662 = vmatprep.subr.mxu0 0.0
    %663 = vmatpush1.msra.mxu0 0.0
    %664 = vmatprep.subr.mxu0 0.0
    %665 = vmatpush1.msra.mxu0 0.0
    %666 = vmatprep.subr.mxu0 0.0
    %667 = vmatpush1.msra.mxu0 0.0
    %668 = vmatprep.subr.mxu0 0.0
    %669 = vmatpush1.msra.mxu0 0.0
    %670 = vmatprep.subr.mxu0 0.0
    %671 = vmatpush1.msra.mxu0 0.0
    %672 = vmatprep.subr.mxu0 0.0
    %673 = vmatpush1.msra.mxu0 0.0
    %674 = vmatprep.subr.mxu0 0.0
    %675 = vmatpush1.msra.mxu0 0.0
    %676 = vmatprep.subr.mxu0 0.0
    %677 = vmatpush1.msra.mxu0 0.0
    %678 = vmatprep.subr.mxu0 0.0
    %679 = vmatpush1.msra.mxu0 0.0
    %680 = vmatprep.subr.mxu0 0.0
    %681 = vmatpush1.msra.mxu0 0.0
    %682 = vmatprep.subr.mxu0 0.0
    %683 = vmatpush1.msra.mxu0 0.0
    %684 = vmatprep.subr.mxu0 0.0
    %685 = vmatpush1.msra.mxu0 0.0
    %686 = vmatprep.subr.mxu0 0.0
    %687 = vmatpush1.msra.mxu0 0.0
    %688 = vmatprep.subr.mxu0 0.0
    %689 = vmatpush1.msra.mxu0 0.0
    %690 = vmatprep.mubr.f32.mxu0 0.0
    %v691 = vand.u32 %v620, 4294901760
    %v692 = vsub.f32 %v620, %v691
    %v693 = vand.u32 %v692, 4294901760
    %v694 = vsub.f32 %v692, %v693
    %v695 = vand.u32 %v694, 4294901760
    %696 = vmatmul.mubr.f32.gmra.mrb[0].mxu0 %v695
    %v697 = vpop.f32.mrb[0].mxu0
    %v698 = vadd.f32 0.0, %v697
    %v699 = vpop.f32.mrb[0].mxu0
    %700 = vdwg.mxu0
    %701 = vmatprep.subr.mxu0 0.0
    %v702 = vand.u32 %v41, 4294901760
    %v703 = vsub.f32 %v41, %v702
    %v704 = vand.u32 %v703, 4294901760
    %v705 = vsub.f32 %v703, %v704
    %v706 = vand.u32 %v705, 4294901760
    %707 = vmatpush1.msra.mxu0 %v706
    %708 = vmatprep.subr.mxu0 0.0
    %v709 = vand.u32 %v42, 4294901760
    %v710 = vsub.f32 %v42, %v709
    %v711 = vand.u32 %v710, 4294901760
    %v712 = vsub.f32 %v710, %v711
    %v713 = vand.u32 %v712, 4294901760
    %714 = vmatpush1.msra.mxu0 %v713
    %715 = vmatprep.subr.mxu0 0.0
    %v716 = vand.u32 %v43, 4294901760
    %v717 = vsub.f32 %v43, %v716
    %v718 = vand.u32 %v717, 4294901760
    %v719 = vsub.f32 %v717, %v718
    %v720 = vand.u32 %v719, 4294901760
    %721 = vmatpush1.msra.mxu0 %v720
    %722 = vmatprep.subr.mxu0 0.0
    %v723 = vand.u32 %v44, 4294901760
    %v724 = vsub.f32 %v44, %v723
    %v725 = vand.u32 %v724, 4294901760
    %v726 = vsub.f32 %v724, %v725
    %v727 = vand.u32 %v726, 4294901760
    %728 = vmatpush1.msra.mxu0 %v727
    %729 = vmatprep.subr.mxu0 0.0
    %730 = vmatpush1.msra.mxu0 0.0
    %731 = vmatprep.subr.mxu0 0.0
    %732 = vmatpush1.msra.mxu0 0.0
    %733 = vmatprep.subr.mxu0 0.0
    %734 = vmatpush1.msra.mxu0 0.0
    %735 = vmatprep.subr.mxu0 0.0
    %736 = vmatpush1.msra.mxu0 0.0
    %737 = vmatprep.subr.mxu0 0.0
    %738 = vmatpush1.msra.mxu0 0.0
    %739 = vmatprep.subr.mxu0 0.0
    %740 = vmatpush1.msra.mxu0 0.0
    %741 = vmatprep.subr.mxu0 0.0
    %742 = vmatpush1.msra.mxu0 0.0
    %743 = vmatprep.subr.mxu0 0.0
    %744 = vmatpush1.msra.mxu0 0.0
    %745 = vmatprep.subr.mxu0 0.0
    %746 = vmatpush1.msra.mxu0 0.0
    %747 = vmatprep.subr.mxu0 0.0
    %748 = vmatpush1.msra.mxu0 0.0
    %749 = vmatprep.subr.mxu0 0.0
    %750 = vmatpush1.msra.mxu0 0.0
    %751 = vmatprep.subr.mxu0 0.0
    %752 = vmatpush1.msra.mxu0 0.0
    %753 = vmatprep.subr.mxu0 0.0
    %754 = vmatpush1.msra.mxu0 0.0
    %755 = vmatprep.subr.mxu0 0.0
    %756 = vmatpush1.msra.mxu0 0.0
    %757 = vmatprep.subr.mxu0 0.0
    %758 = vmatpush1.msra.mxu0 0.0
    %759 = vmatprep.subr.mxu0 0.0
    %760 = vmatpush1.msra.mxu0 0.0
    %761 = vmatprep.subr.mxu0 0.0
    %762 = vmatpush1.msra.mxu0 0.0
    %763 = vmatprep.subr.mxu0 0.0
    %764 = vmatpush1.msra.mxu0 0.0
    %765 = vmatprep.subr.mxu0 0.0
    %766 = vmatpush1.msra.mxu0 0.0
    %767 = vmatprep.subr.mxu0 0.0
    %768 = vmatpush1.msra.mxu0 0.0
    %769 = vmatprep.subr.mxu0 0.0
    %770 = vmatpush1.msra.mxu0 0.0
    %771 = vmatprep.subr.mxu0 0.0
    %772 = vmatpush1.msra.mxu0 0.0
    %773 = vmatprep.subr.mxu0 0.0
    %774 = vmatpush1.msra.mxu0 0.0
    %775 = vmatprep.subr.mxu0 0.0
    %776 = vmatpush1.msra.mxu0 0.0
    %777 = vmatprep.subr.mxu0 0.0
    %778 = vmatpush1.msra.mxu0 0.0
    %779 = vmatprep.subr.mxu0 0.0
    %780 = vmatpush1.msra.mxu0 0.0
    %781 = vmatprep.subr.mxu0 0.0
    %782 = vmatpush1.msra.mxu0 0.0
    %783 = vmatprep.subr.mxu0 0.0
    %784 = vmatpush1.msra.mxu0 0.0
    %785 = vmatprep.mubr.f32.mxu0 0.0
    %v786 = vand.u32 %v620, 4294901760
    %787 = vmatmul.mubr.f32.gmra.mrb[0].mxu0 %v786
    %v788 = vpop.f32.mrb[0].mxu0
    %v789 = vadd.f32 %v698, %v788
    %v790 = vpop.f32.mrb[0].mxu0
    %791 = vdwg.mxu0
    %792 = vmatprep.subr.mxu0 0.0
    %v793 = vand.u32 %v41, 4294901760
    %v794 = vsub.f32 %v41, %v793
    %795 = vmatpush1.msra.mxu0 %v794
    %796 = vmatprep.subr.mxu0 0.0
    %v797 = vand.u32 %v42, 4294901760
    %v798 = vsub.f32 %v42, %v797
    %799 = vmatpush1.msra.mxu0 %v798
    %800 = vmatprep.subr.mxu0 0.0
    %v801 = vand.u32 %v43, 4294901760
    %v802 = vsub.f32 %v43, %v801
    %803 = vmatpush1.msra.mxu0 %v802
    %804 = vmatprep.subr.mxu0 0.0
    %v805 = vand.u32 %v44, 4294901760
    %v806 = vsub.f32 %v44, %v805
    %807 = vmatpush1.msra.mxu0 %v806
    %808 = vmatprep.subr.mxu0 0.0
    %809 = vmatpush1.msra.mxu0 0.0
    %810 = vmatprep.subr.mxu0 0.0
    %811 = vmatpush1.msra.mxu0 0.0
    %812 = vmatprep.subr.mxu0 0.0
    %813 = vmatpush1.msra.mxu0 0.0
    %814 = vmatprep.subr.mxu0 0.0
    %815 = vmatpush1.msra.mxu0 0.0
    %816 = vmatprep.subr.mxu0 0.0
    %817 = vmatpush1.msra.mxu0 0.0
    %818 = vmatprep.subr.mxu0 0.0
    %819 = vmatpush1.msra.mxu0 0.0
    %820 = vmatprep.subr.mxu0 0.0
    %821 = vmatpush1.msra.mxu0 0.0
    %822 = vmatprep.subr.mxu0 0.0
    %823 = vmatpush1.msra.mxu0 0.0
    %824 = vmatprep.subr.mxu0 0.0
    %825 = vmatpush1.msra.mxu0 0.0
    %826 = vmatprep.subr.mxu0 0.0
    %827 = vmatpush1.msra.mxu0 0.0
    %828 = vmatprep.subr.mxu0 0.0
    %829 = vmatpush1.msra.mxu0 0.0
    %830 = vmatprep.subr.mxu0 0.0
    %831 = vmatpush1.msra.mxu0 0.0
    %832 = vmatprep.subr.mxu0 0.0
    %833 = vmatpush1.msra.mxu0 0.0
    %834 = vmatprep.subr.mxu0 0.0
    %835 = vmatpush1.msra.mxu0 0.0
    %836 = vmatprep.subr.mxu0 0.0
    %837 = vmatpush1.msra.mxu0 0.0
    %838 = vmatprep.subr.mxu0 0.0
    %839 = vmatpush1.msra.mxu0 0.0
    %840 = vmatprep.subr.mxu0 0.0
    %841 = vmatpush1.msra.mxu0 0.0
    %842 = vmatprep.subr.mxu0 0.0
    %843 = vmatpush1.msra.mxu0 0.0
    %844 = vmatprep.subr.mxu0 0.0
    %845 = vmatpush1.msra.mxu0 0.0
    %846 = vmatprep.subr.mxu0 0.0
    %847 = vmatpush1.msra.mxu0 0.0
    %848 = vmatprep.subr.mxu0 0.0
    %849 = vmatpush1.msra.mxu0 0.0
    %850 = vmatprep.subr.mxu0 0.0
    %851 = vmatpush1.msra.mxu0 0.0
    %852 = vmatprep.subr.mxu0 0.0
    %853 = vmatpush1.msra.mxu0 0.0
    %854 = vmatprep.subr.mxu0 0.0
    %855 = vmatpush1.msra.mxu0 0.0
    %856 = vmatprep.subr.mxu0 0.0
    %857 = vmatpush1.msra.mxu0 0.0
    %858 = vmatprep.subr.mxu0 0.0
    %859 = vmatpush1.msra.mxu0 0.0
    %860 = vmatprep.subr.mxu0 0.0
    %861 = vmatpush1.msra.mxu0 0.0
    %862 = vmatprep.subr.mxu0 0.0
    %863 = vmatpush1.msra.mxu0 0.0
    %864 = vmatprep.mubr.f32.mxu0 0.0
    %v865 = vand.u32 %v620, 4294901760
    %v866 = vsub.f32 %v620, %v865
    %867 = vmatmul.mubr.f32.gmra.mrb[0].mxu0 %v866
    %v868 = vpop.f32.mrb[0].mxu0
    %v869 = vadd.f32 %v789, %v868
    %v870 = vpop.f32.mrb[0].mxu0
    %871 = vdwg.mxu0
    %872 = vmatprep.subr.mxu0 0.0
    %v873 = vand.u32 %v41, 4294901760
    %874 = vmatpush1.msra.mxu0 %v873
    %875 = vmatprep.subr.mxu0 0.0
    %v876 = vand.u32 %v42, 4294901760
    %877 = vmatpush1.msra.mxu0 %v876
    %878 = vmatprep.subr.mxu0 0.0
    %v879 = vand.u32 %v43, 4294901760
    %880 = vmatpush1.msra.mxu0 %v879
    %881 = vmatprep.subr.mxu0 0.0
    %v882 = vand.u32 %v44, 4294901760
    %883 = vmatpush1.msra.mxu0 %v882
    %884 = vmatprep.subr.mxu0 0.0
    %885 = vmatpush1.msra.mxu0 0.0
    %886 = vmatprep.subr.mxu0 0.0
    %887 = vmatpush1.msra.mxu0 0.0
    %888 = vmatprep.subr.mxu0 0.0
    %889 = vmatpush1.msra.mxu0 0.0
    %890 = vmatprep.subr.mxu0 0.0
    %891 = vmatpush1.msra.mxu0 0.0
    %892 = vmatprep.subr.mxu0 0.0
    %893 = vmatpush1.msra.mxu0 0.0
    %894 = vmatprep.subr.mxu0 0.0
    %895 = vmatpush1.msra.mxu0 0.0
    %896 = vmatprep.subr.mxu0 0.0
    %897 = vmatpush1.msra.mxu0 0.0
    %898 = vmatprep.subr.mxu0 0.0
    %899 = vmatpush1.msra.mxu0 0.0
    %900 = vmatprep.subr.mxu0 0.0
    %901 = vmatpush1.msra.mxu0 0.0
    %902 = vmatprep.subr.mxu0 0.0
    %903 = vmatpush1.msra.mxu0 0.0
    %904 = vmatprep.subr.mxu0 0.0
    %905 = vmatpush1.msra.mxu0 0.0
    %906 = vmatprep.subr.mxu0 0.0
    %907 = vmatpush1.msra.mxu0 0.0
    %908 = vmatprep.subr.mxu0 0.0
    %909 = vmatpush1.msra.mxu0 0.0
    %910 = vmatprep.subr.mxu0 0.0
    %911 = vmatpush1.msra.mxu0 0.0
    %912 = vmatprep.subr.mxu0 0.0
    %913 = vmatpush1.msra.mxu0 0.0
    %914 = vmatprep.subr.mxu0 0.0
    %915 = vmatpush1.msra.mxu0 0.0
    %916 = vmatprep.subr.mxu0 0.0
    %917 = vmatpush1.msra.mxu0 0.0
    %918 = vmatprep.subr.mxu0 0.0
    %919 = vmatpush1.msra.mxu0 0.0
    %920 = vmatprep.subr.mxu0 0.0
    %921 = vmatpush1.msra.mxu0 0.0
    %922 = vmatprep.subr.mxu0 0.0
    %923 = vmatpush1.msra.mxu0 0.0
    %924 = vmatprep.subr.mxu0 0.0
    %925 = vmatpush1.msra.mxu0 0.0
    %926 = vmatprep.subr.mxu0 0.0
    %927 = vmatpush1.msra.mxu0 0.0
    %928 = vmatprep.subr.mxu0 0.0
    %929 = vmatpush1.msra.mxu0 0.0
    %930 = vmatprep.subr.mxu0 0.0
    %931 = vmatpush1.msra.mxu0 0.0
    %932 = vmatprep.subr.mxu0 0.0
    %933 = vmatpush1.msra.mxu0 0.0
    %934 = vmatprep.subr.mxu0 0.0
    %935 = vmatpush1.msra.mxu0 0.0
    %936 = vmatprep.subr.mxu0 0.0
    %937 = vmatpush1.msra.mxu0 0.0
    %938 = vmatprep.subr.mxu0 0.0
    %939 = vmatpush1.msra.mxu0 0.0
    %940 = vmatprep.mubr.f32.mxu0 0.0
    %v941 = vand.u32 %v620, 4294901760
    %v942 = vsub.f32 %v620, %v941
    %v943 = vand.u32 %v942, 4294901760
    %944 = vmatmul.mubr.f32.gmra.mrb[0].mxu0 %v943
    %v945 = vpop.f32.mrb[0].mxu0
    %v946 = vadd.f32 %v869, %v945
    %v947 = vpop.f32.mrb[0].mxu0
    %948 = vdwg.mxu0
    %949 = vmatprep.subr.mxu0 0.0
    %v950 = vand.u32 %v41, 4294901760
    %v951 = vsub.f32 %v41, %v950
    %v952 = vand.u32 %v951, 4294901760
    %953 = vmatpush1.msra.mxu0 %v952
    %954 = vmatprep.subr.mxu0 0.0
    %v955 = vand.u32 %v42, 4294901760
    %v956 = vsub.f32 %v42, %v955
    %v957 = vand.u32 %v956, 4294901760
    %958 = vmatpush1.msra.mxu0 %v957
    %959 = vmatprep.subr.mxu0 0.0
    %v960 = vand.u32 %v43, 4294901760
    %v961 = vsub.f32 %v43, %v960
    %v962 = vand.u32 %v961, 4294901760
    %963 = vmatpush1.msra.mxu0 %v962
    %964 = vmatprep.subr.mxu0 0.0
    %v965 = vand.u32 %v44, 4294901760
    %v966 = vsub.f32 %v44, %v965
    %v967 = vand.u32 %v966, 4294901760
    %968 = vmatpush1.msra.mxu0 %v967
    %969 = vmatprep.subr.mxu0 0.0
    %970 = vmatpush1.msra.mxu0 0.0
    %971 = vmatprep.subr.mxu0 0.0
    %972 = vmatpush1.msra.mxu0 0.0
    %973 = vmatprep.subr.mxu0 0.0
    %974 = vmatpush1.msra.mxu0 0.0
    %975 = vmatprep.subr.mxu0 0.0
    %976 = vmatpush1.msra.mxu0 0.0
    %977 = vmatprep.subr.mxu0 0.0
    %978 = vmatpush1.msra.mxu0 0.0
    %979 = vmatprep.subr.mxu0 0.0
    %980 = vmatpush1.msra.mxu0 0.0
    %981 = vmatprep.subr.mxu0 0.0
    %982 = vmatpush1.msra.mxu0 0.0
    %983 = vmatprep.subr.mxu0 0.0
    %984 = vmatpush1.msra.mxu0 0.0
    %985 = vmatprep.subr.mxu0 0.0
    %986 = vmatpush1.msra.mxu0 0.0
    %987 = vmatprep.subr.mxu0 0.0
    %988 = vmatpush1.msra.mxu0 0.0
    %989 = vmatprep.subr.mxu0 0.0
    %990 = vmatpush1.msra.mxu0 0.0
    %991 = vmatprep.subr.mxu0 0.0
    %992 = vmatpush1.msra.mxu0 0.0
    %993 = vmatprep.subr.mxu0 0.0
    %994 = vmatpush1.msra.mxu0 0.0
    %995 = vmatprep.subr.mxu0 0.0
    %996 = vmatpush1.msra.mxu0 0.0
    %997 = vmatprep.subr.mxu0 0.0
    %998 = vmatpush1.msra.mxu0 0.0
    %999 = vmatprep.subr.mxu0 0.0
    %1000 = vmatpush1.msra.mxu0 0.0
    %1001 = vmatprep.subr.mxu0 0.0
    %1002 = vmatpush1.msra.mxu0 0.0
    %1003 = vmatprep.subr.mxu0 0.0
    %1004 = vmatpush1.msra.mxu0 0.0
    %1005 = vmatprep.subr.mxu0 0.0
    %1006 = vmatpush1.msra.mxu0 0.0
    %1007 = vmatprep.subr.mxu0 0.0
    %1008 = vmatpush1.msra.mxu0 0.0
    %1009 = vmatprep.subr.mxu0 0.0
    %1010 = vmatpush1.msra.mxu0 0.0
    %1011 = vmatprep.subr.mxu0 0.0
    %1012 = vmatpush1.msra.mxu0 0.0
    %1013 = vmatprep.subr.mxu0 0.0
    %1014 = vmatpush1.msra.mxu0 0.0
    %1015 = vmatprep.subr.mxu0 0.0
    %1016 = vmatpush1.msra.mxu0 0.0
    %1017 = vmatprep.subr.mxu0 0.0
    %1018 = vmatpush1.msra.mxu0 0.0
    %1019 = vmatprep.subr.mxu0 0.0
    %1020 = vmatpush1.msra.mxu0 0.0
    %1021 = vmatprep.subr.mxu0 0.0
    %1022 = vmatpush1.msra.mxu0 0.0
    %1023 = vmatprep.subr.mxu0 0.0
    %1024 = vmatpush1.msra.mxu0 0.0
    %1025 = vmatprep.mubr.f32.mxu0 0.0
    %v1026 = vand.u32 %v620, 4294901760
    %1027 = vmatmul.mubr.f32.gmra.mrb[0].mxu0 %v1026
    %v1028 = vpop.f32.mrb[0].mxu0
    %v1029 = vadd.f32 %v946, %v1028
    %v1030 = vpop.f32.mrb[0].mxu0
    %1031 = vdwg.mxu0
    %1032 = vmatprep.subr.mxu0 0.0
    %v1033 = vand.u32 %v41, 4294901760
    %1034 = vmatpush1.msra.mxu0 %v1033
    %1035 = vmatprep.subr.mxu0 0.0
    %v1036 = vand.u32 %v42, 4294901760
    %1037 = vmatpush1.msra.mxu0 %v1036
    %1038 = vmatprep.subr.mxu0 0.0
    %v1039 = vand.u32 %v43, 4294901760
    %1040 = vmatpush1.msra.mxu0 %v1039
    %1041 = vmatprep.subr.mxu0 0.0
    %v1042 = vand.u32 %v44, 4294901760
    %1043 = vmatpush1.msra.mxu0 %v1042
    %1044 = vmatprep.subr.mxu0 0.0
    %1045 = vmatpush1.msra.mxu0 0.0
    %1046 = vmatprep.subr.mxu0 0.0
    %1047 = vmatpush1.msra.mxu0 0.0
    %1048 = vmatprep.subr.mxu0 0.0
    %1049 = vmatpush1.msra.mxu0 0.0
    %1050 = vmatprep.subr.mxu0 0.0
    %1051 = vmatpush1.msra.mxu0 0.0
    %1052 = vmatprep.subr.mxu0 0.0
    %1053 = vmatpush1.msra.mxu0 0.0
    %1054 = vmatprep.subr.mxu0 0.0
    %1055 = vmatpush1.msra.mxu0 0.0
    %1056 = vmatprep.subr.mxu0 0.0
    %1057 = vmatpush1.msra.mxu0 0.0
    %1058 = vmatprep.subr.mxu0 0.0
    %1059 = vmatpush1.msra.mxu0 0.0
    %1060 = vmatprep.subr.mxu0 0.0
    %1061 = vmatpush1.msra.mxu0 0.0
    %1062 = vmatprep.subr.mxu0 0.0
    %1063 = vmatpush1.msra.mxu0 0.0
    %1064 = vmatprep.subr.mxu0 0.0
    %1065 = vmatpush1.msra.mxu0 0.0
    %1066 = vmatprep.subr.mxu0 0.0
    %1067 = vmatpush1.msra.mxu0 0.0
    %1068 = vmatprep.subr.mxu0 0.0
    %1069 = vmatpush1.msra.mxu0 0.0
    %1070 = vmatprep.subr.mxu0 0.0
    %1071 = vmatpush1.msra.mxu0 0.0
    %1072 = vmatprep.subr.mxu0 0.0
    %1073 = vmatpush1.msra.mxu0 0.0
    %1074 = vmatprep.subr.mxu0 0.0
    %1075 = vmatpush1.msra.mxu0 0.0
    %1076 = vmatprep.subr.mxu0 0.0
    %1077 = vmatpush1.msra.mxu0 0.0
    %1078 = vmatprep.subr.mxu0 0.0
    %1079 = vmatpush1.msra.mxu0 0.0
    %1080 = vmatprep.subr.mxu0 0.0
    %1081 = vmatpush1.msra.mxu0 0.0
    %1082 = vmatprep.subr.mxu0 0.0
    %1083 = vmatpush1.msra.mxu0 0.0
    %1084 = vmatprep.subr.mxu0 0.0
    %1085 = vmatpush1.msra.mxu0 0.0
    %1086 = vmatprep.subr.mxu0 0.0
    %1087 = vmatpush1.msra.mxu0 0.0
    %1088 = vmatprep.subr.mxu0 0.0
    %1089 = vmatpush1.msra.mxu0 0.0
    %1090 = vmatprep.subr.mxu0 0.0
    %1091 = vmatpush1.msra.mxu0 0.0
    %1092 = vmatprep.subr.mxu0 0.0
    %1093 = vmatpush1.msra.mxu0 0.0
    %1094 = vmatprep.subr.mxu0 0.0
    %1095 = vmatpush1.msra.mxu0 0.0
    %1096 = vmatprep.subr.mxu0 0.0
    %1097 = vmatpush1.msra.mxu0 0.0
    %1098 = vmatprep.subr.mxu0 0.0
    %1099 = vmatpush1.msra.mxu0 0.0
    %1100 = vmatprep.mubr.f32.mxu0 0.0
    %v1101 = vand.u32 %v620, 4294901760
    %1102 = vmatmul.mubr.f32.gmra.mrb[0].mxu0 %v1101
    %v1103 = vpop.f32.mrb[0].mxu0
    %v1104 = vadd.f32 %v1029, %v1103
    %v1105 = vpop.f32.mrb[0].mxu0
    %1106 = vdwg.mxu0
    %v1107 = vadd.f32 %v1104, 0.0
    %v1108 = vadd.f32 %v1107, %v576
    %v1109 = vmul.f32 %v1108, 0.5
    %v1110 = vtanh.pop %v1109
    %v1111 = vmul.f32 %v1110, 0.5
    %v1112 = vadd.f32 %v1111, 0.5
    %v1113 = vadd.f32 %v1104, %v586
    %1115 = vrot.lane.b32.xlu0 %v1113, 64
    %v1116 = vpop.permute.xlu0 %1115
    %v1118 = vmul.f32 %v1112, %v1116
    %1120 = vrot.lane.b32.xlu0 %v1118, 64
    %v1121 = vpop.permute.xlu0 %1120
    %v1123 = vadd.f32 %v598, %v1121
    %v1124 = vtanh.pop %v1123
    %v1125 = vsub.f32 %v616, %v1124
    %1127 = vrot.lane.b32.xlu0 %v1125, 96
    %v1128 = vpop.permute.xlu0 %1127
    %v1130 = vmul.f32 %v1112, %v1128
    %1132 = vrot.lane.b32.xlu0 %v1130, 32
    %v1133 = vpop.permute.xlu0 %1132
    %v1135 = vadd.f32 %v1124, %v1133
    %1137 = vrot.lane.b32.xlu0 %v1135, 64
    %v1138 = vpop.permute.xlu0 %1137
    %v1139 = vsel %vm83, %v1138, 0
    %1141 = vmatprep.subr.mxu0 0.0
    %v1142 = vand.u32 %v41, 4294901760
    %1143 = vmatpush1.msra.mxu0 %v1142
    %1144 = vmatprep.subr.mxu0 0.0
    %v1145 = vand.u32 %v42, 4294901760
    %1146 = vmatpush1.msra.mxu0 %v1145
    %1147 = vmatprep.subr.mxu0 0.0
    %v1148 = vand.u32 %v43, 4294901760
    %1149 = vmatpush1.msra.mxu0 %v1148
    %1150 = vmatprep.subr.mxu0 0.0
    %v1151 = vand.u32 %v44, 4294901760
    %1152 = vmatpush1.msra.mxu0 %v1151
    %1153 = vmatprep.subr.mxu0 0.0
    %1154 = vmatpush1.msra.mxu0 0.0
    %1155 = vmatprep.subr.mxu0 0.0
    %1156 = vmatpush1.msra.mxu0 0.0
    %1157 = vmatprep.subr.mxu0 0.0
    %1158 = vmatpush1.msra.mxu0 0.0
    %1159 = vmatprep.subr.mxu0 0.0
    %1160 = vmatpush1.msra.mxu0 0.0
    %1161 = vmatprep.subr.mxu0 0.0
    %1162 = vmatpush1.msra.mxu0 0.0
    %1163 = vmatprep.subr.mxu0 0.0
    %1164 = vmatpush1.msra.mxu0 0.0
    %1165 = vmatprep.subr.mxu0 0.0
    %1166 = vmatpush1.msra.mxu0 0.0
    %1167 = vmatprep.subr.mxu0 0.0
    %1168 = vmatpush1.msra.mxu0 0.0
    %1169 = vmatprep.subr.mxu0 0.0
    %1170 = vmatpush1.msra.mxu0 0.0
    %1171 = vmatprep.subr.mxu0 0.0
    %1172 = vmatpush1.msra.mxu0 0.0
    %1173 = vmatprep.subr.mxu0 0.0
    %1174 = vmatpush1.msra.mxu0 0.0
    %1175 = vmatprep.subr.mxu0 0.0
    %1176 = vmatpush1.msra.mxu0 0.0
    %1177 = vmatprep.subr.mxu0 0.0
    %1178 = vmatpush1.msra.mxu0 0.0
    %1179 = vmatprep.subr.mxu0 0.0
    %1180 = vmatpush1.msra.mxu0 0.0
    %1181 = vmatprep.subr.mxu0 0.0
    %1182 = vmatpush1.msra.mxu0 0.0
    %1183 = vmatprep.subr.mxu0 0.0
    %1184 = vmatpush1.msra.mxu0 0.0
    %1185 = vmatprep.subr.mxu0 0.0
    %1186 = vmatpush1.msra.mxu0 0.0
    %1187 = vmatprep.subr.mxu0 0.0
    %1188 = vmatpush1.msra.mxu0 0.0
    %1189 = vmatprep.subr.mxu0 0.0
    %1190 = vmatpush1.msra.mxu0 0.0
    %1191 = vmatprep.subr.mxu0 0.0
    %1192 = vmatpush1.msra.mxu0 0.0
    %1193 = vmatprep.subr.mxu0 0.0
    %1194 = vmatpush1.msra.mxu0 0.0
    %1195 = vmatprep.subr.mxu0 0.0
    %1196 = vmatpush1.msra.mxu0 0.0
    %1197 = vmatprep.subr.mxu0 0.0
    %1198 = vmatpush1.msra.mxu0 0.0
    %1199 = vmatprep.subr.mxu0 0.0
    %1200 = vmatpush1.msra.mxu0 0.0
    %1201 = vmatprep.subr.mxu0 0.0
    %1202 = vmatpush1.msra.mxu0 0.0
    %1203 = vmatprep.subr.mxu0 0.0
    %1204 = vmatpush1.msra.mxu0 0.0
    %1205 = vmatprep.subr.mxu0 0.0
    %1206 = vmatpush1.msra.mxu0 0.0
    %1207 = vmatprep.subr.mxu0 0.0
    %1208 = vmatpush1.msra.mxu0 0.0
    %1209 = vmatprep.mubr.f32.mxu0 0.0
    %v1210 = vand.u32 %v1139, 4294901760
    %v1211 = vsub.f32 %v1139, %v1210
    %v1212 = vand.u32 %v1211, 4294901760
    %v1213 = vsub.f32 %v1211, %v1212
    %v1214 = vand.u32 %v1213, 4294901760
    %1215 = vmatmul.mubr.f32.gmra.mrb[0].mxu0 %v1214
    %v1216 = vpop.f32.mrb[0].mxu0
    %v1217 = vadd.f32 0.0, %v1216
    %v1218 = vpop.f32.mrb[0].mxu0
    %1219 = vdwg.mxu0
    %1220 = vmatprep.subr.mxu0 0.0
    %v1221 = vand.u32 %v41, 4294901760
    %v1222 = vsub.f32 %v41, %v1221
    %v1223 = vand.u32 %v1222, 4294901760
    %v1224 = vsub.f32 %v1222, %v1223
    %v1225 = vand.u32 %v1224, 4294901760
    %1226 = vmatpush1.msra.mxu0 %v1225
    %1227 = vmatprep.subr.mxu0 0.0
    %v1228 = vand.u32 %v42, 4294901760
    %v1229 = vsub.f32 %v42, %v1228
    %v1230 = vand.u32 %v1229, 4294901760
    %v1231 = vsub.f32 %v1229, %v1230
    %v1232 = vand.u32 %v1231, 4294901760
    %1233 = vmatpush1.msra.mxu0 %v1232
    %1234 = vmatprep.subr.mxu0 0.0
    %v1235 = vand.u32 %v43, 4294901760
    %v1236 = vsub.f32 %v43, %v1235
    %v1237 = vand.u32 %v1236, 4294901760
    %v1238 = vsub.f32 %v1236, %v1237
    %v1239 = vand.u32 %v1238, 4294901760
    %1240 = vmatpush1.msra.mxu0 %v1239
    %1241 = vmatprep.subr.mxu0 0.0
    %v1242 = vand.u32 %v44, 4294901760
    %v1243 = vsub.f32 %v44, %v1242
    %v1244 = vand.u32 %v1243, 4294901760
    %v1245 = vsub.f32 %v1243, %v1244
    %v1246 = vand.u32 %v1245, 4294901760
    %1247 = vmatpush1.msra.mxu0 %v1246
    %1248 = vmatprep.subr.mxu0 0.0
    %1249 = vmatpush1.msra.mxu0 0.0
    %1250 = vmatprep.subr.mxu0 0.0
    %1251 = vmatpush1.msra.mxu0 0.0
    %1252 = vmatprep.subr.mxu0 0.0
    %1253 = vmatpush1.msra.mxu0 0.0
    %1254 = vmatprep.subr.mxu0 0.0
    %1255 = vmatpush1.msra.mxu0 0.0
    %1256 = vmatprep.subr.mxu0 0.0
    %1257 = vmatpush1.msra.mxu0 0.0
    %1258 = vmatprep.subr.mxu0 0.0
    %1259 = vmatpush1.msra.mxu0 0.0
    %1260 = vmatprep.subr.mxu0 0.0
    %1261 = vmatpush1.msra.mxu0 0.0
    %1262 = vmatprep.subr.mxu0 0.0
    %1263 = vmatpush1.msra.mxu0 0.0
    %1264 = vmatprep.subr.mxu0 0.0
    %1265 = vmatpush1.msra.mxu0 0.0
    %1266 = vmatprep.subr.mxu0 0.0
    %1267 = vmatpush1.msra.mxu0 0.0
    %1268 = vmatprep.subr.mxu0 0.0
    %1269 = vmatpush1.msra.mxu0 0.0
    %1270 = vmatprep.subr.mxu0 0.0
    %1271 = vmatpush1.msra.mxu0 0.0
    %1272 = vmatprep.subr.mxu0 0.0
    %1273 = vmatpush1.msra.mxu0 0.0
    %1274 = vmatprep.subr.mxu0 0.0
    %1275 = vmatpush1.msra.mxu0 0.0
    %1276 = vmatprep.subr.mxu0 0.0
    %1277 = vmatpush1.msra.mxu0 0.0
    %1278 = vmatprep.subr.mxu0 0.0
    %1279 = vmatpush1.msra.mxu0 0.0
    %1280 = vmatprep.subr.mxu0 0.0
    %1281 = vmatpush1.msra.mxu0 0.0
    %1282 = vmatprep.subr.mxu0 0.0
    %1283 = vmatpush1.msra.mxu0 0.0
    %1284 = vmatprep.subr.mxu0 0.0
    %1285 = vmatpush1.msra.mxu0 0.0
    %1286 = vmatprep.subr.mxu0 0.0
    %1287 = vmatpush1.msra.mxu0 0.0
    %1288 = vmatprep.subr.mxu0 0.0
    %1289 = vmatpush1.msra.mxu0 0.0
    %1290 = vmatprep.subr.mxu0 0.0
    %1291 = vmatpush1.msra.mxu0 0.0
    %1292 = vmatprep.subr.mxu0 0.0
    %1293 = vmatpush1.msra.mxu0 0.0
    %1294 = vmatprep.subr.mxu0 0.0
    %1295 = vmatpush1.msra.mxu0 0.0
    %1296 = vmatprep.subr.mxu0 0.0
    %1297 = vmatpush1.msra.mxu0 0.0
    %1298 = vmatprep.subr.mxu0 0.0
    %1299 = vmatpush1.msra.mxu0 0.0
    %1300 = vmatprep.subr.mxu0 0.0
    %1301 = vmatpush1.msra.mxu0 0.0
    %1302 = vmatprep.subr.mxu0 0.0
    %1303 = vmatpush1.msra.mxu0 0.0
    %1304 = vmatprep.mubr.f32.mxu0 0.0
    %v1305 = vand.u32 %v1139, 4294901760
    %1306 = vmatmul.mubr.f32.gmra.mrb[0].mxu0 %v1305
    %v1307 = vpop.f32.mrb[0].mxu0
    %v1308 = vadd.f32 %v1217, %v1307
    %v1309 = vpop.f32.mrb[0].mxu0
    %1310 = vdwg.mxu0
    %1311 = vmatprep.subr.mxu0 0.0
    %v1312 = vand.u32 %v41, 4294901760
    %v1313 = vsub.f32 %v41, %v1312
    %1314 = vmatpush1.msra.mxu0 %v1313
    %1315 = vmatprep.subr.mxu0 0.0
    %v1316 = vand.u32 %v42, 4294901760
    %v1317 = vsub.f32 %v42, %v1316
    %1318 = vmatpush1.msra.mxu0 %v1317
    %1319 = vmatprep.subr.mxu0 0.0
    %v1320 = vand.u32 %v43, 4294901760
    %v1321 = vsub.f32 %v43, %v1320
    %1322 = vmatpush1.msra.mxu0 %v1321
    %1323 = vmatprep.subr.mxu0 0.0
    %v1324 = vand.u32 %v44, 4294901760
    %v1325 = vsub.f32 %v44, %v1324
    %1326 = vmatpush1.msra.mxu0 %v1325
    %1327 = vmatprep.subr.mxu0 0.0
    %1328 = vmatpush1.msra.mxu0 0.0
    %1329 = vmatprep.subr.mxu0 0.0
    %1330 = vmatpush1.msra.mxu0 0.0
    %1331 = vmatprep.subr.mxu0 0.0
    %1332 = vmatpush1.msra.mxu0 0.0
    %1333 = vmatprep.subr.mxu0 0.0
    %1334 = vmatpush1.msra.mxu0 0.0
    %1335 = vmatprep.subr.mxu0 0.0
    %1336 = vmatpush1.msra.mxu0 0.0
    %1337 = vmatprep.subr.mxu0 0.0
    %1338 = vmatpush1.msra.mxu0 0.0
    %1339 = vmatprep.subr.mxu0 0.0
    %1340 = vmatpush1.msra.mxu0 0.0
    %1341 = vmatprep.subr.mxu0 0.0
    %1342 = vmatpush1.msra.mxu0 0.0
    %1343 = vmatprep.subr.mxu0 0.0
    %1344 = vmatpush1.msra.mxu0 0.0
    %1345 = vmatprep.subr.mxu0 0.0
    %1346 = vmatpush1.msra.mxu0 0.0
    %1347 = vmatprep.subr.mxu0 0.0
    %1348 = vmatpush1.msra.mxu0 0.0
    %1349 = vmatprep.subr.mxu0 0.0
    %1350 = vmatpush1.msra.mxu0 0.0
    %1351 = vmatprep.subr.mxu0 0.0
    %1352 = vmatpush1.msra.mxu0 0.0
    %1353 = vmatprep.subr.mxu0 0.0
    %1354 = vmatpush1.msra.mxu0 0.0
    %1355 = vmatprep.subr.mxu0 0.0
    %1356 = vmatpush1.msra.mxu0 0.0
    %1357 = vmatprep.subr.mxu0 0.0
    %1358 = vmatpush1.msra.mxu0 0.0
    %1359 = vmatprep.subr.mxu0 0.0
    %1360 = vmatpush1.msra.mxu0 0.0
    %1361 = vmatprep.subr.mxu0 0.0
    %1362 = vmatpush1.msra.mxu0 0.0
    %1363 = vmatprep.subr.mxu0 0.0
    %1364 = vmatpush1.msra.mxu0 0.0
    %1365 = vmatprep.subr.mxu0 0.0
    %1366 = vmatpush1.msra.mxu0 0.0
    %1367 = vmatprep.subr.mxu0 0.0
    %1368 = vmatpush1.msra.mxu0 0.0
    %1369 = vmatprep.subr.mxu0 0.0
    %1370 = vmatpush1.msra.mxu0 0.0
    %1371 = vmatprep.subr.mxu0 0.0
    %1372 = vmatpush1.msra.mxu0 0.0
    %1373 = vmatprep.subr.mxu0 0.0
    %1374 = vmatpush1.msra.mxu0 0.0
    %1375 = vmatprep.subr.mxu0 0.0
    %1376 = vmatpush1.msra.mxu0 0.0
    %1377 = vmatprep.subr.mxu0 0.0
    %1378 = vmatpush1.msra.mxu0 0.0
    %1379 = vmatprep.subr.mxu0 0.0
    %1380 = vmatpush1.msra.mxu0 0.0
    %1381 = vmatprep.subr.mxu0 0.0
    %1382 = vmatpush1.msra.mxu0 0.0
    %1383 = vmatprep.mubr.f32.mxu0 0.0
    %v1384 = vand.u32 %v1139, 4294901760
    %v1385 = vsub.f32 %v1139, %v1384
    %1386 = vmatmul.mubr.f32.gmra.mrb[0].mxu0 %v1385
    %v1387 = vpop.f32.mrb[0].mxu0
    %v1388 = vadd.f32 %v1308, %v1387
    %v1389 = vpop.f32.mrb[0].mxu0
    %1390 = vdwg.mxu0
    %1391 = vmatprep.subr.mxu0 0.0
    %v1392 = vand.u32 %v41, 4294901760
    %1393 = vmatpush1.msra.mxu0 %v1392
    %1394 = vmatprep.subr.mxu0 0.0
    %v1395 = vand.u32 %v42, 4294901760
    %1396 = vmatpush1.msra.mxu0 %v1395
    %1397 = vmatprep.subr.mxu0 0.0
    %v1398 = vand.u32 %v43, 4294901760
    %1399 = vmatpush1.msra.mxu0 %v1398
    %1400 = vmatprep.subr.mxu0 0.0
    %v1401 = vand.u32 %v44, 4294901760
    %1402 = vmatpush1.msra.mxu0 %v1401
    %1403 = vmatprep.subr.mxu0 0.0
    %1404 = vmatpush1.msra.mxu0 0.0
    %1405 = vmatprep.subr.mxu0 0.0
    %1406 = vmatpush1.msra.mxu0 0.0
    %1407 = vmatprep.subr.mxu0 0.0
    %1408 = vmatpush1.msra.mxu0 0.0
    %1409 = vmatprep.subr.mxu0 0.0
    %1410 = vmatpush1.msra.mxu0 0.0
    %1411 = vmatprep.subr.mxu0 0.0
    %1412 = vmatpush1.msra.mxu0 0.0
    %1413 = vmatprep.subr.mxu0 0.0
    %1414 = vmatpush1.msra.mxu0 0.0
    %1415 = vmatprep.subr.mxu0 0.0
    %1416 = vmatpush1.msra.mxu0 0.0
    %1417 = vmatprep.subr.mxu0 0.0
    %1418 = vmatpush1.msra.mxu0 0.0
    %1419 = vmatprep.subr.mxu0 0.0
    %1420 = vmatpush1.msra.mxu0 0.0
    %1421 = vmatprep.subr.mxu0 0.0
    %1422 = vmatpush1.msra.mxu0 0.0
    %1423 = vmatprep.subr.mxu0 0.0
    %1424 = vmatpush1.msra.mxu0 0.0
    %1425 = vmatprep.subr.mxu0 0.0
    %1426 = vmatpush1.msra.mxu0 0.0
    %1427 = vmatprep.subr.mxu0 0.0
    %1428 = vmatpush1.msra.mxu0 0.0
    %1429 = vmatprep.subr.mxu0 0.0
    %1430 = vmatpush1.msra.mxu0 0.0
    %1431 = vmatprep.subr.mxu0 0.0
    %1432 = vmatpush1.msra.mxu0 0.0
    %1433 = vmatprep.subr.mxu0 0.0
    %1434 = vmatpush1.msra.mxu0 0.0
    %1435 = vmatprep.subr.mxu0 0.0
    %1436 = vmatpush1.msra.mxu0 0.0
    %1437 = vmatprep.subr.mxu0 0.0
    %1438 = vmatpush1.msra.mxu0 0.0
    %1439 = vmatprep.subr.mxu0 0.0
    %1440 = vmatpush1.msra.mxu0 0.0
    %1441 = vmatprep.subr.mxu0 0.0
    %1442 = vmatpush1.msra.mxu0 0.0
    %1443 = vmatprep.subr.mxu0 0.0
    %1444 = vmatpush1.msra.mxu0 0.0
    %1445 = vmatprep.subr.mxu0 0.0
    %1446 = vmatpush1.msra.mxu0 0.0
    %1447 = vmatprep.subr.mxu0 0.0
    %1448 = vmatpush1.msra.mxu0 0.0
    %1449 = vmatprep.subr.mxu0 0.0
    %1450 = vmatpush1.msra.mxu0 0.0
    %1451 = vmatprep.subr.mxu0 0.0
    %1452 = vmatpush1.msra.mxu0 0.0
    %1453 = vmatprep.subr.mxu0 0.0
    %1454 = vmatpush1.msra.mxu0 0.0
    %1455 = vmatprep.subr.mxu0 0.0
    %1456 = vmatpush1.msra.mxu0 0.0
    %1457 = vmatprep.subr.mxu0 0.0
    %1458 = vmatpush1.msra.mxu0 0.0
    %1459 = vmatprep.mubr.f32.mxu0 0.0
    %v1460 = vand.u32 %v1139, 4294901760
    %v1461 = vsub.f32 %v1139, %v1460
    %v1462 = vand.u32 %v1461, 4294901760
    %1463 = vmatmul.mubr.f32.gmra.mrb[0].mxu0 %v1462
    %v1464 = vpop.f32.mrb[0].mxu0
    %v1465 = vadd.f32 %v1388, %v1464
    %v1466 = vpop.f32.mrb[0].mxu0
    %1467 = vdwg.mxu0
    %1468 = vmatprep.subr.mxu0 0.0
    %v1469 = vand.u32 %v41, 4294901760
    %v1470 = vsub.f32 %v41, %v1469
    %v1471 = vand.u32 %v1470, 4294901760
    %1472 = vmatpush1.msra.mxu0 %v1471
    %1473 = vmatprep.subr.mxu0 0.0
    %v1474 = vand.u32 %v42, 4294901760
    %v1475 = vsub.f32 %v42, %v1474
    %v1476 = vand.u32 %v1475, 4294901760
    %1477 = vmatpush1.msra.mxu0 %v1476
    %1478 = vmatprep.subr.mxu0 0.0
    %v1479 = vand.u32 %v43, 4294901760
    %v1480 = vsub.f32 %v43, %v1479
    %v1481 = vand.u32 %v1480, 4294901760
    %1482 = vmatpush1.msra.mxu0 %v1481
    %1483 = vmatprep.subr.mxu0 0.0
    %v1484 = vand.u32 %v44, 4294901760
    %v1485 = vsub.f32 %v44, %v1484
    %v1486 = vand.u32 %v1485, 4294901760
    %1487 = vmatpush1.msra.mxu0 %v1486
    %1488 = vmatprep.subr.mxu0 0.0
    %1489 = vmatpush1.msra.mxu0 0.0
    %1490 = vmatprep.subr.mxu0 0.0
    %1491 = vmatpush1.msra.mxu0 0.0
    %1492 = vmatprep.subr.mxu0 0.0
    %1493 = vmatpush1.msra.mxu0 0.0
    %1494 = vmatprep.subr.mxu0 0.0
    %1495 = vmatpush1.msra.mxu0 0.0
    %1496 = vmatprep.subr.mxu0 0.0
    %1497 = vmatpush1.msra.mxu0 0.0
    %1498 = vmatprep.subr.mxu0 0.0
    %1499 = vmatpush1.msra.mxu0 0.0
    %1500 = vmatprep.subr.mxu0 0.0
    %1501 = vmatpush1.msra.mxu0 0.0
    %1502 = vmatprep.subr.mxu0 0.0
    %1503 = vmatpush1.msra.mxu0 0.0
    %1504 = vmatprep.subr.mxu0 0.0
    %1505 = vmatpush1.msra.mxu0 0.0
    %1506 = vmatprep.subr.mxu0 0.0
    %1507 = vmatpush1.msra.mxu0 0.0
    %1508 = vmatprep.subr.mxu0 0.0
    %1509 = vmatpush1.msra.mxu0 0.0
    %1510 = vmatprep.subr.mxu0 0.0
    %1511 = vmatpush1.msra.mxu0 0.0
    %1512 = vmatprep.subr.mxu0 0.0
    %1513 = vmatpush1.msra.mxu0 0.0
    %1514 = vmatprep.subr.mxu0 0.0
    %1515 = vmatpush1.msra.mxu0 0.0
    %1516 = vmatprep.subr.mxu0 0.0
    %1517 = vmatpush1.msra.mxu0 0.0
    %1518 = vmatprep.subr.mxu0 0.0
    %1519 = vmatpush1.msra.mxu0 0.0
    %1520 = vmatprep.subr.mxu0 0.0
    %1521 = vmatpush1.msra.mxu0 0.0
    %1522 = vmatprep.subr.mxu0 0.0
    %1523 = vmatpush1.msra.mxu0 0.0
    %1524 = vmatprep.subr.mxu0 0.0
    %1525 = vmatpush1.msra.mxu0 0.0
    %1526 = vmatprep.subr.mxu0 0.0
    %1527 = vmatpush1.msra.mxu0 0.0
    %1528 = vmatprep.subr.mxu0 0.0
    %1529 = vmatpush1.msra.mxu0 0.0
    %1530 = vmatprep.subr.mxu0 0.0
    %1531 = vmatpush1.msra.mxu0 0.0
    %1532 = vmatprep.subr.mxu0 0.0
    %1533 = vmatpush1.msra.mxu0 0.0
    %1534 = vmatprep.subr.mxu0 0.0
    %1535 = vmatpush1.msra.mxu0 0.0
    %1536 = vmatprep.subr.mxu0 0.0
    %1537 = vmatpush1.msra.mxu0 0.0
    %1538 = vmatprep.subr.mxu0 0.0
    %1539 = vmatpush1.msra.mxu0 0.0
    %1540 = vmatprep.subr.mxu0 0.0
    %1541 = vmatpush1.msra.mxu0 0.0
    %1542 = vmatprep.subr.mxu0 0.0
    %1543 = vmatpush1.msra.mxu0 0.0
    %1544 = vmatprep.mubr.f32.mxu0 0.0
    %v1545 = vand.u32 %v1139, 4294901760
    %1546 = vmatmul.mubr.f32.gmra.mrb[0].mxu0 %v1545
    %v1547 = vpop.f32.mrb[0].mxu0
    %v1548 = vadd.f32 %v1465, %v1547
    %v1549 = vpop.f32.mrb[0].mxu0
    %1550 = vdwg.mxu0
    %1551 = vmatprep.subr.mxu0 0.0
    %v1552 = vand.u32 %v41, 4294901760
    %1553 = vmatpush1.msra.mxu0 %v1552
    %1554 = vmatprep.subr.mxu0 0.0
    %v1555 = vand.u32 %v42, 4294901760
    %1556 = vmatpush1.msra.mxu0 %v1555
    %1557 = vmatprep.subr.mxu0 0.0
    %v1558 = vand.u32 %v43, 4294901760
    %1559 = vmatpush1.msra.mxu0 %v1558
    %1560 = vmatprep.subr.mxu0 0.0
    %v1561 = vand.u32 %v44, 4294901760
    %1562 = vmatpush1.msra.mxu0 %v1561
    %1563 = vmatprep.subr.mxu0 0.0
    %1564 = vmatpush1.msra.mxu0 0.0
    %1565 = vmatprep.subr.mxu0 0.0
    %1566 = vmatpush1.msra.mxu0 0.0
    %1567 = vmatprep.subr.mxu0 0.0
    %1568 = vmatpush1.msra.mxu0 0.0
    %1569 = vmatprep.subr.mxu0 0.0
    %1570 = vmatpush1.msra.mxu0 0.0
    %1571 = vmatprep.subr.mxu0 0.0
    %1572 = vmatpush1.msra.mxu0 0.0
    %1573 = vmatprep.subr.mxu0 0.0
    %1574 = vmatpush1.msra.mxu0 0.0
    %1575 = vmatprep.subr.mxu0 0.0
    %1576 = vmatpush1.msra.mxu0 0.0
    %1577 = vmatprep.subr.mxu0 0.0
    %1578 = vmatpush1.msra.mxu0 0.0
    %1579 = vmatprep.subr.mxu0 0.0
    %1580 = vmatpush1.msra.mxu0 0.0
    %1581 = vmatprep.subr.mxu0 0.0
    %1582 = vmatpush1.msra.mxu0 0.0
    %1583 = vmatprep.subr.mxu0 0.0
    %1584 = vmatpush1.msra.mxu0 0.0
    %1585 = vmatprep.subr.mxu0 0.0
    %1586 = vmatpush1.msra.mxu0 0.0
    %1587 = vmatprep.subr.mxu0 0.0
    %1588 = vmatpush1.msra.mxu0 0.0
    %1589 = vmatprep.subr.mxu0 0.0
    %1590 = vmatpush1.msra.mxu0 0.0
    %1591 = vmatprep.subr.mxu0 0.0
    %1592 = vmatpush1.msra.mxu0 0.0
    %1593 = vmatprep.subr.mxu0 0.0
    %1594 = vmatpush1.msra.mxu0 0.0
    %1595 = vmatprep.subr.mxu0 0.0
    %1596 = vmatpush1.msra.mxu0 0.0
    %1597 = vmatprep.subr.mxu0 0.0
    %1598 = vmatpush1.msra.mxu0 0.0
    %1599 = vmatprep.subr.mxu0 0.0
    %1600 = vmatpush1.msra.mxu0 0.0
    %1601 = vmatprep.subr.mxu0 0.0
    %1602 = vmatpush1.msra.mxu0 0.0
    %1603 = vmatprep.subr.mxu0 0.0
    %1604 = vmatpush1.msra.mxu0 0.0
    %1605 = vmatprep.subr.mxu0 0.0
    %1606 = vmatpush1.msra.mxu0 0.0
    %1607 = vmatprep.subr.mxu0 0.0
    %1608 = vmatpush1.msra.mxu0 0.0
    %1609 = vmatprep.subr.mxu0 0.0
    %1610 = vmatpush1.msra.mxu0 0.0
    %1611 = vmatprep.subr.mxu0 0.0
    %1612 = vmatpush1.msra.mxu0 0.0
    %1613 = vmatprep.subr.mxu0 0.0
    %1614 = vmatpush1.msra.mxu0 0.0
    %1615 = vmatprep.subr.mxu0 0.0
    %1616 = vmatpush1.msra.mxu0 0.0
    %1617 = vmatprep.subr.mxu0 0.0
    %1618 = vmatpush1.msra.mxu0 0.0
    %1619 = vmatprep.mubr.f32.mxu0 0.0
    %v1620 = vand.u32 %v1139, 4294901760
    %1621 = vmatmul.mubr.f32.gmra.mrb[0].mxu0 %v1620
    %v1622 = vpop.f32.mrb[0].mxu0
    %v1623 = vadd.f32 %v1548, %v1622
    %v1624 = vpop.f32.mrb[0].mxu0
    %1625 = vdwg.mxu0
    %v1626 = vadd.f32 %v1623, 0.0
    %v1627 = vadd.f32 %v1626, %v576
    %v1628 = vmul.f32 %v1627, 0.5
    %v1629 = vtanh.pop %v1628
    %v1630 = vmul.f32 %v1629, 0.5
    %v1631 = vadd.f32 %v1630, 0.5
    %v1632 = vadd.f32 %v1623, %v586
    %1634 = vrot.lane.b32.xlu0 %v1632, 64
    %v1635 = vpop.permute.xlu0 %1634
    %v1637 = vmul.f32 %v1631, %v1635
    %1639 = vrot.lane.b32.xlu0 %v1637, 64
    %v1640 = vpop.permute.xlu0 %1639
    %v1642 = vadd.f32 %v598, %v1640
    %v1643 = vtanh.pop %v1642
    %v1644 = vsub.f32 %v1135, %v1643
    %1646 = vrot.lane.b32.xlu0 %v1644, 96
    %v1647 = vpop.permute.xlu0 %1646
    %v1649 = vmul.f32 %v1631, %v1647
    %1651 = vrot.lane.b32.xlu0 %v1649, 32
    %v1652 = vpop.permute.xlu0 %1651
    %v1654 = vadd.f32 %v1643, %v1652
    %1656 = vrot.lane.b32.xlu0 %v1654, 64
    %v1657 = vpop.permute.xlu0 %1656
    %vm1659 = vcmask 254976
    %1660 = vst.msk [vmem:[#allocation6] sm:$0x3] %vm1659, %v1657
    %s1661 = scalar_lea.vmem [#allocation2], 32
    %v1662 = vld [vmem:[%s1661] sm:$0xff]
    %v1663 = vld [vmem:[%s1661 + $0x8] sm:$0xff]
    %v1664 = vld [vmem:[%s1661 + $0x10] sm:$0xff]
    %v1665 = vld [vmem:[%s1661 + $0x18] sm:$0xff]
    %s1666 = scalar_lea.vmem %s2, 1
    %v1667 = vld [vmem:[%s1666] sm:$0x1]
    %s1668 = scalar_lea.vmem %s3, 1
    %v1669 = vld [vmem:[%s1668] sm:$0x1]
    %v1670 = vadd.f32 %v1667, %v1669
    %v1671 = vrot.slane %v616, 6
    %v1673 = vrot.slane %v1135, 4
    %v1675 = vrot.slane %v1654, 2
    %vm1677 = vcmask 1041408
    %v1678 = vsel %vm1677, %v79, %v1671
    %vm1679 = vcmask 1043456
    %v1680 = vsel %vm1679, %v1678, %v1673
    %vm1681 = vcmask 1045504
    %v1682 = vsel %vm1681, %v1680, %v1675
    %v1683 = vld [vmem:[%s0] sm:$0xff]
    %v1684 = vld [vmem:[%s0 + $0x8] sm:$0xff]
    %v1685 = vld [vmem:[%s0 + $0x10] sm:$0xff]
    %v1686 = vld [vmem:[%s0 + $0x18] sm:$0xff]
    %1688 = vrot.lane.b32.xlu0 %v1682, 64
    %v1689 = vpop.permute.xlu0 %1688
    %v1690 = vsel %vm83, %v1689, 0
    %1692 = vmatprep.subr.mxu0 0.0
    %v1693 = vand.u32 %v1683, 4294901760
    %1694 = vmatpush1.msra.mxu0 %v1693
    %1695 = vmatprep.subr.mxu0 0.0
    %v1696 = vand.u32 %v1684, 4294901760
    %1697 = vmatpush1.msra.mxu0 %v1696
    %1698 = vmatprep.subr.mxu0 0.0
    %v1699 = vand.u32 %v1685, 4294901760
    %1700 = vmatpush1.msra.mxu0 %v1699
    %1701 = vmatprep.subr.mxu0 0.0
    %v1702 = vand.u32 %v1686, 4294901760
    %1703 = vmatpush1.msra.mxu0 %v1702
    %1704 = vmatprep.subr.mxu0 0.0
    %1705 = vmatpush1.msra.mxu0 0.0
    %1706 = vmatprep.subr.mxu0 0.0
    %1707 = vmatpush1.msra.mxu0 0.0
    %1708 = vmatprep.subr.mxu0 0.0
    %1709 = vmatpush1.msra.mxu0 0.0
    %1710 = vmatprep.subr.mxu0 0.0
    %1711 = vmatpush1.msra.mxu0 0.0
    %1712 = vmatprep.subr.mxu0 0.0
    %1713 = vmatpush1.msra.mxu0 0.0
    %1714 = vmatprep.subr.mxu0 0.0
    %1715 = vmatpush1.msra.mxu0 0.0
    %1716 = vmatprep.subr.mxu0 0.0
    %1717 = vmatpush1.msra.mxu0 0.0
    %1718 = vmatprep.subr.mxu0 0.0
    %1719 = vmatpush1.msra.mxu0 0.0
    %1720 = vmatprep.subr.mxu0 0.0
    %1721 = vmatpush1.msra.mxu0 0.0
    %1722 = vmatprep.subr.mxu0 0.0
    %1723 = vmatpush1.msra.mxu0 0.0
    %1724 = vmatprep.subr.mxu0 0.0
    %1725 = vmatpush1.msra.mxu0 0.0
    %1726 = vmatprep.subr.mxu0 0.0
    %1727 = vmatpush1.msra.mxu0 0.0
    %1728 = vmatprep.subr.mxu0 0.0
    %1729 = vmatpush1.msra.mxu0 0.0
    %1730 = vmatprep.subr.mxu0 0.0
    %1731 = vmatpush1.msra.mxu0 0.0
    %1732 = vmatprep.subr.mxu0 0.0
    %1733 = vmatpush1.msra.mxu0 0.0
    %1734 = vmatprep.subr.mxu0 0.0
    %1735 = vmatpush1.msra.mxu0 0.0
    %1736 = vmatprep.subr.mxu0 0.0
    %1737 = vmatpush1.msra.mxu0 0.0
    %1738 = vmatprep.subr.mxu0 0.0
    %1739 = vmatpush1.msra.mxu0 0.0
    %1740 = vmatprep.subr.mxu0 0.0
    %1741 = vmatpush1.msra.mxu0 0.0
    %1742 = vmatprep.subr.mxu0 0.0
    %1743 = vmatpush1.msra.mxu0 0.0
    %1744 = vmatprep.subr.mxu0 0.0
    %1745 = vmatpush1.msra.mxu0 0.0
    %1746 = vmatprep.subr.mxu0 0.0
    %1747 = vmatpush1.msra.mxu0 0.0
    %1748 = vmatprep.subr.mxu0 0.0
    %1749 = vmatpush1.msra.mxu0 0.0
    %1750 = vmatprep.subr.mxu0 0.0
    %1751 = vmatpush1.msra.mxu0 0.0
    %1752 = vmatprep.subr.mxu0 0.0
    %1753 = vmatpush1.msra.mxu0 0.0
    %1754 = vmatprep.subr.mxu0 0.0
    %1755 = vmatpush1.msra.mxu0 0.0
    %1756 = vmatprep.subr.mxu0 0.0
    %1757 = vmatpush1.msra.mxu0 0.0
    %1758 = vmatprep.subr.mxu0 0.0
    %1759 = vmatpush1.msra.mxu0 0.0
    %1760 = vmatprep.mubr.f32.mxu0 0.0
    %v1761 = vand.u32 %v1690, 4294901760
    %v1762 = vsub.f32 %v1690, %v1761
    %v1763 = vand.u32 %v1762, 4294901760
    %v1764 = vsub.f32 %v1762, %v1763
    %v1765 = vand.u32 %v1764, 4294901760
    %1766 = vmatmul.mubr.f32.gmra.mrb[0].mxu0 %v1765
    %v1767 = vpop.f32.mrb[0].mxu0
    %v1768 = vadd.f32 0.0, %v1767
    %v1769 = vpop.f32.mrb[0].mxu0
    %1770 = vdwg.mxu0
    %1771 = vmatprep.subr.mxu0 0.0
    %v1772 = vand.u32 %v1683, 4294901760
    %v1773 = vsub.f32 %v1683, %v1772
    %v1774 = vand.u32 %v1773, 4294901760
    %v1775 = vsub.f32 %v1773, %v1774
    %v1776 = vand.u32 %v1775, 4294901760
    %1777 = vmatpush1.msra.mxu0 %v1776
    %1778 = vmatprep.subr.mxu0 0.0
    %v1779 = vand.u32 %v1684, 4294901760
    %v1780 = vsub.f32 %v1684, %v1779
    %v1781 = vand.u32 %v1780, 4294901760
    %v1782 = vsub.f32 %v1780, %v1781
    %v1783 = vand.u32 %v1782, 4294901760
    %1784 = vmatpush1.msra.mxu0 %v1783
    %1785 = vmatprep.subr.mxu0 0.0
    %v1786 = vand.u32 %v1685, 4294901760
    %v1787 = vsub.f32 %v1685, %v1786
    %v1788 = vand.u32 %v1787, 4294901760
    %v1789 = vsub.f32 %v1787, %v1788
    %v1790 = vand.u32 %v1789, 4294901760
    %1791 = vmatpush1.msra.mxu0 %v1790
    %1792 = vmatprep.subr.mxu0 0.0
    %v1793 = vand.u32 %v1686, 4294901760
    %v1794 = vsub.f32 %v1686, %v1793
    %v1795 = vand.u32 %v1794, 4294901760
    %v1796 = vsub.f32 %v1794, %v1795
    %v1797 = vand.u32 %v1796, 4294901760
    %1798 = vmatpush1.msra.mxu0 %v1797
    %1799 = vmatprep.subr.mxu0 0.0
    %1800 = vmatpush1.msra.mxu0 0.0
    %1801 = vmatprep.subr.mxu0 0.0
    %1802 = vmatpush1.msra.mxu0 0.0
    %1803 = vmatprep.subr.mxu0 0.0
    %1804 = vmatpush1.msra.mxu0 0.0
    %1805 = vmatprep.subr.mxu0 0.0
    %1806 = vmatpush1.msra.mxu0 0.0
    %1807 = vmatprep.subr.mxu0 0.0
    %1808 = vmatpush1.msra.mxu0 0.0
    %1809 = vmatprep.subr.mxu0 0.0
    %1810 = vmatpush1.msra.mxu0 0.0
    %1811 = vmatprep.subr.mxu0 0.0
    %1812 = vmatpush1.msra.mxu0 0.0
    %1813 = vmatprep.subr.mxu0 0.0
    %1814 = vmatpush1.msra.mxu0 0.0
    %1815 = vmatprep.subr.mxu0 0.0
    %1816 = vmatpush1.msra.mxu0 0.0
    %1817 = vmatprep.subr.mxu0 0.0
    %1818 = vmatpush1.msra.mxu0 0.0
    %1819 = vmatprep.subr.mxu0 0.0
    %1820 = vmatpush1.msra.mxu0 0.0
    %1821 = vmatprep.subr.mxu0 0.0
    %1822 = vmatpush1.msra.mxu0 0.0
    %1823 = vmatprep.subr.mxu0 0.0
    %1824 = vmatpush1.msra.mxu0 0.0
    %1825 = vmatprep.subr.mxu0 0.0
    %1826 = vmatpush1.msra.mxu0 0.0
    %1827 = vmatprep.subr.mxu0 0.0
    %1828 = vmatpush1.msra.mxu0 0.0
    %1829 = vmatprep.subr.mxu0 0.0
    %1830 = vmatpush1.msra.mxu0 0.0
    %1831 = vmatprep.subr.mxu0 0.0
    %1832 = vmatpush1.msra.mxu0 0.0
    %1833 = vmatprep.subr.mxu0 0.0
    %1834 = vmatpush1.msra.mxu0 0.0
    %1835 = vmatprep.subr.mxu0 0.0
    %1836 = vmatpush1.msra.mxu0 0.0
    %1837 = vmatprep.subr.mxu0 0.0
    %1838 = vmatpush1.msra.mxu0 0.0
    %1839 = vmatprep.subr.mxu0 0.0
    %1840 = vmatpush1.msra.mxu0 0.0
    %1841 = vmatprep.subr.mxu0 0.0
    %1842 = vmatpush1.msra.mxu0 0.0
    %1843 = vmatprep.subr.mxu0 0.0
    %1844 = vmatpush1.msra.mxu0 0.0
    %1845 = vmatprep.subr.mxu0 0.0
    %1846 = vmatpush1.msra.mxu0 0.0
    %1847 = vmatprep.subr.mxu0 0.0
    %1848 = vmatpush1.msra.mxu0 0.0
    %1849 = vmatprep.subr.mxu0 0.0
    %1850 = vmatpush1.msra.mxu0 0.0
    %1851 = vmatprep.subr.mxu0 0.0
    %1852 = vmatpush1.msra.mxu0 0.0
    %1853 = vmatprep.subr.mxu0 0.0
    %1854 = vmatpush1.msra.mxu0 0.0
    %1855 = vmatprep.mubr.f32.mxu0 0.0
    %v1856 = vand.u32 %v1690, 4294901760
    %1857 = vmatmul.mubr.f32.gmra.mrb[0].mxu0 %v1856
    %v1858 = vpop.f32.mrb[0].mxu0
    %v1859 = vadd.f32 %v1768, %v1858
    %v1860 = vpop.f32.mrb[0].mxu0
    %1861 = vdwg.mxu0
    %1862 = vmatprep.subr.mxu0 0.0
    %v1863 = vand.u32 %v1683, 4294901760
    %v1864 = vsub.f32 %v1683, %v1863
    %1865 = vmatpush1.msra.mxu0 %v1864
    %1866 = vmatprep.subr.mxu0 0.0
    %v1867 = vand.u32 %v1684, 4294901760
    %v1868 = vsub.f32 %v1684, %v1867
    %1869 = vmatpush1.msra.mxu0 %v1868
    %1870 = vmatprep.subr.mxu0 0.0
    %v1871 = vand.u32 %v1685, 4294901760
    %v1872 = vsub.f32 %v1685, %v1871
    %1873 = vmatpush1.msra.mxu0 %v1872
    %1874 = vmatprep.subr.mxu0 0.0
    %v1875 = vand.u32 %v1686, 4294901760
    %v1876 = vsub.f32 %v1686, %v1875
    %1877 = vmatpush1.msra.mxu0 %v1876
    %1878 = vmatprep.subr.mxu0 0.0
    %1879 = vmatpush1.msra.mxu0 0.0
    %1880 = vmatprep.subr.mxu0 0.0
    %1881 = vmatpush1.msra.mxu0 0.0
    %1882 = vmatprep.subr.mxu0 0.0
    %1883 = vmatpush1.msra.mxu0 0.0
    %1884 = vmatprep.subr.mxu0 0.0
    %1885 = vmatpush1.msra.mxu0 0.0
    %1886 = vmatprep.subr.mxu0 0.0
    %1887 = vmatpush1.msra.mxu0 0.0
    %1888 = vmatprep.subr.mxu0 0.0
    %1889 = vmatpush1.msra.mxu0 0.0
    %1890 = vmatprep.subr.mxu0 0.0
    %1891 = vmatpush1.msra.mxu0 0.0
    %1892 = vmatprep.subr.mxu0 0.0
    %1893 = vmatpush1.msra.mxu0 0.0
    %1894 = vmatprep.subr.mxu0 0.0
    %1895 = vmatpush1.msra.mxu0 0.0
    %1896 = vmatprep.subr.mxu0 0.0
    %1897 = vmatpush1.msra.mxu0 0.0
    %1898 = vmatprep.subr.mxu0 0.0
    %1899 = vmatpush1.msra.mxu0 0.0
    %1900 = vmatprep.subr.mxu0 0.0
    %1901 = vmatpush1.msra.mxu0 0.0
    %1902 = vmatprep.subr.mxu0 0.0
    %1903 = vmatpush1.msra.mxu0 0.0
    %1904 = vmatprep.subr.mxu0 0.0
    %1905 = vmatpush1.msra.mxu0 0.0
    %1906 = vmatprep.subr.mxu0 0.0
    %1907 = vmatpush1.msra.mxu0 0.0
    %1908 = vmatprep.subr.mxu0 0.0
    %1909 = vmatpush1.msra.mxu0 0.0
    %1910 = vmatprep.subr.mxu0 0.0
    %1911 = vmatpush1.msra.mxu0 0.0
    %1912 = vmatprep.subr.mxu0 0.0
    %1913 = vmatpush1.msra.mxu0 0.0
    %1914 = vmatprep.subr.mxu0 0.0
    %1915 = vmatpush1.msra.mxu0 0.0
    %1916 = vmatprep.subr.mxu0 0.0
    %1917 = vmatpush1.msra.mxu0 0.0
    %1918 = vmatprep.subr.mxu0 0.0
    %1919 = vmatpush1.msra.mxu0 0.0
    %1920 = vmatprep.subr.mxu0 0.0
    %1921 = vmatpush1.msra.mxu0 0.0
    %1922 = vmatprep.subr.mxu0 0.0
    %1923 = vmatpush1.msra.mxu0 0.0
    %1924 = vmatprep.subr.mxu0 0.0
    %1925 = vmatpush1.msra.mxu0 0.0
    %1926 = vmatprep.subr.mxu0 0.0
    %1927 = vmatpush1.msra.mxu0 0.0
    %1928 = vmatprep.subr.mxu0 0.0
    %1929 = vmatpush1.msra.mxu0 0.0
    %1930 = vmatprep.subr.mxu0 0.0
    %1931 = vmatpush1.msra.mxu0 0.0
    %1932 = vmatprep.subr.mxu0 0.0
    %1933 = vmatpush1.msra.mxu0 0.0
    %1934 = vmatprep.mubr.f32.mxu0 0.0
    %v1935 = vand.u32 %v1690, 4294901760
    %v1936 = vsub.f32 %v1690, %v1935
    %1937 = vmatmul.mubr.f32.gmra.mrb[0].mxu0 %v1936
    %v1938 = vpop.f32.mrb[0].mxu0
    %v1939 = vadd.f32 %v1859, %v1938
    %v1940 = vpop.f32.mrb[0].mxu0
    %1941 = vdwg.mxu0
    %1942 = vmatprep.subr.mxu0 0.0
    %v1943 = vand.u32 %v1683, 4294901760
    %1944 = vmatpush1.msra.mxu0 %v1943
    %1945 = vmatprep.subr.mxu0 0.0
    %v1946 = vand.u32 %v1684, 4294901760
    %1947 = vmatpush1.msra.mxu0 %v1946
    %1948 = vmatprep.subr.mxu0 0.0
    %v1949 = vand.u32 %v1685, 4294901760
    %1950 = vmatpush1.msra.mxu0 %v1949
    %1951 = vmatprep.subr.mxu0 0.0
    %v1952 = vand.u32 %v1686, 4294901760
    %1953 = vmatpush1.msra.mxu0 %v1952
    %1954 = vmatprep.subr.mxu0 0.0
    %1955 = vmatpush1.msra.mxu0 0.0
    %1956 = vmatprep.subr.mxu0 0.0
    %1957 = vmatpush1.msra.mxu0 0.0
    %1958 = vmatprep.subr.mxu0 0.0
    %1959 = vmatpush1.msra.mxu0 0.0
    %1960 = vmatprep.subr.mxu0 0.0
    %1961 = vmatpush1.msra.mxu0 0.0
    %1962 = vmatprep.subr.mxu0 0.0
    %1963 = vmatpush1.msra.mxu0 0.0
    %1964 = vmatprep.subr.mxu0 0.0
    %1965 = vmatpush1.msra.mxu0 0.0
    %1966 = vmatprep.subr.mxu0 0.0
    %1967 = vmatpush1.msra.mxu0 0.0
    %1968 = vmatprep.subr.mxu0 0.0
    %1969 = vmatpush1.msra.mxu0 0.0
    %1970 = vmatprep.subr.mxu0 0.0
    %1971 = vmatpush1.msra.mxu0 0.0
    %1972 = vmatprep.subr.mxu0 0.0
    %1973 = vmatpush1.msra.mxu0 0.0
    %1974 = vmatprep.subr.mxu0 0.0
    %1975 = vmatpush1.msra.mxu0 0.0
    %1976 = vmatprep.subr.mxu0 0.0
    %1977 = vmatpush1.msra.mxu0 0.0
    %1978 = vmatprep.subr.mxu0 0.0
    %1979 = vmatpush1.msra.mxu0 0.0
    %1980 = vmatprep.subr.mxu0 0.0
    %1981 = vmatpush1.msra.mxu0 0.0
    %1982 = vmatprep.subr.mxu0 0.0
    %1983 = vmatpush1.msra.mxu0 0.0
    %1984 = vmatprep.subr.mxu0 0.0
    %1985 = vmatpush1.msra.mxu0 0.0
    %1986 = vmatprep.subr.mxu0 0.0
    %1987 = vmatpush1.msra.mxu0 0.0
    %1988 = vmatprep.subr.mxu0 0.0
    %1989 = vmatpush1.msra.mxu0 0.0
    %1990 = vmatprep.subr.mxu0 0.0
    %1991 = vmatpush1.msra.mxu0 0.0
    %1992 = vmatprep.subr.mxu0 0.0
    %1993 = vmatpush1.msra.mxu0 0.0
    %1994 = vmatprep.subr.mxu0 0.0
    %1995 = vmatpush1.msra.mxu0 0.0
    %1996 = vmatprep.subr.mxu0 0.0
    %1997 = vmatpush1.msra.mxu0 0.0
    %1998 = vmatprep.subr.mxu0 0.0
    %1999 = vmatpush1.msra.mxu0 0.0
    %2000 = vmatprep.subr.mxu0 0.0
    %2001 = vmatpush1.msra.mxu0 0.0
    %2002 = vmatprep.subr.mxu0 0.0
    %2003 = vmatpush1.msra.mxu0 0.0
    %2004 = vmatprep.subr.mxu0 0.0
    %2005 = vmatpush1.msra.mxu0 0.0
    %2006 = vmatprep.subr.mxu0 0.0
    %2007 = vmatpush1.msra.mxu0 0.0
    %2008 = vmatprep.subr.mxu0 0.0
    %2009 = vmatpush1.msra.mxu0 0.0
    %2010 = vmatprep.mubr.f32.mxu0 0.0
    %v2011 = vand.u32 %v1690, 4294901760
    %v2012 = vsub.f32 %v1690, %v2011
    %v2013 = vand.u32 %v2012, 4294901760
    %2014 = vmatmul.mubr.f32.gmra.mrb[0].mxu0 %v2013
    %v2015 = vpop.f32.mrb[0].mxu0
    %v2016 = vadd.f32 %v1939, %v2015
    %v2017 = vpop.f32.mrb[0].mxu0
    %2018 = vdwg.mxu0
    %2019 = vmatprep.subr.mxu0 0.0
    %v2020 = vand.u32 %v1683, 4294901760
    %v2021 = vsub.f32 %v1683, %v2020
    %v2022 = vand.u32 %v2021, 4294901760
    %2023 = vmatpush1.msra.mxu0 %v2022
    %2024 = vmatprep.subr.mxu0 0.0
    %v2025 = vand.u32 %v1684, 4294901760
    %v2026 = vsub.f32 %v1684, %v2025
    %v2027 = vand.u32 %v2026, 4294901760
    %2028 = vmatpush1.msra.mxu0 %v2027
    %2029 = vmatprep.subr.mxu0 0.0
    %v2030 = vand.u32 %v1685, 4294901760
    %v2031 = vsub.f32 %v1685, %v2030
    %v2032 = vand.u32 %v2031, 4294901760
    %2033 = vmatpush1.msra.mxu0 %v2032
    %2034 = vmatprep.subr.mxu0 0.0
    %v2035 = vand.u32 %v1686, 4294901760
    %v2036 = vsub.f32 %v1686, %v2035
    %v2037 = vand.u32 %v2036, 4294901760
    %2038 = vmatpush1.msra.mxu0 %v2037
    %2039 = vmatprep.subr.mxu0 0.0
    %2040 = vmatpush1.msra.mxu0 0.0
    %2041 = vmatprep.subr.mxu0 0.0
    %2042 = vmatpush1.msra.mxu0 0.0
    %2043 = vmatprep.subr.mxu0 0.0
    %2044 = vmatpush1.msra.mxu0 0.0
    %2045 = vmatprep.subr.mxu0 0.0
    %2046 = vmatpush1.msra.mxu0 0.0
    %2047 = vmatprep.subr.mxu0 0.0
    %2048 = vmatpush1.msra.mxu0 0.0
    %2049 = vmatprep.subr.mxu0 0.0
    %2050 = vmatpush1.msra.mxu0 0.0
    %2051 = vmatprep.subr.mxu0 0.0
    %2052 = vmatpush1.msra.mxu0 0.0
    %2053 = vmatprep.subr.mxu0 0.0
    %2054 = vmatpush1.msra.mxu0 0.0
    %2055 = vmatprep.subr.mxu0 0.0
    %2056 = vmatpush1.msra.mxu0 0.0
    %2057 = vmatprep.subr.mxu0 0.0
    %2058 = vmatpush1.msra.mxu0 0.0
    %2059 = vmatprep.subr.mxu0 0.0
    %2060 = vmatpush1.msra.mxu0 0.0
    %2061 = vmatprep.subr.mxu0 0.0
    %2062 = vmatpush1.msra.mxu0 0.0
    %2063 = vmatprep.subr.mxu0 0.0
    %2064 = vmatpush1.msra.mxu0 0.0
    %2065 = vmatprep.subr.mxu0 0.0
    %2066 = vmatpush1.msra.mxu0 0.0
    %2067 = vmatprep.subr.mxu0 0.0
    %2068 = vmatpush1.msra.mxu0 0.0
    %2069 = vmatprep.subr.mxu0 0.0
    %2070 = vmatpush1.msra.mxu0 0.0
    %2071 = vmatprep.subr.mxu0 0.0
    %2072 = vmatpush1.msra.mxu0 0.0
    %2073 = vmatprep.subr.mxu0 0.0
    %2074 = vmatpush1.msra.mxu0 0.0
    %2075 = vmatprep.subr.mxu0 0.0
    %2076 = vmatpush1.msra.mxu0 0.0
    %2077 = vmatprep.subr.mxu0 0.0
    %2078 = vmatpush1.msra.mxu0 0.0
    %2079 = vmatprep.subr.mxu0 0.0
    %2080 = vmatpush1.msra.mxu0 0.0
    %2081 = vmatprep.subr.mxu0 0.0
    %2082 = vmatpush1.msra.mxu0 0.0
    %2083 = vmatprep.subr.mxu0 0.0
    %2084 = vmatpush1.msra.mxu0 0.0
    %2085 = vmatprep.subr.mxu0 0.0
    %2086 = vmatpush1.msra.mxu0 0.0
    %2087 = vmatprep.subr.mxu0 0.0
    %2088 = vmatpush1.msra.mxu0 0.0
    %2089 = vmatprep.subr.mxu0 0.0
    %2090 = vmatpush1.msra.mxu0 0.0
    %2091 = vmatprep.subr.mxu0 0.0
    %2092 = vmatpush1.msra.mxu0 0.0
    %2093 = vmatprep.subr.mxu0 0.0
    %2094 = vmatpush1.msra.mxu0 0.0
    %2095 = vmatprep.mubr.f32.mxu0 0.0
    %v2096 = vand.u32 %v1690, 4294901760
    %2097 = vmatmul.mubr.f32.gmra.mrb[0].mxu0 %v2096
    %v2098 = vpop.f32.mrb[0].mxu0
    %v2099 = vadd.f32 %v2016, %v2098
    %v2100 = vpop.f32.mrb[0].mxu0
    %2101 = vdwg.mxu0
    %2102 = vmatprep.subr.mxu0 0.0
    %v2103 = vand.u32 %v1683, 4294901760
    %2104 = vmatpush1.msra.mxu0 %v2103
    %2105 = vmatprep.subr.mxu0 0.0
    %v2106 = vand.u32 %v1684, 4294901760
    %2107 = vmatpush1.msra.mxu0 %v2106
    %2108 = vmatprep.subr.mxu0 0.0
    %v2109 = vand.u32 %v1685, 4294901760
    %2110 = vmatpush1.msra.mxu0 %v2109
    %2111 = vmatprep.subr.mxu0 0.0
    %v2112 = vand.u32 %v1686, 4294901760
    %2113 = vmatpush1.msra.mxu0 %v2112
    %2114 = vmatprep.subr.mxu0 0.0
    %2115 = vmatpush1.msra.mxu0 0.0
    %2116 = vmatprep.subr.mxu0 0.0
    %2117 = vmatpush1.msra.mxu0 0.0
    %2118 = vmatprep.subr.mxu0 0.0
    %2119 = vmatpush1.msra.mxu0 0.0
    %2120 = vmatprep.subr.mxu0 0.0
    %2121 = vmatpush1.msra.mxu0 0.0
    %2122 = vmatprep.subr.mxu0 0.0
    %2123 = vmatpush1.msra.mxu0 0.0
    %2124 = vmatprep.subr.mxu0 0.0
    %2125 = vmatpush1.msra.mxu0 0.0
    %2126 = vmatprep.subr.mxu0 0.0
    %2127 = vmatpush1.msra.mxu0 0.0
    %2128 = vmatprep.subr.mxu0 0.0
    %2129 = vmatpush1.msra.mxu0 0.0
    %2130 = vmatprep.subr.mxu0 0.0
    %2131 = vmatpush1.msra.mxu0 0.0
    %2132 = vmatprep.subr.mxu0 0.0
    %2133 = vmatpush1.msra.mxu0 0.0
    %2134 = vmatprep.subr.mxu0 0.0
    %2135 = vmatpush1.msra.mxu0 0.0
    %2136 = vmatprep.subr.mxu0 0.0
    %2137 = vmatpush1.msra.mxu0 0.0
    %2138 = vmatprep.subr.mxu0 0.0
    %2139 = vmatpush1.msra.mxu0 0.0
    %2140 = vmatprep.subr.mxu0 0.0
    %2141 = vmatpush1.msra.mxu0 0.0
    %2142 = vmatprep.subr.mxu0 0.0
    %2143 = vmatpush1.msra.mxu0 0.0
    %2144 = vmatprep.subr.mxu0 0.0
    %2145 = vmatpush1.msra.mxu0 0.0
    %2146 = vmatprep.subr.mxu0 0.0
    %2147 = vmatpush1.msra.mxu0 0.0
    %2148 = vmatprep.subr.mxu0 0.0
    %2149 = vmatpush1.msra.mxu0 0.0
    %2150 = vmatprep.subr.mxu0 0.0
    %2151 = vmatpush1.msra.mxu0 0.0
    %2152 = vmatprep.subr.mxu0 0.0
    %2153 = vmatpush1.msra.mxu0 0.0
    %2154 = vmatprep.subr.mxu0 0.0
    %2155 = vmatpush1.msra.mxu0 0.0
    %2156 = vmatprep.subr.mxu0 0.0
    %2157 = vmatpush1.msra.mxu0 0.0
    %2158 = vmatprep.subr.mxu0 0.0
    %2159 = vmatpush1.msra.mxu0 0.0
    %2160 = vmatprep.subr.mxu0 0.0
    %2161 = vmatpush1.msra.mxu0 0.0
    %2162 = vmatprep.subr.mxu0 0.0
    %2163 = vmatpush1.msra.mxu0 0.0
    %2164 = vmatprep.subr.mxu0 0.0
    %2165 = vmatpush1.msra.mxu0 0.0
    %2166 = vmatprep.subr.mxu0 0.0
    %2167 = vmatpush1.msra.mxu0 0.0
    %2168 = vmatprep.subr.mxu0 0.0
    %2169 = vmatpush1.msra.mxu0 0.0
    %2170 = vmatprep.mubr.f32.mxu0 0.0
    %v2171 = vand.u32 %v1690, 4294901760
    %2172 = vmatmul.mubr.f32.gmra.mrb[0].mxu0 %v2171
    %v2173 = vpop.f32.mrb[0].mxu0
    %v2174 = vadd.f32 %v2099, %v2173
    %v2175 = vpop.f32.mrb[0].mxu0
    %2176 = vdwg.mxu0
    %v2178 = vlaneseq
    %v2179 = vshrl.u32 %v2178, 7
    %v2180 = vsub.s32 0, %v2179
    %v2181 = vrot.slane %v1670, %v2180
    %v2183 = vadd.f32 %v2174, %v2181
    %v2184 = vmul.f32 %v2183, 0.5
    %v2185 = vtanh.pop %v2184
    %v2186 = vmul.f32 %v2185, 0.5
    %v2187 = vadd.f32 %v2186, 0.5
    %v2189 = vlaneseq
    %v2190 = vshrl.u32 %v2189, 7
    %v2191 = vsub.s32 0, %v2190
    %v2192 = vrot.slane %v1667, %v2191
    %v2194 = vadd.f32 %v2174, %v2192
    %v2196 = vlaneseq
    %v2197 = vshrl.u32 %v2196, 7
    %v2198 = vsub.s32 0, %v2197
    %v2199 = vrot.slane %v1669, %v2198
    %2201 = vrot.lane.b32.xlu0 %v2199, 64
    %v2202 = vpop.permute.xlu0 %2201
    %v2204 = vmul.f32 %v2187, %v2202
    %2206 = vrot.lane.b32.xlu0 %v2204, 64
    %v2207 = vpop.permute.xlu0 %2206
    %v2209 = vadd.f32 %v2194, %v2207
    %v2210 = vtanh.pop %v2209
    %2212 = vrot.lane.b32.xlu0 %v2210, 96
    %v2213 = vpop.permute.xlu0 %2212
    %v2215 = vmul.f32 %v2187, %v2213
    %2217 = vrot.lane.b32.xlu0 %v2215, 32
    %v2218 = vpop.permute.xlu0 %2217
    %v2220 = vsub.f32 %v2210, %v2218
    %2222 = vrot.lane.b32.xlu0 %v2220, 64
    %v2223 = vpop.permute.xlu0 %2222
    %v2224 = vsel %vm83, %v2223, 0
    %2226 = vmatprep.subr.mxu0 0.0
    %v2227 = vand.u32 %v1662, 4294901760
    %2228 = vmatpush1.msra.mxu0 %v2227
    %2229 = vmatprep.subr.mxu0 0.0
    %v2230 = vand.u32 %v1663, 4294901760
    %2231 = vmatpush1.msra.mxu0 %v2230
    %2232 = vmatprep.subr.mxu0 0.0
    %v2233 = vand.u32 %v1664, 4294901760
    %2234 = vmatpush1.msra.mxu0 %v2233
    %2235 = vmatprep.subr.mxu0 0.0
    %v2236 = vand.u32 %v1665, 4294901760
    %2237 = vmatpush1.msra.mxu0 %v2236
    %2238 = vmatprep.subr.mxu0 0.0
    %2239 = vmatpush1.msra.mxu0 0.0
    %2240 = vmatprep.subr.mxu0 0.0
    %2241 = vmatpush1.msra.mxu0 0.0
    %2242 = vmatprep.subr.mxu0 0.0
    %2243 = vmatpush1.msra.mxu0 0.0
    %2244 = vmatprep.subr.mxu0 0.0
    %2245 = vmatpush1.msra.mxu0 0.0
    %2246 = vmatprep.subr.mxu0 0.0
    %2247 = vmatpush1.msra.mxu0 0.0
    %2248 = vmatprep.subr.mxu0 0.0
    %2249 = vmatpush1.msra.mxu0 0.0
    %2250 = vmatprep.subr.mxu0 0.0
    %2251 = vmatpush1.msra.mxu0 0.0
    %2252 = vmatprep.subr.mxu0 0.0
    %2253 = vmatpush1.msra.mxu0 0.0
    %2254 = vmatprep.subr.mxu0 0.0
    %2255 = vmatpush1.msra.mxu0 0.0
    %2256 = vmatprep.subr.mxu0 0.0
    %2257 = vmatpush1.msra.mxu0 0.0
    %2258 = vmatprep.subr.mxu0 0.0
    %2259 = vmatpush1.msra.mxu0 0.0
    %2260 = vmatprep.subr.mxu0 0.0
    %2261 = vmatpush1.msra.mxu0 0.0
    %2262 = vmatprep.subr.mxu0 0.0
    %2263 = vmatpush1.msra.mxu0 0.0
    %2264 = vmatprep.subr.mxu0 0.0
    %2265 = vmatpush1.msra.mxu0 0.0
    %2266 = vmatprep.subr.mxu0 0.0
    %2267 = vmatpush1.msra.mxu0 0.0
    %2268 = vmatprep.subr.mxu0 0.0
    %2269 = vmatpush1.msra.mxu0 0.0
    %2270 = vmatprep.subr.mxu0 0.0
    %2271 = vmatpush1.msra.mxu0 0.0
    %2272 = vmatprep.subr.mxu0 0.0
    %2273 = vmatpush1.msra.mxu0 0.0
    %2274 = vmatprep.subr.mxu0 0.0
    %2275 = vmatpush1.msra.mxu0 0.0
    %2276 = vmatprep.subr.mxu0 0.0
    %2277 = vmatpush1.msra.mxu0 0.0
    %2278 = vmatprep.subr.mxu0 0.0
    %2279 = vmatpush1.msra.mxu0 0.0
    %2280 = vmatprep.subr.mxu0 0.0
    %2281 = vmatpush1.msra.mxu0 0.0
    %2282 = vmatprep.subr.mxu0 0.0
    %2283 = vmatpush1.msra.mxu0 0.0
    %2284 = vmatprep.subr.mxu0 0.0
    %2285 = vmatpush1.msra.mxu0 0.0
    %2286 = vmatprep.subr.mxu0 0.0
    %2287 = vmatpush1.msra.mxu0 0.0
    %2288 = vmatprep.subr.mxu0 0.0
    %2289 = vmatpush1.msra.mxu0 0.0
    %2290 = vmatprep.subr.mxu0 0.0
    %2291 = vmatpush1.msra.mxu0 0.0
    %2292 = vmatprep.subr.mxu0 0.0
    %2293 = vmatpush1.msra.mxu0 0.0
    %2294 = vmatprep.mubr.f32.mxu0 0.0
    %v2295 = vand.u32 %v2224, 4294901760
    %v2296 = vsub.f32 %v2224, %v2295
    %v2297 = vand.u32 %v2296, 4294901760
    %v2298 = vsub.f32 %v2296, %v2297
    %v2299 = vand.u32 %v2298, 4294901760
    %2300 = vmatmul.mubr.f32.gmra.mrb[0].mxu0 %v2299
    %v2301 = vpop.f32.mrb[0].mxu0
    %v2302 = vadd.f32 0.0, %v2301
    %v2303 = vpop.f32.mrb[0].mxu0
    %2304 = vdwg.mxu0
    %2305 = vmatprep.subr.mxu0 0.0
    %v2306 = vand.u32 %v1662, 4294901760
    %v2307 = vsub.f32 %v1662, %v2306
    %v2308 = vand.u32 %v2307, 4294901760
    %v2309 = vsub.f32 %v2307, %v2308
    %v2310 = vand.u32 %v2309, 4294901760
    %2311 = vmatpush1.msra.mxu0 %v2310
    %2312 = vmatprep.subr.mxu0 0.0
    %v2313 = vand.u32 %v1663, 4294901760
    %v2314 = vsub.f32 %v1663, %v2313
    %v2315 = vand.u32 %v2314, 4294901760
    %v2316 = vsub.f32 %v2314, %v2315
    %v2317 = vand.u32 %v2316, 4294901760
    %2318 = vmatpush1.msra.mxu0 %v2317
    %2319 = vmatprep.subr.mxu0 0.0
    %v2320 = vand.u32 %v1664, 4294901760
    %v2321 = vsub.f32 %v1664, %v2320
    %v2322 = vand.u32 %v2321, 4294901760
    %v2323 = vsub.f32 %v2321, %v2322
    %v2324 = vand.u32 %v2323, 4294901760
    %2325 = vmatpush1.msra.mxu0 %v2324
    %2326 = vmatprep.subr.mxu0 0.0
    %v2327 = vand.u32 %v1665, 4294901760
    %v2328 = vsub.f32 %v1665, %v2327
    %v2329 = vand.u32 %v2328, 4294901760
    %v2330 = vsub.f32 %v2328, %v2329
    %v2331 = vand.u32 %v2330, 4294901760
    %2332 = vmatpush1.msra.mxu0 %v2331
    %2333 = vmatprep.subr.mxu0 0.0
    %2334 = vmatpush1.msra.mxu0 0.0
    %2335 = vmatprep.subr.mxu0 0.0
    %2336 = vmatpush1.msra.mxu0 0.0
    %2337 = vmatprep.subr.mxu0 0.0
    %2338 = vmatpush1.msra.mxu0 0.0
    %2339 = vmatprep.subr.mxu0 0.0
    %2340 = vmatpush1.msra.mxu0 0.0
    %2341 = vmatprep.subr.mxu0 0.0
    %2342 = vmatpush1.msra.mxu0 0.0
    %2343 = vmatprep.subr.mxu0 0.0
    %2344 = vmatpush1.msra.mxu0 0.0
    %2345 = vmatprep.subr.mxu0 0.0
    %2346 = vmatpush1.msra.mxu0 0.0
    %2347 = vmatprep.subr.mxu0 0.0
    %2348 = vmatpush1.msra.mxu0 0.0
    %2349 = vmatprep.subr.mxu0 0.0
    %2350 = vmatpush1.msra.mxu0 0.0
    %2351 = vmatprep.subr.mxu0 0.0
    %2352 = vmatpush1.msra.mxu0 0.0
    %2353 = vmatprep.subr.mxu0 0.0
    %2354 = vmatpush1.msra.mxu0 0.0
    %2355 = vmatprep.subr.mxu0 0.0
    %2356 = vmatpush1.msra.mxu0 0.0
    %2357 = vmatprep.subr.mxu0 0.0
    %2358 = vmatpush1.msra.mxu0 0.0
    %2359 = vmatprep.subr.mxu0 0.0
    %2360 = vmatpush1.msra.mxu0 0.0
    %2361 = vmatprep.subr.mxu0 0.0
    %2362 = vmatpush1.msra.mxu0 0.0
    %2363 = vmatprep.subr.mxu0 0.0
    %2364 = vmatpush1.msra.mxu0 0.0
    %2365 = vmatprep.subr.mxu0 0.0
    %2366 = vmatpush1.msra.mxu0 0.0
    %2367 = vmatprep.subr.mxu0 0.0
    %2368 = vmatpush1.msra.mxu0 0.0
    %2369 = vmatprep.subr.mxu0 0.0
    %2370 = vmatpush1.msra.mxu0 0.0
    %2371 = vmatprep.subr.mxu0 0.0
    %2372 = vmatpush1.msra.mxu0 0.0
    %2373 = vmatprep.subr.mxu0 0.0
    %2374 = vmatpush1.msra.mxu0 0.0
    %2375 = vmatprep.subr.mxu0 0.0
    %2376 = vmatpush1.msra.mxu0 0.0
    %2377 = vmatprep.subr.mxu0 0.0
    %2378 = vmatpush1.msra.mxu0 0.0
    %2379 = vmatprep.subr.mxu0 0.0
    %2380 = vmatpush1.msra.mxu0 0.0
    %2381 = vmatprep.subr.mxu0 0.0
    %2382 = vmatpush1.msra.mxu0 0.0
    %2383 = vmatprep.subr.mxu0 0.0
    %2384 = vmatpush1.msra.mxu0 0.0
    %2385 = vmatprep.subr.mxu0 0.0
    %2386 = vmatpush1.msra.mxu0 0.0
    %2387 = vmatprep.subr.mxu0 0.0
    %2388 = vmatpush1.msra.mxu0 0.0
    %2389 = vmatprep.mubr.f32.mxu0 0.0
    %v2390 = vand.u32 %v2224, 4294901760
    %2391 = vmatmul.mubr.f32.gmra.mrb[0].mxu0 %v2390
    %v2392 = vpop.f32.mrb[0].mxu0
    %v2393 = vadd.f32 %v2302, %v2392
    %v2394 = vpop.f32.mrb[0].mxu0
    %2395 = vdwg.mxu0
    %2396 = vmatprep.subr.mxu0 0.0
    %v2397 = vand.u32 %v1662, 4294901760
    %v2398 = vsub.f32 %v1662, %v2397
    %2399 = vmatpush1.msra.mxu0 %v2398
    %2400 = vmatprep.subr.mxu0 0.0
    %v2401 = vand.u32 %v1663, 4294901760
    %v2402 = vsub.f32 %v1663, %v2401
    %2403 = vmatpush1.msra.mxu0 %v2402
    %2404 = vmatprep.subr.mxu0 0.0
    %v2405 = vand.u32 %v1664, 4294901760
    %v2406 = vsub.f32 %v1664, %v2405
    %2407 = vmatpush1.msra.mxu0 %v2406
    %2408 = vmatprep.subr.mxu0 0.0
    %v2409 = vand.u32 %v1665, 4294901760
    %v2410 = vsub.f32 %v1665, %v2409
    %2411 = vmatpush1.msra.mxu0 %v2410
    %2412 = vmatprep.subr.mxu0 0.0
    %2413 = vmatpush1.msra.mxu0 0.0
    %2414 = vmatprep.subr.mxu0 0.0
    %2415 = vmatpush1.msra.mxu0 0.0
    %2416 = vmatprep.subr.mxu0 0.0
    %2417 = vmatpush1.msra.mxu0 0.0
    %2418 = vmatprep.subr.mxu0 0.0
    %2419 = vmatpush1.msra.mxu0 0.0
    %2420 = vmatprep.subr.mxu0 0.0
    %2421 = vmatpush1.msra.mxu0 0.0
    %2422 = vmatprep.subr.mxu0 0.0
    %2423 = vmatpush1.msra.mxu0 0.0
    %2424 = vmatprep.subr.mxu0 0.0
    %2425 = vmatpush1.msra.mxu0 0.0
    %2426 = vmatprep.subr.mxu0 0.0
    %2427 = vmatpush1.msra.mxu0 0.0
    %2428 = vmatprep.subr.mxu0 0.0
    %2429 = vmatpush1.msra.mxu0 0.0
    %2430 = vmatprep.subr.mxu0 0.0
    %2431 = vmatpush1.msra.mxu0 0.0
    %2432 = vmatprep.subr.mxu0 0.0
    %2433 = vmatpush1.msra.mxu0 0.0
    %2434 = vmatprep.subr.mxu0 0.0
    %2435 = vmatpush1.msra.mxu0 0.0
    %2436 = vmatprep.subr.mxu0 0.0
    %2437 = vmatpush1.msra.mxu0 0.0
    %2438 = vmatprep.subr.mxu0 0.0
    %2439 = vmatpush1.msra.mxu0 0.0
    %2440 = vmatprep.subr.mxu0 0.0
    %2441 = vmatpush1.msra.mxu0 0.0
    %2442 = vmatprep.subr.mxu0 0.0
    %2443 = vmatpush1.msra.mxu0 0.0
    %2444 = vmatprep.subr.mxu0 0.0
    %2445 = vmatpush1.msra.mxu0 0.0
    %2446 = vmatprep.subr.mxu0 0.0
    %2447 = vmatpush1.msra.mxu0 0.0
    %2448 = vmatprep.subr.mxu0 0.0
    %2449 = vmatpush1.msra.mxu0 0.0
    %2450 = vmatprep.subr.mxu0 0.0
    %2451 = vmatpush1.msra.mxu0 0.0
    %2452 = vmatprep.subr.mxu0 0.0
    %2453 = vmatpush1.msra.mxu0 0.0
    %2454 = vmatprep.subr.mxu0 0.0
    %2455 = vmatpush1.msra.mxu0 0.0
    %2456 = vmatprep.subr.mxu0 0.0
    %2457 = vmatpush1.msra.mxu0 0.0
    %2458 = vmatprep.subr.mxu0 0.0
    %2459 = vmatpush1.msra.mxu0 0.0
    %2460 = vmatprep.subr.mxu0 0.0
    %2461 = vmatpush1.msra.mxu0 0.0
    %2462 = vmatprep.subr.mxu0 0.0
    %2463 = vmatpush1.msra.mxu0 0.0
    %2464 = vmatprep.subr.mxu0 0.0
    %2465 = vmatpush1.msra.mxu0 0.0
    %2466 = vmatprep.subr.mxu0 0.0
    %2467 = vmatpush1.msra.mxu0 0.0
    %2468 = vmatprep.mubr.f32.mxu0 0.0
    %v2469 = vand.u32 %v2224, 4294901760
    %v2470 = vsub.f32 %v2224, %v2469
    %2471 = vmatmul.mubr.f32.gmra.mrb[0].mxu0 %v2470
    %v2472 = vpop.f32.mrb[0].mxu0
    %v2473 = vadd.f32 %v2393, %v2472
    %v2474 = vpop.f32.mrb[0].mxu0
    %2475 = vdwg.mxu0
    %2476 = vmatprep.subr.mxu0 0.0
    %v2477 = vand.u32 %v1662, 4294901760
    %2478 = vmatpush1.msra.mxu0 %v2477
    %2479 = vmatprep.subr.mxu0 0.0
    %v2480 = vand.u32 %v1663, 4294901760
    %2481 = vmatpush1.msra.mxu0 %v2480
    %2482 = vmatprep.subr.mxu0 0.0
    %v2483 = vand.u32 %v1664, 4294901760
    %2484 = vmatpush1.msra.mxu0 %v2483
    %2485 = vmatprep.subr.mxu0 0.0
    %v2486 = vand.u32 %v1665, 4294901760
    %2487 = vmatpush1.msra.mxu0 %v2486
    %2488 = vmatprep.subr.mxu0 0.0
    %2489 = vmatpush1.msra.mxu0 0.0
    %2490 = vmatprep.subr.mxu0 0.0
    %2491 = vmatpush1.msra.mxu0 0.0
    %2492 = vmatprep.subr.mxu0 0.0
    %2493 = vmatpush1.msra.mxu0 0.0
    %2494 = vmatprep.subr.mxu0 0.0
    %2495 = vmatpush1.msra.mxu0 0.0
    %2496 = vmatprep.subr.mxu0 0.0
    %2497 = vmatpush1.msra.mxu0 0.0
    %2498 = vmatprep.subr.mxu0 0.0
    %2499 = vmatpush1.msra.mxu0 0.0
    %2500 = vmatprep.subr.mxu0 0.0
    %2501 = vmatpush1.msra.mxu0 0.0
    %2502 = vmatprep.subr.mxu0 0.0
    %2503 = vmatpush1.msra.mxu0 0.0
    %2504 = vmatprep.subr.mxu0 0.0
    %2505 = vmatpush1.msra.mxu0 0.0
    %2506 = vmatprep.subr.mxu0 0.0
    %2507 = vmatpush1.msra.mxu0 0.0
    %2508 = vmatprep.subr.mxu0 0.0
    %2509 = vmatpush1.msra.mxu0 0.0
    %2510 = vmatprep.subr.mxu0 0.0
    %2511 = vmatpush1.msra.mxu0 0.0
    %2512 = vmatprep.subr.mxu0 0.0
    %2513 = vmatpush1.msra.mxu0 0.0
    %2514 = vmatprep.subr.mxu0 0.0
    %2515 = vmatpush1.msra.mxu0 0.0
    %2516 = vmatprep.subr.mxu0 0.0
    %2517 = vmatpush1.msra.mxu0 0.0
    %2518 = vmatprep.subr.mxu0 0.0
    %2519 = vmatpush1.msra.mxu0 0.0
    %2520 = vmatprep.subr.mxu0 0.0
    %2521 = vmatpush1.msra.mxu0 0.0
    %2522 = vmatprep.subr.mxu0 0.0
    %2523 = vmatpush1.msra.mxu0 0.0
    %2524 = vmatprep.subr.mxu0 0.0
    %2525 = vmatpush1.msra.mxu0 0.0
    %2526 = vmatprep.subr.mxu0 0.0
    %2527 = vmatpush1.msra.mxu0 0.0
    %2528 = vmatprep.subr.mxu0 0.0
    %2529 = vmatpush1.msra.mxu0 0.0
    %2530 = vmatprep.subr.mxu0 0.0
    %2531 = vmatpush1.msra.mxu0 0.0
    %2532 = vmatprep.subr.mxu0 0.0
    %2533 = vmatpush1.msra.mxu0 0.0
    %2534 = vmatprep.subr.mxu0 0.0
    %2535 = vmatpush1.msra.mxu0 0.0
    %2536 = vmatprep.subr.mxu0 0.0
    %2537 = vmatpush1.msra.mxu0 0.0
    %2538 = vmatprep.subr.mxu0 0.0
    %2539 = vmatpush1.msra.mxu0 0.0
    %2540 = vmatprep.subr.mxu0 0.0
    %2541 = vmatpush1.msra.mxu0 0.0
    %2542 = vmatprep.subr.mxu0 0.0
    %2543 = vmatpush1.msra.mxu0 0.0
    %2544 = vmatprep.mubr.f32.mxu0 0.0
    %v2545 = vand.u32 %v2224, 4294901760
    %v2546 = vsub.f32 %v2224, %v2545
    %v2547 = vand.u32 %v2546, 4294901760
    %2548 = vmatmul.mubr.f32.gmra.mrb[0].mxu0 %v2547
    %v2549 = vpop.f32.mrb[0].mxu0
    %v2550 = vadd.f32 %v2473, %v2549
    %v2551 = vpop.f32.mrb[0].mxu0
    %2552 = vdwg.mxu0
    %2553 = vmatprep.subr.mxu0 0.0
    %v2554 = vand.u32 %v1662, 4294901760
    %v2555 = vsub.f32 %v1662, %v2554
    %v2556 = vand.u32 %v2555, 4294901760
    %2557 = vmatpush1.msra.mxu0 %v2556
    %2558 = vmatprep.subr.mxu0 0.0
    %v2559 = vand.u32 %v1663, 4294901760
    %v2560 = vsub.f32 %v1663, %v2559
    %v2561 = vand.u32 %v2560, 4294901760
    %2562 = vmatpush1.msra.mxu0 %v2561
    %2563 = vmatprep.subr.mxu0 0.0
    %v2564 = vand.u32 %v1664, 4294901760
    %v2565 = vsub.f32 %v1664, %v2564
    %v2566 = vand.u32 %v2565, 4294901760
    %2567 = vmatpush1.msra.mxu0 %v2566
    %2568 = vmatprep.subr.mxu0 0.0
    %v2569 = vand.u32 %v1665, 4294901760
    %v2570 = vsub.f32 %v1665, %v2569
    %v2571 = vand.u32 %v2570, 4294901760
    %2572 = vmatpush1.msra.mxu0 %v2571
    %2573 = vmatprep.subr.mxu0 0.0
    %2574 = vmatpush1.msra.mxu0 0.0
    %2575 = vmatprep.subr.mxu0 0.0
    %2576 = vmatpush1.msra.mxu0 0.0
    %2577 = vmatprep.subr.mxu0 0.0
    %2578 = vmatpush1.msra.mxu0 0.0
    %2579 = vmatprep.subr.mxu0 0.0
    %2580 = vmatpush1.msra.mxu0 0.0
    %2581 = vmatprep.subr.mxu0 0.0
    %2582 = vmatpush1.msra.mxu0 0.0
    %2583 = vmatprep.subr.mxu0 0.0
    %2584 = vmatpush1.msra.mxu0 0.0
    %2585 = vmatprep.subr.mxu0 0.0
    %2586 = vmatpush1.msra.mxu0 0.0
    %2587 = vmatprep.subr.mxu0 0.0
    %2588 = vmatpush1.msra.mxu0 0.0
    %2589 = vmatprep.subr.mxu0 0.0
    %2590 = vmatpush1.msra.mxu0 0.0
    %2591 = vmatprep.subr.mxu0 0.0
    %2592 = vmatpush1.msra.mxu0 0.0
    %2593 = vmatprep.subr.mxu0 0.0
    %2594 = vmatpush1.msra.mxu0 0.0
    %2595 = vmatprep.subr.mxu0 0.0
    %2596 = vmatpush1.msra.mxu0 0.0
    %2597 = vmatprep.subr.mxu0 0.0
    %2598 = vmatpush1.msra.mxu0 0.0
    %2599 = vmatprep.subr.mxu0 0.0
    %2600 = vmatpush1.msra.mxu0 0.0
    %2601 = vmatprep.subr.mxu0 0.0
    %2602 = vmatpush1.msra.mxu0 0.0
    %2603 = vmatprep.subr.mxu0 0.0
    %2604 = vmatpush1.msra.mxu0 0.0
    %2605 = vmatprep.subr.mxu0 0.0
    %2606 = vmatpush1.msra.mxu0 0.0
    %2607 = vmatprep.subr.mxu0 0.0
    %2608 = vmatpush1.msra.mxu0 0.0
    %2609 = vmatprep.subr.mxu0 0.0
    %2610 = vmatpush1.msra.mxu0 0.0
    %2611 = vmatprep.subr.mxu0 0.0
    %2612 = vmatpush1.msra.mxu0 0.0
    %2613 = vmatprep.subr.mxu0 0.0
    %2614 = vmatpush1.msra.mxu0 0.0
    %2615 = vmatprep.subr.mxu0 0.0
    %2616 = vmatpush1.msra.mxu0 0.0
    %2617 = vmatprep.subr.mxu0 0.0
    %2618 = vmatpush1.msra.mxu0 0.0
    %2619 = vmatprep.subr.mxu0 0.0
    %2620 = vmatpush1.msra.mxu0 0.0
    %2621 = vmatprep.subr.mxu0 0.0
    %2622 = vmatpush1.msra.mxu0 0.0
    %2623 = vmatprep.subr.mxu0 0.0
    %2624 = vmatpush1.msra.mxu0 0.0
    %2625 = vmatprep.subr.mxu0 0.0
    %2626 = vmatpush1.msra.mxu0 0.0
    %2627 = vmatprep.subr.mxu0 0.0
    %2628 = vmatpush1.msra.mxu0 0.0
    %2629 = vmatprep.mubr.f32.mxu0 0.0
    %v2630 = vand.u32 %v2224, 4294901760
    %2631 = vmatmul.mubr.f32.gmra.mrb[0].mxu0 %v2630
    %v2632 = vpop.f32.mrb[0].mxu0
    %v2633 = vadd.f32 %v2550, %v2632
    %v2634 = vpop.f32.mrb[0].mxu0
    %2635 = vdwg.mxu0
    %2636 = vmatprep.subr.mxu0 0.0
    %v2637 = vand.u32 %v1662, 4294901760
    %2638 = vmatpush1.msra.mxu0 %v2637
    %2639 = vmatprep.subr.mxu0 0.0
    %v2640 = vand.u32 %v1663, 4294901760
    %2641 = vmatpush1.msra.mxu0 %v2640
    %2642 = vmatprep.subr.mxu0 0.0
    %v2643 = vand.u32 %v1664, 4294901760
    %2644 = vmatpush1.msra.mxu0 %v2643
    %2645 = vmatprep.subr.mxu0 0.0
    %v2646 = vand.u32 %v1665, 4294901760
    %2647 = vmatpush1.msra.mxu0 %v2646
    %2648 = vmatprep.subr.mxu0 0.0
    %2649 = vmatpush1.msra.mxu0 0.0
    %2650 = vmatprep.subr.mxu0 0.0
    %2651 = vmatpush1.msra.mxu0 0.0
    %2652 = vmatprep.subr.mxu0 0.0
    %2653 = vmatpush1.msra.mxu0 0.0
    %2654 = vmatprep.subr.mxu0 0.0
    %2655 = vmatpush1.msra.mxu0 0.0
    %2656 = vmatprep.subr.mxu0 0.0
    %2657 = vmatpush1.msra.mxu0 0.0
    %2658 = vmatprep.subr.mxu0 0.0
    %2659 = vmatpush1.msra.mxu0 0.0
    %2660 = vmatprep.subr.mxu0 0.0
    %2661 = vmatpush1.msra.mxu0 0.0
    %2662 = vmatprep.subr.mxu0 0.0
    %2663 = vmatpush1.msra.mxu0 0.0
    %2664 = vmatprep.subr.mxu0 0.0
    %2665 = vmatpush1.msra.mxu0 0.0
    %2666 = vmatprep.subr.mxu0 0.0
    %2667 = vmatpush1.msra.mxu0 0.0
    %2668 = vmatprep.subr.mxu0 0.0
    %2669 = vmatpush1.msra.mxu0 0.0
    %2670 = vmatprep.subr.mxu0 0.0
    %2671 = vmatpush1.msra.mxu0 0.0
    %2672 = vmatprep.subr.mxu0 0.0
    %2673 = vmatpush1.msra.mxu0 0.0
    %2674 = vmatprep.subr.mxu0 0.0
    %2675 = vmatpush1.msra.mxu0 0.0
    %2676 = vmatprep.subr.mxu0 0.0
    %2677 = vmatpush1.msra.mxu0 0.0
    %2678 = vmatprep.subr.mxu0 0.0
    %2679 = vmatpush1.msra.mxu0 0.0
    %2680 = vmatprep.subr.mxu0 0.0
    %2681 = vmatpush1.msra.mxu0 0.0
    %2682 = vmatprep.subr.mxu0 0.0
    %2683 = vmatpush1.msra.mxu0 0.0
    %2684 = vmatprep.subr.mxu0 0.0
    %2685 = vmatpush1.msra.mxu0 0.0
    %2686 = vmatprep.subr.mxu0 0.0
    %2687 = vmatpush1.msra.mxu0 0.0
    %2688 = vmatprep.subr.mxu0 0.0
    %2689 = vmatpush1.msra.mxu0 0.0
    %2690 = vmatprep.subr.mxu0 0.0
    %2691 = vmatpush1.msra.mxu0 0.0
    %2692 = vmatprep.subr.mxu0 0.0
    %2693 = vmatpush1.msra.mxu0 0.0
    %2694 = vmatprep.subr.mxu0 0.0
    %2695 = vmatpush1.msra.mxu0 0.0
    %2696 = vmatprep.subr.mxu0 0.0
    %2697 = vmatpush1.msra.mxu0 0.0
    %2698 = vmatprep.subr.mxu0 0.0
    %2699 = vmatpush1.msra.mxu0 0.0
    %2700 = vmatprep.subr.mxu0 0.0
    %2701 = vmatpush1.msra.mxu0 0.0
    %2702 = vmatprep.subr.mxu0 0.0
    %2703 = vmatpush1.msra.mxu0 0.0
    %2704 = vmatprep.mubr.f32.mxu0 0.0
    %v2705 = vand.u32 %v2224, 4294901760
    %2706 = vmatmul.mubr.f32.gmra.mrb[0].mxu0 %v2705
    %v2707 = vpop.f32.mrb[0].mxu0
    %v2708 = vadd.f32 %v2633, %v2707
    %v2709 = vpop.f32.mrb[0].mxu0
    %2710 = vdwg.mxu0
    %v2712 = vrot.slane %v2708, 6
    %v2714 = vadd.f32 %v2174, %v2712
    %v2715 = vadd.f32 %v2714, %v2181
    %v2716 = vmul.f32 %v2715, 0.5
    %v2717 = vtanh.pop %v2716
    %v2718 = vmul.f32 %v2717, 0.5
    %v2719 = vadd.f32 %v2718, 0.5
    %v2720 = vadd.f32 %v2708, %v2199
    %v2722 = vrot.slane %v2720, 6
    %2723 = vrot.lane.b32.xlu0 %v2722, 64
    %v2724 = vpop.permute.xlu0 %2723
    %v2726 = vmul.f32 %v2719, %v2724
    %2728 = vrot.lane.b32.xlu0 %v2726, 64
    %v2729 = vpop.permute.xlu0 %2728
    %v2731 = vadd.f32 %v2194, %v2729
    %v2732 = vtanh.pop %v2731
    %v2734 = vrot.slane %v2732, 2
    %v2736 = vsub.f32 %v2220, %v2734
    %v2738 = vrot.slane %v2736, 6
    %2739 = vrot.lane.b32.xlu0 %v2738, 96
    %v2740 = vpop.permute.xlu0 %2739
    %v2742 = vmul.f32 %v2719, %v2740
    %2744 = vrot.lane.b32.xlu0 %v2742, 32
    %v2745 = vpop.permute.xlu0 %2744
    %v2747 = vadd.f32 %v2732, %v2745
    %v2749 = vrot.slane %v2747, 2
    %2750 = vrot.lane.b32.xlu0 %v2749, 64
    %v2751 = vpop.permute.xlu0 %2750
    %v2752 = vsel %vm83, %v2751, 0
    %2754 = vmatprep.subr.mxu0 0.0
    %v2755 = vand.u32 %v1662, 4294901760
    %2756 = vmatpush1.msra.mxu0 %v2755
    %2757 = vmatprep.subr.mxu0 0.0
    %v2758 = vand.u32 %v1663, 4294901760
    %2759 = vmatpush1.msra.mxu0 %v2758
    %2760 = vmatprep.subr.mxu0 0.0
    %v2761 = vand.u32 %v1664, 4294901760
    %2762 = vmatpush1.msra.mxu0 %v2761
    %2763 = vmatprep.subr.mxu0 0.0
    %v2764 = vand.u32 %v1665, 4294901760
    %2765 = vmatpush1.msra.mxu0 %v2764
    %2766 = vmatprep.subr.mxu0 0.0
    %2767 = vmatpush1.msra.mxu0 0.0
    %2768 = vmatprep.subr.mxu0 0.0
    %2769 = vmatpush1.msra.mxu0 0.0
    %2770 = vmatprep.subr.mxu0 0.0
    %2771 = vmatpush1.msra.mxu0 0.0
    %2772 = vmatprep.subr.mxu0 0.0
    %2773 = vmatpush1.msra.mxu0 0.0
    %2774 = vmatprep.subr.mxu0 0.0
    %2775 = vmatpush1.msra.mxu0 0.0
    %2776 = vmatprep.subr.mxu0 0.0
    %2777 = vmatpush1.msra.mxu0 0.0
    %2778 = vmatprep.subr.mxu0 0.0
    %2779 = vmatpush1.msra.mxu0 0.0
    %2780 = vmatprep.subr.mxu0 0.0
    %2781 = vmatpush1.msra.mxu0 0.0
    %2782 = vmatprep.subr.mxu0 0.0
    %2783 = vmatpush1.msra.mxu0 0.0
    %2784 = vmatprep.subr.mxu0 0.0
    %2785 = vmatpush1.msra.mxu0 0.0
    %2786 = vmatprep.subr.mxu0 0.0
    %2787 = vmatpush1.msra.mxu0 0.0
    %2788 = vmatprep.subr.mxu0 0.0
    %2789 = vmatpush1.msra.mxu0 0.0
    %2790 = vmatprep.subr.mxu0 0.0
    %2791 = vmatpush1.msra.mxu0 0.0
    %2792 = vmatprep.subr.mxu0 0.0
    %2793 = vmatpush1.msra.mxu0 0.0
    %2794 = vmatprep.subr.mxu0 0.0
    %2795 = vmatpush1.msra.mxu0 0.0
    %2796 = vmatprep.subr.mxu0 0.0
    %2797 = vmatpush1.msra.mxu0 0.0
    %2798 = vmatprep.subr.mxu0 0.0
    %2799 = vmatpush1.msra.mxu0 0.0
    %2800 = vmatprep.subr.mxu0 0.0
    %2801 = vmatpush1.msra.mxu0 0.0
    %2802 = vmatprep.subr.mxu0 0.0
    %2803 = vmatpush1.msra.mxu0 0.0
    %2804 = vmatprep.subr.mxu0 0.0
    %2805 = vmatpush1.msra.mxu0 0.0
    %2806 = vmatprep.subr.mxu0 0.0
    %2807 = vmatpush1.msra.mxu0 0.0
    %2808 = vmatprep.subr.mxu0 0.0
    %2809 = vmatpush1.msra.mxu0 0.0
    %2810 = vmatprep.subr.mxu0 0.0
    %2811 = vmatpush1.msra.mxu0 0.0
    %2812 = vmatprep.subr.mxu0 0.0
    %2813 = vmatpush1.msra.mxu0 0.0
    %2814 = vmatprep.subr.mxu0 0.0
    %2815 = vmatpush1.msra.mxu0 0.0
    %2816 = vmatprep.subr.mxu0 0.0
    %2817 = vmatpush1.msra.mxu0 0.0
    %2818 = vmatprep.subr.mxu0 0.0
    %2819 = vmatpush1.msra.mxu0 0.0
    %2820 = vmatprep.subr.mxu0 0.0
    %2821 = vmatpush1.msra.mxu0 0.0
    %2822 = vmatprep.mubr.f32.mxu0 0.0
    %v2823 = vand.u32 %v2752, 4294901760
    %v2824 = vsub.f32 %v2752, %v2823
    %v2825 = vand.u32 %v2824, 4294901760
    %v2826 = vsub.f32 %v2824, %v2825
    %v2827 = vand.u32 %v2826, 4294901760
    %2828 = vmatmul.mubr.f32.gmra.mrb[0].mxu0 %v2827
    %v2829 = vpop.f32.mrb[0].mxu0
    %v2830 = vadd.f32 0.0, %v2829
    %v2831 = vpop.f32.mrb[0].mxu0
    %2832 = vdwg.mxu0
    %2833 = vmatprep.subr.mxu0 0.0
    %v2834 = vand.u32 %v1662, 4294901760
    %v2835 = vsub.f32 %v1662, %v2834
    %v2836 = vand.u32 %v2835, 4294901760
    %v2837 = vsub.f32 %v2835, %v2836
    %v2838 = vand.u32 %v2837, 4294901760
    %2839 = vmatpush1.msra.mxu0 %v2838
    %2840 = vmatprep.subr.mxu0 0.0
    %v2841 = vand.u32 %v1663, 4294901760
    %v2842 = vsub.f32 %v1663, %v2841
    %v2843 = vand.u32 %v2842, 4294901760
    %v2844 = vsub.f32 %v2842, %v2843
    %v2845 = vand.u32 %v2844, 4294901760
    %2846 = vmatpush1.msra.mxu0 %v2845
    %2847 = vmatprep.subr.mxu0 0.0
    %v2848 = vand.u32 %v1664, 4294901760
    %v2849 = vsub.f32 %v1664, %v2848
    %v2850 = vand.u32 %v2849, 4294901760
    %v2851 = vsub.f32 %v2849, %v2850
    %v2852 = vand.u32 %v2851, 4294901760
    %2853 = vmatpush1.msra.mxu0 %v2852
    %2854 = vmatprep.subr.mxu0 0.0
    %v2855 = vand.u32 %v1665, 4294901760
    %v2856 = vsub.f32 %v1665, %v2855
    %v2857 = vand.u32 %v2856, 4294901760
    %v2858 = vsub.f32 %v2856, %v2857
    %v2859 = vand.u32 %v2858, 4294901760
    %2860 = vmatpush1.msra.mxu0 %v2859
    %2861 = vmatprep.subr.mxu0 0.0
    %2862 = vmatpush1.msra.mxu0 0.0
    %2863 = vmatprep.subr.mxu0 0.0
    %2864 = vmatpush1.msra.mxu0 0.0
    %2865 = vmatprep.subr.mxu0 0.0
    %2866 = vmatpush1.msra.mxu0 0.0
    %2867 = vmatprep.subr.mxu0 0.0
    %2868 = vmatpush1.msra.mxu0 0.0
    %2869 = vmatprep.subr.mxu0 0.0
    %2870 = vmatpush1.msra.mxu0 0.0
    %2871 = vmatprep.subr.mxu0 0.0
    %2872 = vmatpush1.msra.mxu0 0.0
    %2873 = vmatprep.subr.mxu0 0.0
    %2874 = vmatpush1.msra.mxu0 0.0
    %2875 = vmatprep.subr.mxu0 0.0
    %2876 = vmatpush1.msra.mxu0 0.0
    %2877 = vmatprep.subr.mxu0 0.0
    %2878 = vmatpush1.msra.mxu0 0.0
    %2879 = vmatprep.subr.mxu0 0.0
    %2880 = vmatpush1.msra.mxu0 0.0
    %2881 = vmatprep.subr.mxu0 0.0
    %2882 = vmatpush1.msra.mxu0 0.0
    %2883 = vmatprep.subr.mxu0 0.0
    %2884 = vmatpush1.msra.mxu0 0.0
    %2885 = vmatprep.subr.mxu0 0.0
    %2886 = vmatpush1.msra.mxu0 0.0
    %2887 = vmatprep.subr.mxu0 0.0
    %2888 = vmatpush1.msra.mxu0 0.0
    %2889 = vmatprep.subr.mxu0 0.0
    %2890 = vmatpush1.msra.mxu0 0.0
    %2891 = vmatprep.subr.mxu0 0.0
    %2892 = vmatpush1.msra.mxu0 0.0
    %2893 = vmatprep.subr.mxu0 0.0
    %2894 = vmatpush1.msra.mxu0 0.0
    %2895 = vmatprep.subr.mxu0 0.0
    %2896 = vmatpush1.msra.mxu0 0.0
    %2897 = vmatprep.subr.mxu0 0.0
    %2898 = vmatpush1.msra.mxu0 0.0
    %2899 = vmatprep.subr.mxu0 0.0
    %2900 = vmatpush1.msra.mxu0 0.0
    %2901 = vmatprep.subr.mxu0 0.0
    %2902 = vmatpush1.msra.mxu0 0.0
    %2903 = vmatprep.subr.mxu0 0.0
    %2904 = vmatpush1.msra.mxu0 0.0
    %2905 = vmatprep.subr.mxu0 0.0
    %2906 = vmatpush1.msra.mxu0 0.0
    %2907 = vmatprep.subr.mxu0 0.0
    %2908 = vmatpush1.msra.mxu0 0.0
    %2909 = vmatprep.subr.mxu0 0.0
    %2910 = vmatpush1.msra.mxu0 0.0
    %2911 = vmatprep.subr.mxu0 0.0
    %2912 = vmatpush1.msra.mxu0 0.0
    %2913 = vmatprep.subr.mxu0 0.0
    %2914 = vmatpush1.msra.mxu0 0.0
    %2915 = vmatprep.subr.mxu0 0.0
    %2916 = vmatpush1.msra.mxu0 0.0
    %2917 = vmatprep.mubr.f32.mxu0 0.0
    %v2918 = vand.u32 %v2752, 4294901760
    %2919 = vmatmul.mubr.f32.gmra.mrb[0].mxu0 %v2918
    %v2920 = vpop.f32.mrb[0].mxu0
    %v2921 = vadd.f32 %v2830, %v2920
    %v2922 = vpop.f32.mrb[0].mxu0
    %2923 = vdwg.mxu0
    %2924 = vmatprep.subr.mxu0 0.0
    %v2925 = vand.u32 %v1662, 4294901760
    %v2926 = vsub.f32 %v1662, %v2925
    %2927 = vmatpush1.msra.mxu0 %v2926
    %2928 = vmatprep.subr.mxu0 0.0
    %v2929 = vand.u32 %v1663, 4294901760
    %v2930 = vsub.f32 %v1663, %v2929
    %2931 = vmatpush1.msra.mxu0 %v2930
    %2932 = vmatprep.subr.mxu0 0.0
    %v2933 = vand.u32 %v1664, 4294901760
    %v2934 = vsub.f32 %v1664, %v2933
    %2935 = vmatpush1.msra.mxu0 %v2934
    %2936 = vmatprep.subr.mxu0 0.0
    %v2937 = vand.u32 %v1665, 4294901760
    %v2938 = vsub.f32 %v1665, %v2937
    %2939 = vmatpush1.msra.mxu0 %v2938
    %2940 = vmatprep.subr.mxu0 0.0
    %2941 = vmatpush1.msra.mxu0 0.0
    %2942 = vmatprep.subr.mxu0 0.0
    %2943 = vmatpush1.msra.mxu0 0.0
    %2944 = vmatprep.subr.mxu0 0.0
    %2945 = vmatpush1.msra.mxu0 0.0
    %2946 = vmatprep.subr.mxu0 0.0
    %2947 = vmatpush1.msra.mxu0 0.0
    %2948 = vmatprep.subr.mxu0 0.0
    %2949 = vmatpush1.msra.mxu0 0.0
    %2950 = vmatprep.subr.mxu0 0.0
    %2951 = vmatpush1.msra.mxu0 0.0
    %2952 = vmatprep.subr.mxu0 0.0
    %2953 = vmatpush1.msra.mxu0 0.0
    %2954 = vmatprep.subr.mxu0 0.0
    %2955 = vmatpush1.msra.mxu0 0.0
    %2956 = vmatprep.subr.mxu0 0.0
    %2957 = vmatpush1.msra.mxu0 0.0
    %2958 = vmatprep.subr.mxu0 0.0
    %2959 = vmatpush1.msra.mxu0 0.0
    %2960 = vmatprep.subr.mxu0 0.0
    %2961 = vmatpush1.msra.mxu0 0.0
    %2962 = vmatprep.subr.mxu0 0.0
    %2963 = vmatpush1.msra.mxu0 0.0
    %2964 = vmatprep.subr.mxu0 0.0
    %2965 = vmatpush1.msra.mxu0 0.0
    %2966 = vmatprep.subr.mxu0 0.0
    %2967 = vmatpush1.msra.mxu0 0.0
    %2968 = vmatprep.subr.mxu0 0.0
    %2969 = vmatpush1.msra.mxu0 0.0
    %2970 = vmatprep.subr.mxu0 0.0
    %2971 = vmatpush1.msra.mxu0 0.0
    %2972 = vmatprep.subr.mxu0 0.0
    %2973 = vmatpush1.msra.mxu0 0.0
    %2974 = vmatprep.subr.mxu0 0.0
    %2975 = vmatpush1.msra.mxu0 0.0
    %2976 = vmatprep.subr.mxu0 0.0
    %2977 = vmatpush1.msra.mxu0 0.0
    %2978 = vmatprep.subr.mxu0 0.0
    %2979 = vmatpush1.msra.mxu0 0.0
    %2980 = vmatprep.subr.mxu0 0.0
    %2981 = vmatpush1.msra.mxu0 0.0
    %2982 = vmatprep.subr.mxu0 0.0
    %2983 = vmatpush1.msra.mxu0 0.0
    %2984 = vmatprep.subr.mxu0 0.0
    %2985 = vmatpush1.msra.mxu0 0.0
    %2986 = vmatprep.subr.mxu0 0.0
    %2987 = vmatpush1.msra.mxu0 0.0
    %2988 = vmatprep.subr.mxu0 0.0
    %2989 = vmatpush1.msra.mxu0 0.0
    %2990 = vmatprep.subr.mxu0 0.0
    %2991 = vmatpush1.msra.mxu0 0.0
    %2992 = vmatprep.subr.mxu0 0.0
    %2993 = vmatpush1.msra.mxu0 0.0
    %2994 = vmatprep.subr.mxu0 0.0
    %2995 = vmatpush1.msra.mxu0 0.0
    %2996 = vmatprep.mubr.f32.mxu0 0.0
    %v2997 = vand.u32 %v2752, 4294901760
    %v2998 = vsub.f32 %v2752, %v2997
    %2999 = vmatmul.mubr.f32.gmra.mrb[0].mxu0 %v2998
    %v3000 = vpop.f32.mrb[0].mxu0
    %v3001 = vadd.f32 %v2921, %v3000
    %v3002 = vpop.f32.mrb[0].mxu0
    %3003 = vdwg.mxu0
    %3004 = vmatprep.subr.mxu0 0.0
    %v3005 = vand.u32 %v1662, 4294901760
    %3006 = vmatpush1.msra.mxu0 %v3005
    %3007 = vmatprep.subr.mxu0 0.0
    %v3008 = vand.u32 %v1663, 4294901760
    %3009 = vmatpush1.msra.mxu0 %v3008
    %3010 = vmatprep.subr.mxu0 0.0
    %v3011 = vand.u32 %v1664, 4294901760
    %3012 = vmatpush1.msra.mxu0 %v3011
    %3013 = vmatprep.subr.mxu0 0.0
    %v3014 = vand.u32 %v1665, 4294901760
    %3015 = vmatpush1.msra.mxu0 %v3014
    %3016 = vmatprep.subr.mxu0 0.0
    %3017 = vmatpush1.msra.mxu0 0.0
    %3018 = vmatprep.subr.mxu0 0.0
    %3019 = vmatpush1.msra.mxu0 0.0
    %3020 = vmatprep.subr.mxu0 0.0
    %3021 = vmatpush1.msra.mxu0 0.0
    %3022 = vmatprep.subr.mxu0 0.0
    %3023 = vmatpush1.msra.mxu0 0.0
    %3024 = vmatprep.subr.mxu0 0.0
    %3025 = vmatpush1.msra.mxu0 0.0
    %3026 = vmatprep.subr.mxu0 0.0
    %3027 = vmatpush1.msra.mxu0 0.0
    %3028 = vmatprep.subr.mxu0 0.0
    %3029 = vmatpush1.msra.mxu0 0.0
    %3030 = vmatprep.subr.mxu0 0.0
    %3031 = vmatpush1.msra.mxu0 0.0
    %3032 = vmatprep.subr.mxu0 0.0
    %3033 = vmatpush1.msra.mxu0 0.0
    %3034 = vmatprep.subr.mxu0 0.0
    %3035 = vmatpush1.msra.mxu0 0.0
    %3036 = vmatprep.subr.mxu0 0.0
    %3037 = vmatpush1.msra.mxu0 0.0
    %3038 = vmatprep.subr.mxu0 0.0
    %3039 = vmatpush1.msra.mxu0 0.0
    %3040 = vmatprep.subr.mxu0 0.0
    %3041 = vmatpush1.msra.mxu0 0.0
    %3042 = vmatprep.subr.mxu0 0.0
    %3043 = vmatpush1.msra.mxu0 0.0
    %3044 = vmatprep.subr.mxu0 0.0
    %3045 = vmatpush1.msra.mxu0 0.0
    %3046 = vmatprep.subr.mxu0 0.0
    %3047 = vmatpush1.msra.mxu0 0.0
    %3048 = vmatprep.subr.mxu0 0.0
    %3049 = vmatpush1.msra.mxu0 0.0
    %3050 = vmatprep.subr.mxu0 0.0
    %3051 = vmatpush1.msra.mxu0 0.0
    %3052 = vmatprep.subr.mxu0 0.0
    %3053 = vmatpush1.msra.mxu0 0.0
    %3054 = vmatprep.subr.mxu0 0.0
    %3055 = vmatpush1.msra.mxu0 0.0
    %3056 = vmatprep.subr.mxu0 0.0
    %3057 = vmatpush1.msra.mxu0 0.0
    %3058 = vmatprep.subr.mxu0 0.0
    %3059 = vmatpush1.msra.mxu0 0.0
    %3060 = vmatprep.subr.mxu0 0.0
    %3061 = vmatpush1.msra.mxu0 0.0
    %3062 = vmatprep.subr.mxu0 0.0
    %3063 = vmatpush1.msra.mxu0 0.0
    %3064 = vmatprep.subr.mxu0 0.0
    %3065 = vmatpush1.msra.mxu0 0.0
    %3066 = vmatprep.subr.mxu0 0.0
    %3067 = vmatpush1.msra.mxu0 0.0
    %3068 = vmatprep.subr.mxu0 0.0
    %3069 = vmatpush1.msra.mxu0 0.0
    %3070 = vmatprep.subr.mxu0 0.0
    %3071 = vmatpush1.msra.mxu0 0.0
    %3072 = vmatprep.mubr.f32.mxu0 0.0
    %v3073 = vand.u32 %v2752, 4294901760
    %v3074 = vsub.f32 %v2752, %v3073
    %v3075 = vand.u32 %v3074, 4294901760
    %3076 = vmatmul.mubr.f32.gmra.mrb[0].mxu0 %v3075
    %v3077 = vpop.f32.mrb[0].mxu0
    %v3078 = vadd.f32 %v3001, %v3077
    %v3079 = vpop.f32.mrb[0].mxu0
    %3080 = vdwg.mxu0
    %3081 = vmatprep.subr.mxu0 0.0
    %v3082 = vand.u32 %v1662, 4294901760
    %v3083 = vsub.f32 %v1662, %v3082
    %v3084 = vand.u32 %v3083, 4294901760
    %3085 = vmatpush1.msra.mxu0 %v3084
    %3086 = vmatprep.subr.mxu0 0.0
    %v3087 = vand.u32 %v1663, 4294901760
    %v3088 = vsub.f32 %v1663, %v3087
    %v3089 = vand.u32 %v3088, 4294901760
    %3090 = vmatpush1.msra.mxu0 %v3089
    %3091 = vmatprep.subr.mxu0 0.0
    %v3092 = vand.u32 %v1664, 4294901760
    %v3093 = vsub.f32 %v1664, %v3092
    %v3094 = vand.u32 %v3093, 4294901760
    %3095 = vmatpush1.msra.mxu0 %v3094
    %3096 = vmatprep.subr.mxu0 0.0
    %v3097 = vand.u32 %v1665, 4294901760
    %v3098 = vsub.f32 %v1665, %v3097
    %v3099 = vand.u32 %v3098, 4294901760
    %3100 = vmatpush1.msra.mxu0 %v3099
    %3101 = vmatprep.subr.mxu0 0.0
    %3102 = vmatpush1.msra.mxu0 0.0
    %3103 = vmatprep.subr.mxu0 0.0
    %3104 = vmatpush1.msra.mxu0 0.0
    %3105 = vmatprep.subr.mxu0 0.0
    %3106 = vmatpush1.msra.mxu0 0.0
    %3107 = vmatprep.subr.mxu0 0.0
    %3108 = vmatpush1.msra.mxu0 0.0
    %3109 = vmatprep.subr.mxu0 0.0
    %3110 = vmatpush1.msra.mxu0 0.0
    %3111 = vmatprep.subr.mxu0 0.0
    %3112 = vmatpush1.msra.mxu0 0.0
    %3113 = vmatprep.subr.mxu0 0.0
    %3114 = vmatpush1.msra.mxu0 0.0
    %3115 = vmatprep.subr.mxu0 0.0
    %3116 = vmatpush1.msra.mxu0 0.0
    %3117 = vmatprep.subr.mxu0 0.0
    %3118 = vmatpush1.msra.mxu0 0.0
    %3119 = vmatprep.subr.mxu0 0.0
    %3120 = vmatpush1.msra.mxu0 0.0
    %3121 = vmatprep.subr.mxu0 0.0
    %3122 = vmatpush1.msra.mxu0 0.0
    %3123 = vmatprep.subr.mxu0 0.0
    %3124 = vmatpush1.msra.mxu0 0.0
    %3125 = vmatprep.subr.mxu0 0.0
    %3126 = vmatpush1.msra.mxu0 0.0
    %3127 = vmatprep.subr.mxu0 0.0
    %3128 = vmatpush1.msra.mxu0 0.0
    %3129 = vmatprep.subr.mxu0 0.0
    %3130 = vmatpush1.msra.mxu0 0.0
    %3131 = vmatprep.subr.mxu0 0.0
    %3132 = vmatpush1.msra.mxu0 0.0
    %3133 = vmatprep.subr.mxu0 0.0
    %3134 = vmatpush1.msra.mxu0 0.0
    %3135 = vmatprep.subr.mxu0 0.0
    %3136 = vmatpush1.msra.mxu0 0.0
    %3137 = vmatprep.subr.mxu0 0.0
    %3138 = vmatpush1.msra.mxu0 0.0
    %3139 = vmatprep.subr.mxu0 0.0
    %3140 = vmatpush1.msra.mxu0 0.0
    %3141 = vmatprep.subr.mxu0 0.0
    %3142 = vmatpush1.msra.mxu0 0.0
    %3143 = vmatprep.subr.mxu0 0.0
    %3144 = vmatpush1.msra.mxu0 0.0
    %3145 = vmatprep.subr.mxu0 0.0
    %3146 = vmatpush1.msra.mxu0 0.0
    %3147 = vmatprep.subr.mxu0 0.0
    %3148 = vmatpush1.msra.mxu0 0.0
    %3149 = vmatprep.subr.mxu0 0.0
    %3150 = vmatpush1.msra.mxu0 0.0
    %3151 = vmatprep.subr.mxu0 0.0
    %3152 = vmatpush1.msra.mxu0 0.0
    %3153 = vmatprep.subr.mxu0 0.0
    %3154 = vmatpush1.msra.mxu0 0.0
    %3155 = vmatprep.subr.mxu0 0.0
    %3156 = vmatpush1.msra.mxu0 0.0
    %3157 = vmatprep.mubr.f32.mxu0 0.0
    %v3158 = vand.u32 %v2752, 4294901760
    %3159 = vmatmul.mubr.f32.gmra.mrb[0].mxu0 %v3158
    %v3160 = vpop.f32.mrb[0].mxu0
    %v3161 = vadd.f32 %v3078, %v3160
    %v3162 = vpop.f32.mrb[0].mxu0
    %3163 = vdwg.mxu0
    %3164 = vmatprep.subr.mxu0 0.0
    %v3165 = vand.u32 %v1662, 4294901760
    %3166 = vmatpush1.msra.mxu0 %v3165
    %3167 = vmatprep.subr.mxu0 0.0
    %v3168 = vand.u32 %v1663, 4294901760
    %3169 = vmatpush1.msra.mxu0 %v3168
    %3170 = vmatprep.subr.mxu0 0.0
    %v3171 = vand.u32 %v1664, 4294901760
    %3172 = vmatpush1.msra.mxu0 %v3171
    %3173 = vmatprep.subr.mxu0 0.0
    %v3174 = vand.u32 %v1665, 4294901760
    %3175 = vmatpush1.msra.mxu0 %v3174
    %3176 = vmatprep.subr.mxu0 0.0
    %3177 = vmatpush1.msra.mxu0 0.0
    %3178 = vmatprep.subr.mxu0 0.0
    %3179 = vmatpush1.msra.mxu0 0.0
    %3180 = vmatprep.subr.mxu0 0.0
    %3181 = vmatpush1.msra.mxu0 0.0
    %3182 = vmatprep.subr.mxu0 0.0
    %3183 = vmatpush1.msra.mxu0 0.0
    %3184 = vmatprep.subr.mxu0 0.0
    %3185 = vmatpush1.msra.mxu0 0.0
    %3186 = vmatprep.subr.mxu0 0.0
    %3187 = vmatpush1.msra.mxu0 0.0
    %3188 = vmatprep.subr.mxu0 0.0
    %3189 = vmatpush1.msra.mxu0 0.0
    %3190 = vmatprep.subr.mxu0 0.0
    %3191 = vmatpush1.msra.mxu0 0.0
    %3192 = vmatprep.subr.mxu0 0.0
    %3193 = vmatpush1.msra.mxu0 0.0
    %3194 = vmatprep.subr.mxu0 0.0
    %3195 = vmatpush1.msra.mxu0 0.0
    %3196 = vmatprep.subr.mxu0 0.0
    %3197 = vmatpush1.msra.mxu0 0.0
    %3198 = vmatprep.subr.mxu0 0.0
    %3199 = vmatpush1.msra.mxu0 0.0
    %3200 = vmatprep.subr.mxu0 0.0
    %3201 = vmatpush1.msra.mxu0 0.0
    %3202 = vmatprep.subr.mxu0 0.0
    %3203 = vmatpush1.msra.mxu0 0.0
    %3204 = vmatprep.subr.mxu0 0.0
    %3205 = vmatpush1.msra.mxu0 0.0
    %3206 = vmatprep.subr.mxu0 0.0
    %3207 = vmatpush1.msra.mxu0 0.0
    %3208 = vmatprep.subr.mxu0 0.0
    %3209 = vmatpush1.msra.mxu0 0.0
    %3210 = vmatprep.subr.mxu0 0.0
    %3211 = vmatpush1.msra.mxu0 0.0
    %3212 = vmatprep.subr.mxu0 0.0
    %3213 = vmatpush1.msra.mxu0 0.0
    %3214 = vmatprep.subr.mxu0 0.0
    %3215 = vmatpush1.msra.mxu0 0.0
    %3216 = vmatprep.subr.mxu0 0.0
    %3217 = vmatpush1.msra.mxu0 0.0
    %3218 = vmatprep.subr.mxu0 0.0
    %3219 = vmatpush1.msra.mxu0 0.0
    %3220 = vmatprep.subr.mxu0 0.0
    %3221 = vmatpush1.msra.mxu0 0.0
    %3222 = vmatprep.subr.mxu0 0.0
    %3223 = vmatpush1.msra.mxu0 0.0
    %3224 = vmatprep.subr.mxu0 0.0
    %3225 = vmatpush1.msra.mxu0 0.0
    %3226 = vmatprep.subr.mxu0 0.0
    %3227 = vmatpush1.msra.mxu0 0.0
    %3228 = vmatprep.subr.mxu0 0.0
    %3229 = vmatpush1.msra.mxu0 0.0
    %3230 = vmatprep.subr.mxu0 0.0
    %3231 = vmatpush1.msra.mxu0 0.0
    %3232 = vmatprep.mubr.f32.mxu0 0.0
    %v3233 = vand.u32 %v2752, 4294901760
    %3234 = vmatmul.mubr.f32.gmra.mrb[0].mxu0 %v3233
    %v3235 = vpop.f32.mrb[0].mxu0
    %v3236 = vadd.f32 %v3161, %v3235
    %v3237 = vpop.f32.mrb[0].mxu0
    %3238 = vdwg.mxu0
    %v3240 = vrot.slane %v3236, 4
    %v3242 = vadd.f32 %v2174, %v3240
    %v3243 = vadd.f32 %v3242, %v2181
    %v3244 = vmul.f32 %v3243, 0.5
    %v3245 = vtanh.pop %v3244
    %v3246 = vmul.f32 %v3245, 0.5
    %v3247 = vadd.f32 %v3246, 0.5
    %v3248 = vadd.f32 %v3236, %v2199
    %v3250 = vrot.slane %v3248, 4
    %3251 = vrot.lane.b32.xlu0 %v3250, 64
    %v3252 = vpop.permute.xlu0 %3251
    %v3254 = vmul.f32 %v3247, %v3252
    %3256 = vrot.lane.b32.xlu0 %v3254, 64
    %v3257 = vpop.permute.xlu0 %3256
    %v3259 = vadd.f32 %v2194, %v3257
    %v3260 = vtanh.pop %v3259
    %v3262 = vrot.slane %v3260, 2
    %v3264 = vsub.f32 %v2747, %v3262
    %v3266 = vrot.slane %v3264, 6
    %3267 = vrot.lane.b32.xlu0 %v3266, 96
    %v3268 = vpop.permute.xlu0 %3267
    %v3270 = vmul.f32 %v3247, %v3268
    %3272 = vrot.lane.b32.xlu0 %v3270, 32
    %v3273 = vpop.permute.xlu0 %3272
    %v3275 = vadd.f32 %v3260, %v3273
    %v3277 = vrot.slane %v3275, 4
    %3278 = vrot.lane.b32.xlu0 %v3277, 64
    %v3279 = vpop.permute.xlu0 %3278
    %v3280 = vsel %vm83, %v3279, 0
    %3282 = vmatprep.subr.mxu0 0.0
    %v3283 = vand.u32 %v1662, 4294901760
    %3284 = vmatpush1.msra.mxu0 %v3283
    %3285 = vmatprep.subr.mxu0 0.0
    %v3286 = vand.u32 %v1663, 4294901760
    %3287 = vmatpush1.msra.mxu0 %v3286
    %3288 = vmatprep.subr.mxu0 0.0
    %v3289 = vand.u32 %v1664, 4294901760
    %3290 = vmatpush1.msra.mxu0 %v3289
    %3291 = vmatprep.subr.mxu0 0.0
    %v3292 = vand.u32 %v1665, 4294901760
    %3293 = vmatpush1.msra.mxu0 %v3292
    %3294 = vmatprep.subr.mxu0 0.0
    %3295 = vmatpush1.msra.mxu0 0.0
    %3296 = vmatprep.subr.mxu0 0.0
    %3297 = vmatpush1.msra.mxu0 0.0
    %3298 = vmatprep.subr.mxu0 0.0
    %3299 = vmatpush1.msra.mxu0 0.0
    %3300 = vmatprep.subr.mxu0 0.0
    %3301 = vmatpush1.msra.mxu0 0.0
    %3302 = vmatprep.subr.mxu0 0.0
    %3303 = vmatpush1.msra.mxu0 0.0
    %3304 = vmatprep.subr.mxu0 0.0
    %3305 = vmatpush1.msra.mxu0 0.0
    %3306 = vmatprep.subr.mxu0 0.0
    %3307 = vmatpush1.msra.mxu0 0.0
    %3308 = vmatprep.subr.mxu0 0.0
    %3309 = vmatpush1.msra.mxu0 0.0
    %3310 = vmatprep.subr.mxu0 0.0
    %3311 = vmatpush1.msra.mxu0 0.0
    %3312 = vmatprep.subr.mxu0 0.0
    %3313 = vmatpush1.msra.mxu0 0.0
    %3314 = vmatprep.subr.mxu0 0.0
    %3315 = vmatpush1.msra.mxu0 0.0
    %3316 = vmatprep.subr.mxu0 0.0
    %3317 = vmatpush1.msra.mxu0 0.0
    %3318 = vmatprep.subr.mxu0 0.0
    %3319 = vmatpush1.msra.mxu0 0.0
    %3320 = vmatprep.subr.mxu0 0.0
    %3321 = vmatpush1.msra.mxu0 0.0
    %3322 = vmatprep.subr.mxu0 0.0
    %3323 = vmatpush1.msra.mxu0 0.0
    %3324 = vmatprep.subr.mxu0 0.0
    %3325 = vmatpush1.msra.mxu0 0.0
    %3326 = vmatprep.subr.mxu0 0.0
    %3327 = vmatpush1.msra.mxu0 0.0
    %3328 = vmatprep.subr.mxu0 0.0
    %3329 = vmatpush1.msra.mxu0 0.0
    %3330 = vmatprep.subr.mxu0 0.0
    %3331 = vmatpush1.msra.mxu0 0.0
    %3332 = vmatprep.subr.mxu0 0.0
    %3333 = vmatpush1.msra.mxu0 0.0
    %3334 = vmatprep.subr.mxu0 0.0
    %3335 = vmatpush1.msra.mxu0 0.0
    %3336 = vmatprep.subr.mxu0 0.0
    %3337 = vmatpush1.msra.mxu0 0.0
    %3338 = vmatprep.subr.mxu0 0.0
    %3339 = vmatpush1.msra.mxu0 0.0
    %3340 = vmatprep.subr.mxu0 0.0
    %3341 = vmatpush1.msra.mxu0 0.0
    %3342 = vmatprep.subr.mxu0 0.0
    %3343 = vmatpush1.msra.mxu0 0.0
    %3344 = vmatprep.subr.mxu0 0.0
    %3345 = vmatpush1.msra.mxu0 0.0
    %3346 = vmatprep.subr.mxu0 0.0
    %3347 = vmatpush1.msra.mxu0 0.0
    %3348 = vmatprep.subr.mxu0 0.0
    %3349 = vmatpush1.msra.mxu0 0.0
    %3350 = vmatprep.mubr.f32.mxu0 0.0
    %v3351 = vand.u32 %v3280, 4294901760
    %v3352 = vsub.f32 %v3280, %v3351
    %v3353 = vand.u32 %v3352, 4294901760
    %v3354 = vsub.f32 %v3352, %v3353
    %v3355 = vand.u32 %v3354, 4294901760
    %3356 = vmatmul.mubr.f32.gmra.mrb[0].mxu0 %v3355
    %v3357 = vpop.f32.mrb[0].mxu0
    %v3358 = vadd.f32 0.0, %v3357
    %v3359 = vpop.f32.mrb[0].mxu0
    %3360 = vdwg.mxu0
    %3361 = vmatprep.subr.mxu0 0.0
    %v3362 = vand.u32 %v1662, 4294901760
    %v3363 = vsub.f32 %v1662, %v3362
    %v3364 = vand.u32 %v3363, 4294901760
    %v3365 = vsub.f32 %v3363, %v3364
    %v3366 = vand.u32 %v3365, 4294901760
    %3367 = vmatpush1.msra.mxu0 %v3366
    %3368 = vmatprep.subr.mxu0 0.0
    %v3369 = vand.u32 %v1663, 4294901760
    %v3370 = vsub.f32 %v1663, %v3369
    %v3371 = vand.u32 %v3370, 4294901760
    %v3372 = vsub.f32 %v3370, %v3371
    %v3373 = vand.u32 %v3372, 4294901760
    %3374 = vmatpush1.msra.mxu0 %v3373
    %3375 = vmatprep.subr.mxu0 0.0
    %v3376 = vand.u32 %v1664, 4294901760
    %v3377 = vsub.f32 %v1664, %v3376
    %v3378 = vand.u32 %v3377, 4294901760
    %v3379 = vsub.f32 %v3377, %v3378
    %v3380 = vand.u32 %v3379, 4294901760
    %3381 = vmatpush1.msra.mxu0 %v3380
    %3382 = vmatprep.subr.mxu0 0.0
    %v3383 = vand.u32 %v1665, 4294901760
    %v3384 = vsub.f32 %v1665, %v3383
    %v3385 = vand.u32 %v3384, 4294901760
    %v3386 = vsub.f32 %v3384, %v3385
    %v3387 = vand.u32 %v3386, 4294901760
    %3388 = vmatpush1.msra.mxu0 %v3387
    %3389 = vmatprep.subr.mxu0 0.0
    %3390 = vmatpush1.msra.mxu0 0.0
    %3391 = vmatprep.subr.mxu0 0.0
    %3392 = vmatpush1.msra.mxu0 0.0
    %3393 = vmatprep.subr.mxu0 0.0
    %3394 = vmatpush1.msra.mxu0 0.0
    %3395 = vmatprep.subr.mxu0 0.0
    %3396 = vmatpush1.msra.mxu0 0.0
    %3397 = vmatprep.subr.mxu0 0.0
    %3398 = vmatpush1.msra.mxu0 0.0
    %3399 = vmatprep.subr.mxu0 0.0
    %3400 = vmatpush1.msra.mxu0 0.0
    %3401 = vmatprep.subr.mxu0 0.0
    %3402 = vmatpush1.msra.mxu0 0.0
    %3403 = vmatprep.subr.mxu0 0.0
    %3404 = vmatpush1.msra.mxu0 0.0
    %3405 = vmatprep.subr.mxu0 0.0
    %3406 = vmatpush1.msra.mxu0 0.0
    %3407 = vmatprep.subr.mxu0 0.0
    %3408 = vmatpush1.msra.mxu0 0.0
    %3409 = vmatprep.subr.mxu0 0.0
    %3410 = vmatpush1.msra.mxu0 0.0
    %3411 = vmatprep.subr.mxu0 0.0
    %3412 = vmatpush1.msra.mxu0 0.0
    %3413 = vmatprep.subr.mxu0 0.0
    %3414 = vmatpush1.msra.mxu0 0.0
    %3415 = vmatprep.subr.mxu0 0.0
    %3416 = vmatpush1.msra.mxu0 0.0
    %3417 = vmatprep.subr.mxu0 0.0
    %3418 = vmatpush1.msra.mxu0 0.0
    %3419 = vmatprep.subr.mxu0 0.0
    %3420 = vmatpush1.msra.mxu0 0.0
    %3421 = vmatprep.subr.mxu0 0.0
    %3422 = vmatpush1.msra.mxu0 0.0
    %3423 = vmatprep.subr.mxu0 0.0
    %3424 = vmatpush1.msra.mxu0 0.0
    %3425 = vmatprep.subr.mxu0 0.0
    %3426 = vmatpush1.msra.mxu0 0.0
    %3427 = vmatprep.subr.mxu0 0.0
    %3428 = vmatpush1.msra.mxu0 0.0
    %3429 = vmatprep.subr.mxu0 0.0
    %3430 = vmatpush1.msra.mxu0 0.0
    %3431 = vmatprep.subr.mxu0 0.0
    %3432 = vmatpush1.msra.mxu0 0.0
    %3433 = vmatprep.subr.mxu0 0.0
    %3434 = vmatpush1.msra.mxu0 0.0
    %3435 = vmatprep.subr.mxu0 0.0
    %3436 = vmatpush1.msra.mxu0 0.0
    %3437 = vmatprep.subr.mxu0 0.0
    %3438 = vmatpush1.msra.mxu0 0.0
    %3439 = vmatprep.subr.mxu0 0.0
    %3440 = vmatpush1.msra.mxu0 0.0
    %3441 = vmatprep.subr.mxu0 0.0
    %3442 = vmatpush1.msra.mxu0 0.0
    %3443 = vmatprep.subr.mxu0 0.0
    %3444 = vmatpush1.msra.mxu0 0.0
    %3445 = vmatprep.mubr.f32.mxu0 0.0
    %v3446 = vand.u32 %v3280, 4294901760
    %3447 = vmatmul.mubr.f32.gmra.mrb[0].mxu0 %v3446
    %v3448 = vpop.f32.mrb[0].mxu0
    %v3449 = vadd.f32 %v3358, %v3448
    %v3450 = vpop.f32.mrb[0].mxu0
    %3451 = vdwg.mxu0
    %3452 = vmatprep.subr.mxu0 0.0
    %v3453 = vand.u32 %v1662, 4294901760
    %v3454 = vsub.f32 %v1662, %v3453
    %3455 = vmatpush1.msra.mxu0 %v3454
    %3456 = vmatprep.subr.mxu0 0.0
    %v3457 = vand.u32 %v1663, 4294901760
    %v3458 = vsub.f32 %v1663, %v3457
    %3459 = vmatpush1.msra.mxu0 %v3458
    %3460 = vmatprep.subr.mxu0 0.0
    %v3461 = vand.u32 %v1664, 4294901760
    %v3462 = vsub.f32 %v1664, %v3461
    %3463 = vmatpush1.msra.mxu0 %v3462
    %3464 = vmatprep.subr.mxu0 0.0
    %v3465 = vand.u32 %v1665, 4294901760
    %v3466 = vsub.f32 %v1665, %v3465
    %3467 = vmatpush1.msra.mxu0 %v3466
    %3468 = vmatprep.subr.mxu0 0.0
    %3469 = vmatpush1.msra.mxu0 0.0
    %3470 = vmatprep.subr.mxu0 0.0
    %3471 = vmatpush1.msra.mxu0 0.0
    %3472 = vmatprep.subr.mxu0 0.0
    %3473 = vmatpush1.msra.mxu0 0.0
    %3474 = vmatprep.subr.mxu0 0.0
    %3475 = vmatpush1.msra.mxu0 0.0
    %3476 = vmatprep.subr.mxu0 0.0
    %3477 = vmatpush1.msra.mxu0 0.0
    %3478 = vmatprep.subr.mxu0 0.0
    %3479 = vmatpush1.msra.mxu0 0.0
    %3480 = vmatprep.subr.mxu0 0.0
    %3481 = vmatpush1.msra.mxu0 0.0
    %3482 = vmatprep.subr.mxu0 0.0
    %3483 = vmatpush1.msra.mxu0 0.0
    %3484 = vmatprep.subr.mxu0 0.0
    %3485 = vmatpush1.msra.mxu0 0.0
    %3486 = vmatprep.subr.mxu0 0.0
    %3487 = vmatpush1.msra.mxu0 0.0
    %3488 = vmatprep.subr.mxu0 0.0
    %3489 = vmatpush1.msra.mxu0 0.0
    %3490 = vmatprep.subr.mxu0 0.0
    %3491 = vmatpush1.msra.mxu0 0.0
    %3492 = vmatprep.subr.mxu0 0.0
    %3493 = vmatpush1.msra.mxu0 0.0
    %3494 = vmatprep.subr.mxu0 0.0
    %3495 = vmatpush1.msra.mxu0 0.0
    %3496 = vmatprep.subr.mxu0 0.0
    %3497 = vmatpush1.msra.mxu0 0.0
    %3498 = vmatprep.subr.mxu0 0.0
    %3499 = vmatpush1.msra.mxu0 0.0
    %3500 = vmatprep.subr.mxu0 0.0
    %3501 = vmatpush1.msra.mxu0 0.0
    %3502 = vmatprep.subr.mxu0 0.0
    %3503 = vmatpush1.msra.mxu0 0.0
    %3504 = vmatprep.subr.mxu0 0.0
    %3505 = vmatpush1.msra.mxu0 0.0
    %3506 = vmatprep.subr.mxu0 0.0
    %3507 = vmatpush1.msra.mxu0 0.0
    %3508 = vmatprep.subr.mxu0 0.0
    %3509 = vmatpush1.msra.mxu0 0.0
    %3510 = vmatprep.subr.mxu0 0.0
    %3511 = vmatpush1.msra.mxu0 0.0
    %3512 = vmatprep.subr.mxu0 0.0
    %3513 = vmatpush1.msra.mxu0 0.0
    %3514 = vmatprep.subr.mxu0 0.0
    %3515 = vmatpush1.msra.mxu0 0.0
    %3516 = vmatprep.subr.mxu0 0.0
    %3517 = vmatpush1.msra.mxu0 0.0
    %3518 = vmatprep.subr.mxu0 0.0
    %3519 = vmatpush1.msra.mxu0 0.0
    %3520 = vmatprep.subr.mxu0 0.0
    %3521 = vmatpush1.msra.mxu0 0.0
    %3522 = vmatprep.subr.mxu0 0.0
    %3523 = vmatpush1.msra.mxu0 0.0
    %3524 = vmatprep.mubr.f32.mxu0 0.0
    %v3525 = vand.u32 %v3280, 4294901760
    %v3526 = vsub.f32 %v3280, %v3525
    %3527 = vmatmul.mubr.f32.gmra.mrb[0].mxu0 %v3526
    %v3528 = vpop.f32.mrb[0].mxu0
    %v3529 = vadd.f32 %v3449, %v3528
    %v3530 = vpop.f32.mrb[0].mxu0
    %3531 = vdwg.mxu0
    %3532 = vmatprep.subr.mxu0 0.0
    %v3533 = vand.u32 %v1662, 4294901760
    %3534 = vmatpush1.msra.mxu0 %v3533
    %3535 = vmatprep.subr.mxu0 0.0
    %v3536 = vand.u32 %v1663, 4294901760
    %3537 = vmatpush1.msra.mxu0 %v3536
    %3538 = vmatprep.subr.mxu0 0.0
    %v3539 = vand.u32 %v1664, 4294901760
    %3540 = vmatpush1.msra.mxu0 %v3539
    %3541 = vmatprep.subr.mxu0 0.0
    %v3542 = vand.u32 %v1665, 4294901760
    %3543 = vmatpush1.msra.mxu0 %v3542
    %3544 = vmatprep.subr.mxu0 0.0
    %3545 = vmatpush1.msra.mxu0 0.0
    %3546 = vmatprep.subr.mxu0 0.0
    %3547 = vmatpush1.msra.mxu0 0.0
    %3548 = vmatprep.subr.mxu0 0.0
    %3549 = vmatpush1.msra.mxu0 0.0
    %3550 = vmatprep.subr.mxu0 0.0
    %3551 = vmatpush1.msra.mxu0 0.0
    %3552 = vmatprep.subr.mxu0 0.0
    %3553 = vmatpush1.msra.mxu0 0.0
    %3554 = vmatprep.subr.mxu0 0.0
    %3555 = vmatpush1.msra.mxu0 0.0
    %3556 = vmatprep.subr.mxu0 0.0
    %3557 = vmatpush1.msra.mxu0 0.0
    %3558 = vmatprep.subr.mxu0 0.0
    %3559 = vmatpush1.msra.mxu0 0.0
    %3560 = vmatprep.subr.mxu0 0.0
    %3561 = vmatpush1.msra.mxu0 0.0
    %3562 = vmatprep.subr.mxu0 0.0
    %3563 = vmatpush1.msra.mxu0 0.0
    %3564 = vmatprep.subr.mxu0 0.0
    %3565 = vmatpush1.msra.mxu0 0.0
    %3566 = vmatprep.subr.mxu0 0.0
    %3567 = vmatpush1.msra.mxu0 0.0
    %3568 = vmatprep.subr.mxu0 0.0
    %3569 = vmatpush1.msra.mxu0 0.0
    %3570 = vmatprep.subr.mxu0 0.0
    %3571 = vmatpush1.msra.mxu0 0.0
    %3572 = vmatprep.subr.mxu0 0.0
    %3573 = vmatpush1.msra.mxu0 0.0
    %3574 = vmatprep.subr.mxu0 0.0
    %3575 = vmatpush1.msra.mxu0 0.0
    %3576 = vmatprep.subr.mxu0 0.0
    %3577 = vmatpush1.msra.mxu0 0.0
    %3578 = vmatprep.subr.mxu0 0.0
    %3579 = vmatpush1.msra.mxu0 0.0
    %3580 = vmatprep.subr.mxu0 0.0
    %3581 = vmatpush1.msra.mxu0 0.0
    %3582 = vmatprep.subr.mxu0 0.0
    %3583 = vmatpush1.msra.mxu0 0.0
    %3584 = vmatprep.subr.mxu0 0.0
    %3585 = vmatpush1.msra.mxu0 0.0
    %3586 = vmatprep.subr.mxu0 0.0
    %3587 = vmatpush1.msra.mxu0 0.0
    %3588 = vmatprep.subr.mxu0 0.0
    %3589 = vmatpush1.msra.mxu0 0.0
    %3590 = vmatprep.subr.mxu0 0.0
    %3591 = vmatpush1.msra.mxu0 0.0
    %3592 = vmatprep.subr.mxu0 0.0
    %3593 = vmatpush1.msra.mxu0 0.0
    %3594 = vmatprep.subr.mxu0 0.0
    %3595 = vmatpush1.msra.mxu0 0.0
    %3596 = vmatprep.subr.mxu0 0.0
    %3597 = vmatpush1.msra.mxu0 0.0
    %3598 = vmatprep.subr.mxu0 0.0
    %3599 = vmatpush1.msra.mxu0 0.0
    %3600 = vmatprep.mubr.f32.mxu0 0.0
    %v3601 = vand.u32 %v3280, 4294901760
    %v3602 = vsub.f32 %v3280, %v3601
    %v3603 = vand.u32 %v3602, 4294901760
    %3604 = vmatmul.mubr.f32.gmra.mrb[0].mxu0 %v3603
    %v3605 = vpop.f32.mrb[0].mxu0
    %v3606 = vadd.f32 %v3529, %v3605
    %v3607 = vpop.f32.mrb[0].mxu0
    %3608 = vdwg.mxu0
    %3609 = vmatprep.subr.mxu0 0.0
    %v3610 = vand.u32 %v1662, 4294901760
    %v3611 = vsub.f32 %v1662, %v3610
    %v3612 = vand.u32 %v3611, 4294901760
    %3613 = vmatpush1.msra.mxu0 %v3612
    %3614 = vmatprep.subr.mxu0 0.0
    %v3615 = vand.u32 %v1663, 4294901760
    %v3616 = vsub.f32 %v1663, %v3615
    %v3617 = vand.u32 %v3616, 4294901760
    %3618 = vmatpush1.msra.mxu0 %v3617
    %3619 = vmatprep.subr.mxu0 0.0
    %v3620 = vand.u32 %v1664, 4294901760
    %v3621 = vsub.f32 %v1664, %v3620
    %v3622 = vand.u32 %v3621, 4294901760
    %3623 = vmatpush1.msra.mxu0 %v3622
    %3624 = vmatprep.subr.mxu0 0.0
    %v3625 = vand.u32 %v1665, 4294901760
    %v3626 = vsub.f32 %v1665, %v3625
    %v3627 = vand.u32 %v3626, 4294901760
    %3628 = vmatpush1.msra.mxu0 %v3627
    %3629 = vmatprep.subr.mxu0 0.0
    %3630 = vmatpush1.msra.mxu0 0.0
    %3631 = vmatprep.subr.mxu0 0.0
    %3632 = vmatpush1.msra.mxu0 0.0
    %3633 = vmatprep.subr.mxu0 0.0
    %3634 = vmatpush1.msra.mxu0 0.0
    %3635 = vmatprep.subr.mxu0 0.0
    %3636 = vmatpush1.msra.mxu0 0.0
    %3637 = vmatprep.subr.mxu0 0.0
    %3638 = vmatpush1.msra.mxu0 0.0
    %3639 = vmatprep.subr.mxu0 0.0
    %3640 = vmatpush1.msra.mxu0 0.0
    %3641 = vmatprep.subr.mxu0 0.0
    %3642 = vmatpush1.msra.mxu0 0.0
    %3643 = vmatprep.subr.mxu0 0.0
    %3644 = vmatpush1.msra.mxu0 0.0
    %3645 = vmatprep.subr.mxu0 0.0
    %3646 = vmatpush1.msra.mxu0 0.0
    %3647 = vmatprep.subr.mxu0 0.0
    %3648 = vmatpush1.msra.mxu0 0.0
    %3649 = vmatprep.subr.mxu0 0.0
    %3650 = vmatpush1.msra.mxu0 0.0
    %3651 = vmatprep.subr.mxu0 0.0
    %3652 = vmatpush1.msra.mxu0 0.0
    %3653 = vmatprep.subr.mxu0 0.0
    %3654 = vmatpush1.msra.mxu0 0.0
    %3655 = vmatprep.subr.mxu0 0.0
    %3656 = vmatpush1.msra.mxu0 0.0
    %3657 = vmatprep.subr.mxu0 0.0
    %3658 = vmatpush1.msra.mxu0 0.0
    %3659 = vmatprep.subr.mxu0 0.0
    %3660 = vmatpush1.msra.mxu0 0.0
    %3661 = vmatprep.subr.mxu0 0.0
    %3662 = vmatpush1.msra.mxu0 0.0
    %3663 = vmatprep.subr.mxu0 0.0
    %3664 = vmatpush1.msra.mxu0 0.0
    %3665 = vmatprep.subr.mxu0 0.0
    %3666 = vmatpush1.msra.mxu0 0.0
    %3667 = vmatprep.subr.mxu0 0.0
    %3668 = vmatpush1.msra.mxu0 0.0
    %3669 = vmatprep.subr.mxu0 0.0
    %3670 = vmatpush1.msra.mxu0 0.0
    %3671 = vmatprep.subr.mxu0 0.0
    %3672 = vmatpush1.msra.mxu0 0.0
    %3673 = vmatprep.subr.mxu0 0.0
    %3674 = vmatpush1.msra.mxu0 0.0
    %3675 = vmatprep.subr.mxu0 0.0
    %3676 = vmatpush1.msra.mxu0 0.0
    %3677 = vmatprep.subr.mxu0 0.0
    %3678 = vmatpush1.msra.mxu0 0.0
    %3679 = vmatprep.subr.mxu0 0.0
    %3680 = vmatpush1.msra.mxu0 0.0
    %3681 = vmatprep.subr.mxu0 0.0
    %3682 = vmatpush1.msra.mxu0 0.0
    %3683 = vmatprep.subr.mxu0 0.0
    %3684 = vmatpush1.msra.mxu0 0.0
    %3685 = vmatprep.mubr.f32.mxu0 0.0
    %v3686 = vand.u32 %v3280, 4294901760
    %3687 = vmatmul.mubr.f32.gmra.mrb[0].mxu0 %v3686
    %v3688 = vpop.f32.mrb[0].mxu0
    %v3689 = vadd.f32 %v3606, %v3688
    %v3690 = vpop.f32.mrb[0].mxu0
    %3691 = vdwg.mxu0
    %3692 = vmatprep.subr.mxu0 0.0
    %v3693 = vand.u32 %v1662, 4294901760
    %3694 = vmatpush1.msra.mxu0 %v3693
    %3695 = vmatprep.subr.mxu0 0.0
    %v3696 = vand.u32 %v1663, 4294901760
    %3697 = vmatpush1.msra.mxu0 %v3696
    %3698 = vmatprep.subr.mxu0 0.0
    %v3699 = vand.u32 %v1664, 4294901760
    %3700 = vmatpush1.msra.mxu0 %v3699
    %3701 = vmatprep.subr.mxu0 0.0
    %v3702 = vand.u32 %v1665, 4294901760
    %3703 = vmatpush1.msra.mxu0 %v3702
    %3704 = vmatprep.subr.mxu0 0.0
    %3705 = vmatpush1.msra.mxu0 0.0
    %3706 = vmatprep.subr.mxu0 0.0
    %3707 = vmatpush1.msra.mxu0 0.0
    %3708 = vmatprep.subr.mxu0 0.0
    %3709 = vmatpush1.msra.mxu0 0.0
    %3710 = vmatprep.subr.mxu0 0.0
    %3711 = vmatpush1.msra.mxu0 0.0
    %3712 = vmatprep.subr.mxu0 0.0
    %3713 = vmatpush1.msra.mxu0 0.0
    %3714 = vmatprep.subr.mxu0 0.0
    %3715 = vmatpush1.msra.mxu0 0.0
    %3716 = vmatprep.subr.mxu0 0.0
    %3717 = vmatpush1.msra.mxu0 0.0
    %3718 = vmatprep.subr.mxu0 0.0
    %3719 = vmatpush1.msra.mxu0 0.0
    %3720 = vmatprep.subr.mxu0 0.0
    %3721 = vmatpush1.msra.mxu0 0.0
    %3722 = vmatprep.subr.mxu0 0.0
    %3723 = vmatpush1.msra.mxu0 0.0
    %3724 = vmatprep.subr.mxu0 0.0
    %3725 = vmatpush1.msra.mxu0 0.0
    %3726 = vmatprep.subr.mxu0 0.0
    %3727 = vmatpush1.msra.mxu0 0.0
    %3728 = vmatprep.subr.mxu0 0.0
    %3729 = vmatpush1.msra.mxu0 0.0
    %3730 = vmatprep.subr.mxu0 0.0
    %3731 = vmatpush1.msra.mxu0 0.0
    %3732 = vmatprep.subr.mxu0 0.0
    %3733 = vmatpush1.msra.mxu0 0.0
    %3734 = vmatprep.subr.mxu0 0.0
    %3735 = vmatpush1.msra.mxu0 0.0
    %3736 = vmatprep.subr.mxu0 0.0
    %3737 = vmatpush1.msra.mxu0 0.0
    %3738 = vmatprep.subr.mxu0 0.0
    %3739 = vmatpush1.msra.mxu0 0.0
    %3740 = vmatprep.subr.mxu0 0.0
    %3741 = vmatpush1.msra.mxu0 0.0
    %3742 = vmatprep.subr.mxu0 0.0
    %3743 = vmatpush1.msra.mxu0 0.0
    %3744 = vmatprep.subr.mxu0 0.0
    %3745 = vmatpush1.msra.mxu0 0.0
    %3746 = vmatprep.subr.mxu0 0.0
    %3747 = vmatpush1.msra.mxu0 0.0
    %3748 = vmatprep.subr.mxu0 0.0
    %3749 = vmatpush1.msra.mxu0 0.0
    %3750 = vmatprep.subr.mxu0 0.0
    %3751 = vmatpush1.msra.mxu0 0.0
    %3752 = vmatprep.subr.mxu0 0.0
    %3753 = vmatpush1.msra.mxu0 0.0
    %3754 = vmatprep.subr.mxu0 0.0
    %3755 = vmatpush1.msra.mxu0 0.0
    %3756 = vmatprep.subr.mxu0 0.0
    %3757 = vmatpush1.msra.mxu0 0.0
    %3758 = vmatprep.subr.mxu0 0.0
    %3759 = vmatpush1.msra.mxu0 0.0
    %3760 = vmatprep.mubr.f32.mxu0 0.0
    %v3761 = vand.u32 %v3280, 4294901760
    %3762 = vmatmul.mubr.f32.gmra.mrb[0].mxu0 %v3761
    %v3763 = vpop.f32.mrb[0].mxu0
    %v3764 = vadd.f32 %v3689, %v3763
    %v3765 = vpop.f32.mrb[0].mxu0
    %3766 = vdwg.mxu0
    %v3768 = vrot.slane %v3764, 2
    %v3770 = vadd.f32 %v2174, %v3768
    %v3771 = vadd.f32 %v3770, %v2181
    %v3772 = vmul.f32 %v3771, 0.5
    %v3773 = vtanh.pop %v3772
    %v3774 = vmul.f32 %v3773, 0.5
    %v3775 = vadd.f32 %v3774, 0.5
    %v3776 = vadd.f32 %v3764, %v2199
    %v3778 = vrot.slane %v3776, 2
    %3779 = vrot.lane.b32.xlu0 %v3778, 64
    %v3780 = vpop.permute.xlu0 %3779
    %v3782 = vmul.f32 %v3775, %v3780
    %3784 = vrot.lane.b32.xlu0 %v3782, 64
    %v3785 = vpop.permute.xlu0 %3784
    %v3787 = vadd.f32 %v2194, %v3785
    %v3788 = vtanh.pop %v3787
    %v3790 = vrot.slane %v3788, 2
    %v3792 = vsub.f32 %v3275, %v3790
    %v3794 = vrot.slane %v3792, 6
    %3795 = vrot.lane.b32.xlu0 %v3794, 96
    %v3796 = vpop.permute.xlu0 %3795
    %v3798 = vmul.f32 %v3775, %v3796
    %3800 = vrot.lane.b32.xlu0 %v3798, 32
    %v3801 = vpop.permute.xlu0 %3800
    %v3803 = vadd.f32 %v3788, %v3801
    %3805 = vrot.lane.b32.xlu0 %v3803, 64
    %v3806 = vpop.permute.xlu0 %3805
    %s3808 = scalar_lea.vmem [#allocation6], 2
    %vm3809 = vcmask 261126
    %3810 = vst.msk [vmem:[%s3808 - $0x6] sm:$0xc0] %vm3809, %v3806
    %v3811 = vrot.slane %v2747, 1
    %v3813 = vrot.slane %v3275, 2
    %v3815 = vrot.slane %v3803, 3
    %v3817 = vrot.slane %v2220, 5
    %v3819 = vrot.slane %v2747, 6
    %v3821 = vrot.slane %v3275, 7
    %vm3823 = vcmask 1040384
    %v3824 = vsel %vm3823, %v2220, %v3811
    %v3825 = vsel %vm1677, %v3824, %v3813
    %vm3826 = vcmask 1042432
    %v3827 = vsel %vm3826, %v3825, %v3815
    %v3828 = vsel %vm1679, %v3827, %v3817
    %vm3829 = vcmask 1044480
    %v3830 = vsel %vm3829, %v3828, %v3819
    %v3831 = vsel %vm1681, %v3830, %v3821
    %vm3832 = vcmask 1046528
    %v3833 = vsel %vm3832, %v3831, %v3803
    %v3834 = vld [vmem:[%s4] sm:$0xff]
    %v3835 = vld [vmem:[%s4 + $0x8] sm:$0xff]
    %v3836 = vld [vmem:[%s4 + $0x10] sm:$0xff]
    %v3837 = vld [vmem:[%s4 + $0x18] sm:$0xff]
    %v3838 = vld [vmem:[%s5] sm:$0x1]
    %v3840 = vlaneseq
    %v3841 = vshrl.u32 %v3840, 7
    %v3842 = vsub.s32 0, %v3841
    %v3843 = vrot.slane %v3838, %v3842
    %3846 = vrot.lane.b32.xlu0 %v3833, 64
    %v3847 = vpop.permute.xlu0 %3846
    %v3848 = vsel %vm83, %v3847, 0
    %3850 = vmatprep.subr.mxu0 0.0
    %v3851 = vand.u32 %v3834, 4294901760
    %3852 = vmatpush1.msra.mxu0 %v3851
    %3853 = vmatprep.subr.mxu0 0.0
    %v3854 = vand.u32 %v3835, 4294901760
    %3855 = vmatpush1.msra.mxu0 %v3854
    %3856 = vmatprep.subr.mxu0 0.0
    %v3857 = vand.u32 %v3836, 4294901760
    %3858 = vmatpush1.msra.mxu0 %v3857
    %3859 = vmatprep.subr.mxu0 0.0
    %v3860 = vand.u32 %v3837, 4294901760
    %3861 = vmatpush1.msra.mxu0 %v3860
    %3862 = vmatprep.subr.mxu0 0.0
    %3863 = vmatpush1.msra.mxu0 0.0
    %3864 = vmatprep.subr.mxu0 0.0
    %3865 = vmatpush1.msra.mxu0 0.0
    %3866 = vmatprep.subr.mxu0 0.0
    %3867 = vmatpush1.msra.mxu0 0.0
    %3868 = vmatprep.subr.mxu0 0.0
    %3869 = vmatpush1.msra.mxu0 0.0
    %3870 = vmatprep.subr.mxu0 0.0
    %3871 = vmatpush1.msra.mxu0 0.0
    %3872 = vmatprep.subr.mxu0 0.0
    %3873 = vmatpush1.msra.mxu0 0.0
    %3874 = vmatprep.subr.mxu0 0.0
    %3875 = vmatpush1.msra.mxu0 0.0
    %3876 = vmatprep.subr.mxu0 0.0
    %3877 = vmatpush1.msra.mxu0 0.0
    %3878 = vmatprep.subr.mxu0 0.0
    %3879 = vmatpush1.msra.mxu0 0.0
    %3880 = vmatprep.subr.mxu0 0.0
    %3881 = vmatpush1.msra.mxu0 0.0
    %3882 = vmatprep.subr.mxu0 0.0
    %3883 = vmatpush1.msra.mxu0 0.0
    %3884 = vmatprep.subr.mxu0 0.0
    %3885 = vmatpush1.msra.mxu0 0.0
    %3886 = vmatprep.subr.mxu0 0.0
    %3887 = vmatpush1.msra.mxu0 0.0
    %3888 = vmatprep.subr.mxu0 0.0
    %3889 = vmatpush1.msra.mxu0 0.0
    %3890 = vmatprep.subr.mxu0 0.0
    %3891 = vmatpush1.msra.mxu0 0.0
    %3892 = vmatprep.subr.mxu0 0.0
    %3893 = vmatpush1.msra.mxu0 0.0
    %3894 = vmatprep.subr.mxu0 0.0
    %3895 = vmatpush1.msra.mxu0 0.0
    %3896 = vmatprep.subr.mxu0 0.0
    %3897 = vmatpush1.msra.mxu0 0.0
    %3898 = vmatprep.subr.mxu0 0.0
    %3899 = vmatpush1.msra.mxu0 0.0
    %3900 = vmatprep.subr.mxu0 0.0
    %3901 = vmatpush1.msra.mxu0 0.0
    %3902 = vmatprep.subr.mxu0 0.0
    %3903 = vmatpush1.msra.mxu0 0.0
    %3904 = vmatprep.subr.mxu0 0.0
    %3905 = vmatpush1.msra.mxu0 0.0
    %3906 = vmatprep.subr.mxu0 0.0
    %3907 = vmatpush1.msra.mxu0 0.0
    %3908 = vmatprep.subr.mxu0 0.0
    %3909 = vmatpush1.msra.mxu0 0.0
    %3910 = vmatprep.subr.mxu0 0.0
    %3911 = vmatpush1.msra.mxu0 0.0
    %3912 = vmatprep.subr.mxu0 0.0
    %3913 = vmatpush1.msra.mxu0 0.0
    %3914 = vmatprep.subr.mxu0 0.0
    %3915 = vmatpush1.msra.mxu0 0.0
    %3916 = vmatprep.subr.mxu0 0.0
    %3917 = vmatpush1.msra.mxu0 0.0
    %3918 = vmatprep.mubr.f32.mxu0 0.0
    %v3919 = vand.u32 %v3848, 4294901760
    %v3920 = vsub.f32 %v3848, %v3919
    %v3921 = vand.u32 %v3920, 4294901760
    %v3922 = vsub.f32 %v3920, %v3921
    %v3923 = vand.u32 %v3922, 4294901760
    %3924 = vmatmul.mubr.f32.gmra.mrb[0].mxu0 %v3923
    %v3925 = vpop.f32.mrb[0].mxu0
    %v3926 = vadd.f32 %v3843, %v3925
    %v3927 = vpop.f32.mrb[0].mxu0
    %3928 = vdwg.mxu0
    %3929 = vmatprep.subr.mxu0 0.0
    %v3930 = vand.u32 %v3834, 4294901760
    %v3931 = vsub.f32 %v3834, %v3930
    %v3932 = vand.u32 %v3931, 4294901760
    %v3933 = vsub.f32 %v3931, %v3932
    %v3934 = vand.u32 %v3933, 4294901760
    %3935 = vmatpush1.msra.mxu0 %v3934
    %3936 = vmatprep.subr.mxu0 0.0
    %v3937 = vand.u32 %v3835, 4294901760
    %v3938 = vsub.f32 %v3835, %v3937
    %v3939 = vand.u32 %v3938, 4294901760
    %v3940 = vsub.f32 %v3938, %v3939
    %v3941 = vand.u32 %v3940, 4294901760
    %3942 = vmatpush1.msra.mxu0 %v3941
    %3943 = vmatprep.subr.mxu0 0.0
    %v3944 = vand.u32 %v3836, 4294901760
    %v3945 = vsub.f32 %v3836, %v3944
    %v3946 = vand.u32 %v3945, 4294901760
    %v3947 = vsub.f32 %v3945, %v3946
    %v3948 = vand.u32 %v3947, 4294901760
    %3949 = vmatpush1.msra.mxu0 %v3948
    %3950 = vmatprep.subr.mxu0 0.0
    %v3951 = vand.u32 %v3837, 4294901760
    %v3952 = vsub.f32 %v3837, %v3951
    %v3953 = vand.u32 %v3952, 4294901760
    %v3954 = vsub.f32 %v3952, %v3953
    %v3955 = vand.u32 %v3954, 4294901760
    %3956 = vmatpush1.msra.mxu0 %v3955
    %3957 = vmatprep.subr.mxu0 0.0
    %3958 = vmatpush1.msra.mxu0 0.0
    %3959 = vmatprep.subr.mxu0 0.0
    %3960 = vmatpush1.msra.mxu0 0.0
    %3961 = vmatprep.subr.mxu0 0.0
    %3962 = vmatpush1.msra.mxu0 0.0
    %3963 = vmatprep.subr.mxu0 0.0
    %3964 = vmatpush1.msra.mxu0 0.0
    %3965 = vmatprep.subr.mxu0 0.0
    %3966 = vmatpush1.msra.mxu0 0.0
    %3967 = vmatprep.subr.mxu0 0.0
    %3968 = vmatpush1.msra.mxu0 0.0
    %3969 = vmatprep.subr.mxu0 0.0
    %3970 = vmatpush1.msra.mxu0 0.0
    %3971 = vmatprep.subr.mxu0 0.0
    %3972 = vmatpush1.msra.mxu0 0.0
    %3973 = vmatprep.subr.mxu0 0.0
    %3974 = vmatpush1.msra.mxu0 0.0
    %3975 = vmatprep.subr.mxu0 0.0
    %3976 = vmatpush1.msra.mxu0 0.0
    %3977 = vmatprep.subr.mxu0 0.0
    %3978 = vmatpush1.msra.mxu0 0.0
    %3979 = vmatprep.subr.mxu0 0.0
    %3980 = vmatpush1.msra.mxu0 0.0
    %3981 = vmatprep.subr.mxu0 0.0
    %3982 = vmatpush1.msra.mxu0 0.0
    %3983 = vmatprep.subr.mxu0 0.0
    %3984 = vmatpush1.msra.mxu0 0.0
    %3985 = vmatprep.subr.mxu0 0.0
    %3986 = vmatpush1.msra.mxu0 0.0
    %3987 = vmatprep.subr.mxu0 0.0
    %3988 = vmatpush1.msra.mxu0 0.0
    %3989 = vmatprep.subr.mxu0 0.0
    %3990 = vmatpush1.msra.mxu0 0.0
    %3991 = vmatprep.subr.mxu0 0.0
    %3992 = vmatpush1.msra.mxu0 0.0
    %3993 = vmatprep.subr.mxu0 0.0
    %3994 = vmatpush1.msra.mxu0 0.0
    %3995 = vmatprep.subr.mxu0 0.0
    %3996 = vmatpush1.msra.mxu0 0.0
    %3997 = vmatprep.subr.mxu0 0.0
    %3998 = vmatpush1.msra.mxu0 0.0
    %3999 = vmatprep.subr.mxu0 0.0
    %4000 = vmatpush1.msra.mxu0 0.0
    %4001 = vmatprep.subr.mxu0 0.0
    %4002 = vmatpush1.msra.mxu0 0.0
    %4003 = vmatprep.subr.mxu0 0.0
    %4004 = vmatpush1.msra.mxu0 0.0
    %4005 = vmatprep.subr.mxu0 0.0
    %4006 = vmatpush1.msra.mxu0 0.0
    %4007 = vmatprep.subr.mxu0 0.0
    %4008 = vmatpush1.msra.mxu0 0.0
    %4009 = vmatprep.subr.mxu0 0.0
    %4010 = vmatpush1.msra.mxu0 0.0
    %4011 = vmatprep.subr.mxu0 0.0
    %4012 = vmatpush1.msra.mxu0 0.0
    %4013 = vmatprep.mubr.f32.mxu0 0.0
    %v4014 = vand.u32 %v3848, 4294901760
    %4015 = vmatmul.mubr.f32.gmra.mrb[0].mxu0 %v4014
    %v4016 = vpop.f32.mrb[0].mxu0
    %v4017 = vadd.f32 %v3926, %v4016
    %v4018 = vpop.f32.mrb[0].mxu0
    %4019 = vdwg.mxu0
    %4020 = vmatprep.subr.mxu0 0.0
    %v4021 = vand.u32 %v3834, 4294901760
    %v4022 = vsub.f32 %v3834, %v4021
    %4023 = vmatpush1.msra.mxu0 %v4022
    %4024 = vmatprep.subr.mxu0 0.0
    %v4025 = vand.u32 %v3835, 4294901760
    %v4026 = vsub.f32 %v3835, %v4025
    %4027 = vmatpush1.msra.mxu0 %v4026
    %4028 = vmatprep.subr.mxu0 0.0
    %v4029 = vand.u32 %v3836, 4294901760
    %v4030 = vsub.f32 %v3836, %v4029
    %4031 = vmatpush1.msra.mxu0 %v4030
    %4032 = vmatprep.subr.mxu0 0.0
    %v4033 = vand.u32 %v3837, 4294901760
    %v4034 = vsub.f32 %v3837, %v4033
    %4035 = vmatpush1.msra.mxu0 %v4034
    %4036 = vmatprep.subr.mxu0 0.0
    %4037 = vmatpush1.msra.mxu0 0.0
    %4038 = vmatprep.subr.mxu0 0.0
    %4039 = vmatpush1.msra.mxu0 0.0
    %4040 = vmatprep.subr.mxu0 0.0
    %4041 = vmatpush1.msra.mxu0 0.0
    %4042 = vmatprep.subr.mxu0 0.0
    %4043 = vmatpush1.msra.mxu0 0.0
    %4044 = vmatprep.subr.mxu0 0.0
    %4045 = vmatpush1.msra.mxu0 0.0
    %4046 = vmatprep.subr.mxu0 0.0
    %4047 = vmatpush1.msra.mxu0 0.0
    %4048 = vmatprep.subr.mxu0 0.0
    %4049 = vmatpush1.msra.mxu0 0.0
    %4050 = vmatprep.subr.mxu0 0.0
    %4051 = vmatpush1.msra.mxu0 0.0
    %4052 = vmatprep.subr.mxu0 0.0
    %4053 = vmatpush1.msra.mxu0 0.0
    %4054 = vmatprep.subr.mxu0 0.0
    %4055 = vmatpush1.msra.mxu0 0.0
    %4056 = vmatprep.subr.mxu0 0.0
    %4057 = vmatpush1.msra.mxu0 0.0
    %4058 = vmatprep.subr.mxu0 0.0
    %4059 = vmatpush1.msra.mxu0 0.0
    %4060 = vmatprep.subr.mxu0 0.0
    %4061 = vmatpush1.msra.mxu0 0.0
    %4062 = vmatprep.subr.mxu0 0.0
    %4063 = vmatpush1.msra.mxu0 0.0
    %4064 = vmatprep.subr.mxu0 0.0
    %4065 = vmatpush1.msra.mxu0 0.0
    %4066 = vmatprep.subr.mxu0 0.0
    %4067 = vmatpush1.msra.mxu0 0.0
    %4068 = vmatprep.subr.mxu0 0.0
    %4069 = vmatpush1.msra.mxu0 0.0
    %4070 = vmatprep.subr.mxu0 0.0
    %4071 = vmatpush1.msra.mxu0 0.0
    %4072 = vmatprep.subr.mxu0 0.0
    %4073 = vmatpush1.msra.mxu0 0.0
    %4074 = vmatprep.subr.mxu0 0.0
    %4075 = vmatpush1.msra.mxu0 0.0
    %4076 = vmatprep.subr.mxu0 0.0
    %4077 = vmatpush1.msra.mxu0 0.0
    %4078 = vmatprep.subr.mxu0 0.0
    %4079 = vmatpush1.msra.mxu0 0.0
    %4080 = vmatprep.subr.mxu0 0.0
    %4081 = vmatpush1.msra.mxu0 0.0
    %4082 = vmatprep.subr.mxu0 0.0
    %4083 = vmatpush1.msra.mxu0 0.0
    %4084 = vmatprep.subr.mxu0 0.0
    %4085 = vmatpush1.msra.mxu0 0.0
    %4086 = vmatprep.subr.mxu0 0.0
    %4087 = vmatpush1.msra.mxu0 0.0
    %4088 = vmatprep.subr.mxu0 0.0
    %4089 = vmatpush1.msra.mxu0 0.0
    %4090 = vmatprep.subr.mxu0 0.0
    %4091 = vmatpush1.msra.mxu0 0.0
    %4092 = vmatprep.mubr.f32.mxu0 0.0
    %v4093 = vand.u32 %v3848, 4294901760
    %v4094 = vsub.f32 %v3848, %v4093
    %4095 = vmatmul.mubr.f32.gmra.mrb[0].mxu0 %v4094
    %v4096 = vpop.f32.mrb[0].mxu0
    %v4097 = vadd.f32 %v4017, %v4096
    %v4098 = vpop.f32.mrb[0].mxu0
    %4099 = vdwg.mxu0
    %4100 = vmatprep.subr.mxu0 0.0
    %v4101 = vand.u32 %v3834, 4294901760
    %4102 = vmatpush1.msra.mxu0 %v4101
    %4103 = vmatprep.subr.mxu0 0.0
    %v4104 = vand.u32 %v3835, 4294901760
    %4105 = vmatpush1.msra.mxu0 %v4104
    %4106 = vmatprep.subr.mxu0 0.0
    %v4107 = vand.u32 %v3836, 4294901760
    %4108 = vmatpush1.msra.mxu0 %v4107
    %4109 = vmatprep.subr.mxu0 0.0
    %v4110 = vand.u32 %v3837, 4294901760
    %4111 = vmatpush1.msra.mxu0 %v4110
    %4112 = vmatprep.subr.mxu0 0.0
    %4113 = vmatpush1.msra.mxu0 0.0
    %4114 = vmatprep.subr.mxu0 0.0
    %4115 = vmatpush1.msra.mxu0 0.0
    %4116 = vmatprep.subr.mxu0 0.0
    %4117 = vmatpush1.msra.mxu0 0.0
    %4118 = vmatprep.subr.mxu0 0.0
    %4119 = vmatpush1.msra.mxu0 0.0
    %4120 = vmatprep.subr.mxu0 0.0
    %4121 = vmatpush1.msra.mxu0 0.0
    %4122 = vmatprep.subr.mxu0 0.0
    %4123 = vmatpush1.msra.mxu0 0.0
    %4124 = vmatprep.subr.mxu0 0.0
    %4125 = vmatpush1.msra.mxu0 0.0
    %4126 = vmatprep.subr.mxu0 0.0
    %4127 = vmatpush1.msra.mxu0 0.0
    %4128 = vmatprep.subr.mxu0 0.0
    %4129 = vmatpush1.msra.mxu0 0.0
    %4130 = vmatprep.subr.mxu0 0.0
    %4131 = vmatpush1.msra.mxu0 0.0
    %4132 = vmatprep.subr.mxu0 0.0
    %4133 = vmatpush1.msra.mxu0 0.0
    %4134 = vmatprep.subr.mxu0 0.0
    %4135 = vmatpush1.msra.mxu0 0.0
    %4136 = vmatprep.subr.mxu0 0.0
    %4137 = vmatpush1.msra.mxu0 0.0
    %4138 = vmatprep.subr.mxu0 0.0
    %4139 = vmatpush1.msra.mxu0 0.0
    %4140 = vmatprep.subr.mxu0 0.0
    %4141 = vmatpush1.msra.mxu0 0.0
    %4142 = vmatprep.subr.mxu0 0.0
    %4143 = vmatpush1.msra.mxu0 0.0
    %4144 = vmatprep.subr.mxu0 0.0
    %4145 = vmatpush1.msra.mxu0 0.0
    %4146 = vmatprep.subr.mxu0 0.0
    %4147 = vmatpush1.msra.mxu0 0.0
    %4148 = vmatprep.subr.mxu0 0.0
    %4149 = vmatpush1.msra.mxu0 0.0
    %4150 = vmatprep.subr.mxu0 0.0
    %4151 = vmatpush1.msra.mxu0 0.0
    %4152 = vmatprep.subr.mxu0 0.0
    %4153 = vmatpush1.msra.mxu0 0.0
    %4154 = vmatprep.subr.mxu0 0.0
    %4155 = vmatpush1.msra.mxu0 0.0
    %4156 = vmatprep.subr.mxu0 0.0
    %4157 = vmatpush1.msra.mxu0 0.0
    %4158 = vmatprep.subr.mxu0 0.0
    %4159 = vmatpush1.msra.mxu0 0.0
    %4160 = vmatprep.subr.mxu0 0.0
    %4161 = vmatpush1.msra.mxu0 0.0
    %4162 = vmatprep.subr.mxu0 0.0
    %4163 = vmatpush1.msra.mxu0 0.0
    %4164 = vmatprep.subr.mxu0 0.0
    %4165 = vmatpush1.msra.mxu0 0.0
    %4166 = vmatprep.subr.mxu0 0.0
    %4167 = vmatpush1.msra.mxu0 0.0
    %4168 = vmatprep.mubr.f32.mxu0 0.0
    %v4169 = vand.u32 %v3848, 4294901760
    %v4170 = vsub.f32 %v3848, %v4169
    %v4171 = vand.u32 %v4170, 4294901760
    %4172 = vmatmul.mubr.f32.gmra.mrb[0].mxu0 %v4171
    %v4173 = vpop.f32.mrb[0].mxu0
    %v4174 = vadd.f32 %v4097, %v4173
    %v4175 = vpop.f32.mrb[0].mxu0
    %4176 = vdwg.mxu0
    %4177 = vmatprep.subr.mxu0 0.0
    %v4178 = vand.u32 %v3834, 4294901760
    %v4179 = vsub.f32 %v3834, %v4178
    %v4180 = vand.u32 %v4179, 4294901760
    %4181 = vmatpush1.msra.mxu0 %v4180
    %4182 = vmatprep.subr.mxu0 0.0
    %v4183 = vand.u32 %v3835, 4294901760
    %v4184 = vsub.f32 %v3835, %v4183
    %v4185 = vand.u32 %v4184, 4294901760
    %4186 = vmatpush1.msra.mxu0 %v4185
    %4187 = vmatprep.subr.mxu0 0.0
    %v4188 = vand.u32 %v3836, 4294901760
    %v4189 = vsub.f32 %v3836, %v4188
    %v4190 = vand.u32 %v4189, 4294901760
    %4191 = vmatpush1.msra.mxu0 %v4190
    %4192 = vmatprep.subr.mxu0 0.0
    %v4193 = vand.u32 %v3837, 4294901760
    %v4194 = vsub.f32 %v3837, %v4193
    %v4195 = vand.u32 %v4194, 4294901760
    %4196 = vmatpush1.msra.mxu0 %v4195
    %4197 = vmatprep.subr.mxu0 0.0
    %4198 = vmatpush1.msra.mxu0 0.0
    %4199 = vmatprep.subr.mxu0 0.0
    %4200 = vmatpush1.msra.mxu0 0.0
    %4201 = vmatprep.subr.mxu0 0.0
    %4202 = vmatpush1.msra.mxu0 0.0
    %4203 = vmatprep.subr.mxu0 0.0
    %4204 = vmatpush1.msra.mxu0 0.0
    %4205 = vmatprep.subr.mxu0 0.0
    %4206 = vmatpush1.msra.mxu0 0.0
    %4207 = vmatprep.subr.mxu0 0.0
    %4208 = vmatpush1.msra.mxu0 0.0
    %4209 = vmatprep.subr.mxu0 0.0
    %4210 = vmatpush1.msra.mxu0 0.0
    %4211 = vmatprep.subr.mxu0 0.0
    %4212 = vmatpush1.msra.mxu0 0.0
    %4213 = vmatprep.subr.mxu0 0.0
    %4214 = vmatpush1.msra.mxu0 0.0
    %4215 = vmatprep.subr.mxu0 0.0
    %4216 = vmatpush1.msra.mxu0 0.0
    %4217 = vmatprep.subr.mxu0 0.0
    %4218 = vmatpush1.msra.mxu0 0.0
    %4219 = vmatprep.subr.mxu0 0.0
    %4220 = vmatpush1.msra.mxu0 0.0
    %4221 = vmatprep.subr.mxu0 0.0
    %4222 = vmatpush1.msra.mxu0 0.0
    %4223 = vmatprep.subr.mxu0 0.0
    %4224 = vmatpush1.msra.mxu0 0.0
    %4225 = vmatprep.subr.mxu0 0.0
    %4226 = vmatpush1.msra.mxu0 0.0
    %4227 = vmatprep.subr.mxu0 0.0
    %4228 = vmatpush1.msra.mxu0 0.0
    %4229 = vmatprep.subr.mxu0 0.0
    %4230 = vmatpush1.msra.mxu0 0.0
    %4231 = vmatprep.subr.mxu0 0.0
    %4232 = vmatpush1.msra.mxu0 0.0
    %4233 = vmatprep.subr.mxu0 0.0
    %4234 = vmatpush1.msra.mxu0 0.0
    %4235 = vmatprep.subr.mxu0 0.0
    %4236 = vmatpush1.msra.mxu0 0.0
    %4237 = vmatprep.subr.mxu0 0.0
    %4238 = vmatpush1.msra.mxu0 0.0
    %4239 = vmatprep.subr.mxu0 0.0
    %4240 = vmatpush1.msra.mxu0 0.0
    %4241 = vmatprep.subr.mxu0 0.0
    %4242 = vmatpush1.msra.mxu0 0.0
    %4243 = vmatprep.subr.mxu0 0.0
    %4244 = vmatpush1.msra.mxu0 0.0
    %4245 = vmatprep.subr.mxu0 0.0
    %4246 = vmatpush1.msra.mxu0 0.0
    %4247 = vmatprep.subr.mxu0 0.0
    %4248 = vmatpush1.msra.mxu0 0.0
    %4249 = vmatprep.subr.mxu0 0.0
    %4250 = vmatpush1.msra.mxu0 0.0
    %4251 = vmatprep.subr.mxu0 0.0
    %4252 = vmatpush1.msra.mxu0 0.0
    %4253 = vmatprep.mubr.f32.mxu0 0.0
    %v4254 = vand.u32 %v3848, 4294901760
    %4255 = vmatmul.mubr.f32.gmra.mrb[0].mxu0 %v4254
    %v4256 = vpop.f32.mrb[0].mxu0
    %v4257 = vadd.f32 %v4174, %v4256
    %v4258 = vpop.f32.mrb[0].mxu0
    %4259 = vdwg.mxu0
    %4260 = vmatprep.subr.mxu0 0.0
    %v4261 = vand.u32 %v3834, 4294901760
    %4262 = vmatpush1.msra.mxu0 %v4261
    %4263 = vmatprep.subr.mxu0 0.0
    %v4264 = vand.u32 %v3835, 4294901760
    %4265 = vmatpush1.msra.mxu0 %v4264
    %4266 = vmatprep.subr.mxu0 0.0
    %v4267 = vand.u32 %v3836, 4294901760
    %4268 = vmatpush1.msra.mxu0 %v4267
    %4269 = vmatprep.subr.mxu0 0.0
    %v4270 = vand.u32 %v3837, 4294901760
    %4271 = vmatpush1.msra.mxu0 %v4270
    %4272 = vmatprep.subr.mxu0 0.0
    %4273 = vmatpush1.msra.mxu0 0.0
    %4274 = vmatprep.subr.mxu0 0.0
    %4275 = vmatpush1.msra.mxu0 0.0
    %4276 = vmatprep.subr.mxu0 0.0
    %4277 = vmatpush1.msra.mxu0 0.0
    %4278 = vmatprep.subr.mxu0 0.0
    %4279 = vmatpush1.msra.mxu0 0.0
    %4280 = vmatprep.subr.mxu0 0.0
    %4281 = vmatpush1.msra.mxu0 0.0
    %4282 = vmatprep.subr.mxu0 0.0
    %4283 = vmatpush1.msra.mxu0 0.0
    %4284 = vmatprep.subr.mxu0 0.0
    %4285 = vmatpush1.msra.mxu0 0.0
    %4286 = vmatprep.subr.mxu0 0.0
    %4287 = vmatpush1.msra.mxu0 0.0
    %4288 = vmatprep.subr.mxu0 0.0
    %4289 = vmatpush1.msra.mxu0 0.0
    %4290 = vmatprep.subr.mxu0 0.0
    %4291 = vmatpush1.msra.mxu0 0.0
    %4292 = vmatprep.subr.mxu0 0.0
    %4293 = vmatpush1.msra.mxu0 0.0
    %4294 = vmatprep.subr.mxu0 0.0
    %4295 = vmatpush1.msra.mxu0 0.0
    %4296 = vmatprep.subr.mxu0 0.0
    %4297 = vmatpush1.msra.mxu0 0.0
    %4298 = vmatprep.subr.mxu0 0.0
    %4299 = vmatpush1.msra.mxu0 0.0
    %4300 = vmatprep.subr.mxu0 0.0
    %4301 = vmatpush1.msra.mxu0 0.0
    %4302 = vmatprep.subr.mxu0 0.0
    %4303 = vmatpush1.msra.mxu0 0.0
    %4304 = vmatprep.subr.mxu0 0.0
    %4305 = vmatpush1.msra.mxu0 0.0
    %4306 = vmatprep.subr.mxu0 0.0
    %4307 = vmatpush1.msra.mxu0 0.0
    %4308 = vmatprep.subr.mxu0 0.0
    %4309 = vmatpush1.msra.mxu0 0.0
    %4310 = vmatprep.subr.mxu0 0.0
    %4311 = vmatpush1.msra.mxu0 0.0
    %4312 = vmatprep.subr.mxu0 0.0
    %4313 = vmatpush1.msra.mxu0 0.0
    %4314 = vmatprep.subr.mxu0 0.0
    %4315 = vmatpush1.msra.mxu0 0.0
    %4316 = vmatprep.subr.mxu0 0.0
    %4317 = vmatpush1.msra.mxu0 0.0
    %4318 = vmatprep.subr.mxu0 0.0
    %4319 = vmatpush1.msra.mxu0 0.0
    %4320 = vmatprep.subr.mxu0 0.0
    %4321 = vmatpush1.msra.mxu0 0.0
    %4322 = vmatprep.subr.mxu0 0.0
    %4323 = vmatpush1.msra.mxu0 0.0
    %4324 = vmatprep.subr.mxu0 0.0
    %4325 = vmatpush1.msra.mxu0 0.0
    %4326 = vmatprep.subr.mxu0 0.0
    %4327 = vmatpush1.msra.mxu0 0.0
    %4328 = vmatprep.mubr.f32.mxu0 0.0
    %v4329 = vand.u32 %v3848, 4294901760
    %4330 = vmatmul.mubr.f32.gmra.mrb[0].mxu0 %v4329
    %v4331 = vpop.f32.mrb[0].mxu0
    %v4332 = vadd.f32 %v4257, %v4331
    %v4333 = vpop.f32.mrb[0].mxu0
    %4334 = vdwg.mxu0
    %v4335 = vxor.u32 %v4332, 2147483648
    %v4336 = vmul.f32 %v4335, 1.442695
    %v4337 = vpow.pop %v4336
    %v4338 = vadd.f32 %v4337, 1.0
    %v4339 = vrcp.pop %v4338
    %v4340 = vmul.f32 1.0, %v4339
    %vm4341 = vcmask 130048
    %4342 = vst.msk [vmem:[#allocation5] sm:$0xff] %vm4341, %v4340
    // Predicated region
    $region30: #{tpu_custom_call.1} parent=1 // pred_check
      _
    $region31: #{tpu_custom_call.1} parent=1 // pred_check_branch
      %4344 = sbr.rel (0) target = $region33
    $region32: #{tpu_custom_call.1} parent=1 // pred_region
      %s4346 = ssub.s32 128, 128
      %4347 = vsyncadd [#allocation4], %s4346
      %s4349 = sshll.u32 [#allocation5], 4
      %s4350 = int_to_ptr.vmem [resolvable:$true] %s4349
      %4352 = dma.vmem_to_hbm [thread:$0]  %s4350, 128, %s6, [#allocation4]
    $region33: #{tpu_custom_call.1} parent=1 // pred_fallthru
      _
    // Predicated region
    $region34: #{tpu_custom_call.1} parent=1 // pred_check
      _
    $region35: #{tpu_custom_call.1} parent=1 // pred_check_branch
      %4354 = sbr.rel (0) target = $region37
    $region36: #{tpu_custom_call.1} parent=1 // pred_region
      %s4356 = ssub.s32 64, 64
      %4357 = vsyncadd [#allocation7], %s4356
      %s4358 = sshll.u32 [#allocation6], 4
      %s4359 = int_to_ptr.vmem [resolvable:$true] %s4358
      %4364 = dma.vmem_to_hbm [thread:$0]  %s4359, 64, %s7, [#allocation7], 32, 32, 2
    $region37: #{tpu_custom_call.1} parent=1 // pred_fallthru
      _
    // Predicated region
    $region38: #{tpu_custom_call.1} parent=1 // pred_check
      _
    $region39: #{tpu_custom_call.1} parent=1 // pred_check_branch
      %4366 = sbr.rel (0) target = $region41
    $region40: #{tpu_custom_call.1} parent=1 // pred_region
      %4367 = dma.done [#allocation4], 128
    $region41: #{tpu_custom_call.1} parent=1 // pred_fallthru
      _
    // Predicated region
    $region42: #{tpu_custom_call.1} parent=1 // pred_check
      _
    $region43: #{tpu_custom_call.1} parent=1 // pred_check_branch
      %4369 = sbr.rel (0) target = $region45
    $region44: #{tpu_custom_call.1} parent=1 // pred_region
      %4370 = dma.done [#allocation7], 64
    $region45: #{tpu_custom_call.1} parent=1 // pred_fallthru
      _
    %4371 = vsyncpa [#allocation3], 1
    %4372 = vsyncpa [#allocation4], 1
    %4373 = vsyncpa [#allocation7], 1

</llo_original>
